<compile_context>
chip_gen: v7x
topology: tpu7x:2x2x1
jax: 0.10.0
libtpu: 0.0.40
codegen_flags: <defaults>
</compile_context>

<pallas_src>
import functools

import jax
import jax.numpy as jnp
from jax import lax
from jax.experimental import pallas as pl
from jax.experimental.pallas import tpu as pltpu

F32 = jnp.float32


# ----------------------------------------------------------------------------
# in-kernel math helpers (all operate on VMEM values, never touch HBM)
# ----------------------------------------------------------------------------
def _erf(x):
    # Abramowitz & Stegun 7.1.26 polynomial, |abs err| <= 1.5e-7: matches
    # PyTorch's exact (erf-based) nn.GELU to f32 tolerance using only exp/mul.
    a1, a2, a3, a4, a5 = 0.254829592, -0.284496736, 1.421413741, -1.453152027, 1.061405429
    p = 0.3275911
    s = jnp.where(x >= 0.0, 1.0, -1.0)
    ax = jnp.abs(x)
    t = 1.0 / (1.0 + p * ax)
    poly = ((((a5 * t + a4) * t + a3) * t + a2) * t + a1) * t
    return s * (1.0 - poly * jnp.exp(-ax * ax))


def _gelu(x):
    return 0.5 * x * (1.0 + _erf(x * 0.7071067811865476))


def _layernorm(x, g, b, eps=1e-5):
    mu = jnp.mean(x, axis=-1, keepdims=True)
    xc = x - mu
    var = jnp.mean(xc * xc, axis=-1, keepdims=True)
    return xc * lax.rsqrt(var + eps) * g + b


def _softmax_lastdim(s):
    m = jnp.max(s, axis=-1, keepdims=True)
    p = jnp.exp(s - m)
    return p * pl.reciprocal(jnp.sum(p, axis=-1, keepdims=True), approx=True)


# ----------------------------------------------------------------------------
# the single fused kernel: one grid step == one batch element
# ----------------------------------------------------------------------------
def siglip_text_kernel(*refs, n_layers, n_heads):
    onehot_ref, pos_ref, tokemb_ref = refs[:3]
    rest = refs[3:]
    layer_refs = rest[: 12 * n_layers]
    lnf_g_ref, lnf_b_ref, proj_w_ref, proj_b_ref, o_ref = rest[12 * n_layers:]

    # token embedding as a one-hot matmul (keeps the gather on the MXU, in VMEM)
    x = (jnp.dot(onehot_ref[0], tokemb_ref[...], preferred_element_type=F32)
         + pos_ref[...])                                        # [S, H]
    S, H = x.shape
    hd = H // n_heads
    scale = 1.0 / float(hd) ** 0.5

    for l in range(n_layers):
        (ln1_g, ln1_b, w_qkv, b_qkv, w_out, b_out,
         ln2_g, ln2_b, w_ff1, b_ff1, w_ff2, b_ff2) = (
            r[...] for r in layer_refs[12 * l: 12 * (l + 1)])

        # ---- multi-head self-attention (pre-LN, residual + out-proj fused) --
        xn = _layernorm(x, ln1_g, ln1_b)
        qkv = jnp.dot(xn, w_qkv, preferred_element_type=F32) + b_qkv  # [S, 3H]
        attn = jnp.zeros((S, H), F32)
        for h in range(n_heads):
            lo = h * hd
            q = qkv[:, lo:lo + hd] * scale
            k = qkv[:, H + lo:H + lo + hd]
            v = qkv[:, 2 * H + lo:2 * H + lo + hd]
            s = lax.dot_general(q, k, (((1,), (1,)), ((), ())),
                                preferred_element_type=F32)           # [S, S]
            p = _softmax_lastdim(s)
            ctx_h = jnp.dot(p, v, preferred_element_type=F32)         # [S, hd]
            # fold the output projection in per head: ctx @ W_out == sum_h ctx_h @ W_out[h]
            attn = attn + jnp.dot(ctx_h, w_out[lo:lo + hd, :],
                                  preferred_element_type=F32)
        x = x + attn + b_out

        # ---- MLP (pre-LN, exact GELU, residual fused) ------------------------
        xn = _layernorm(x, ln2_g, ln2_b)
        hmid = _gelu(jnp.dot(xn, w_ff1, preferred_element_type=F32) + b_ff1)
        x = x + jnp.dot(hmid, w_ff2, preferred_element_type=F32) + b_ff2

    # final LN, SigLIP 'last' pooling (x[:, -1]) and text projection
    x = _layernorm(x, lnf_g_ref[...], lnf_b_ref[...])
    pooled = x[S - 1:S, :]                                            # [1, H]
    out = (jnp.dot(pooled, proj_w_ref[...], preferred_element_type=F32)
           + proj_b_ref[...])                                          # [1, E]
    o_ref[0] = out


# ----------------------------------------------------------------------------
# wrapper: one pallas_call for the whole encoder
# ----------------------------------------------------------------------------
def query_encoder(token_ids, params, *, n_heads):
    """token_ids: int32 [B, S]  ->  query embeddings [B, E] (un-normalized,
    matching open_clip encode_text(normalize=False))."""
    B, S = token_ids.shape
    V, H = params["tok_emb"].shape
    E = params["proj_w"].shape[1]
    n_layers = len(params["layers"])

    # embedding gather expressed as a lane-dense one-hot (consumed by the MXU
    # inside the fused kernel).
    onehot = jax.nn.one_hot(token_ids, V, dtype=F32)                   # [B, S, V]

    def rb(v):  # 1-D param -> [1, N] row (reshaped once, outside the kernel)
        return v.reshape(1, -1)

    inputs = [onehot, params["pos_emb"], params["tok_emb"]]
    for lp in params["layers"]:
        inputs += [rb(lp["ln1_g"]), rb(lp["ln1_b"]),
                   lp["w_qkv"], rb(lp["b_qkv"]),
                   lp["w_out"], rb(lp["b_out"]),
                   rb(lp["ln2_g"]), rb(lp["ln2_b"]),
                   lp["w_ff1"], rb(lp["b_ff1"]),
                   lp["w_ff2"], rb(lp["b_ff2"])]
    inputs += [rb(params["lnf_g"]), rb(params["lnf_b"]),
               params["proj_w"], rb(params["proj_b"])]

    # batch-parallel grid; all weights use a constant index map so they are
    # copied into VMEM once and revisited (no re-DMA) across grid steps.
    in_specs = [pl.BlockSpec((1, S, V), lambda b: (b, 0, 0))]
    for arr in inputs[1:]:
        r, c = arr.shape
        in_specs.append(pl.BlockSpec((r, c), lambda b: (0, 0)))

    out = pl.pallas_call(
        functools.partial(siglip_text_kernel, n_layers=n_layers, n_heads=n_heads),
        out_shape=jax.ShapeDtypeStruct((B, 1, E), F32),
        grid=(B,),
        in_specs=in_specs,
        out_specs=pl.BlockSpec((1, 1, E), lambda b: (b, 0, 0)),
        compiler_params=pltpu.CompilerParams(
            dimension_semantics=("parallel",)),   # lets v7x use both TensorCores
    )(*inputs)
    return out.reshape(B, E)


# ----------------------------------------------------------------------------
# deterministic synthetic parameters (shapes follow open_clip TextTransformer)
# ----------------------------------------------------------------------------
def init_params(key, *, V, S, H, n_layers, ff_mult, E):
    keys = iter(jax.random.split(key, 256))

    def w(shape, scale=0.05):
        return jax.random.normal(next(keys), shape, F32) * scale

    def b(shape):
        return jax.random.normal(next(keys), shape, F32) * 0.01

    FF = H * ff_mult
    layers = []
    for _ in range(n_layers):
        layers.append(dict(
            ln1_g=jnp.ones((H,), F32), ln1_b=jnp.zeros((H,), F32),
            w_qkv=w((H, 3 * H)), b_qkv=b((3 * H,)),
            w_out=w((H, H)), b_out=b((H,)),
            ln2_g=jnp.ones((H,), F32), ln2_b=jnp.zeros((H,), F32),
            w_ff1=w((H, FF)), b_ff1=b((FF,)),
            w_ff2=w((FF, H)), b_ff2=b((H,)),
        ))
    return dict(
        tok_emb=w((V, H), 0.02),
        pos_emb=w((S, H), 0.01),
        layers=layers,
        lnf_g=jnp.ones((H,), F32), lnf_b=jnp.zeros((H,), F32),
        proj_w=w((H, E)), proj_b=b((E,)),
    )


# ----------------------------------------------------------------------------
if __name__ == "__main__":
    key = jax.random.PRNGKey(0)
    k_tok, k_par = jax.random.split(key)

    # small shapes consistent with a text transformer forward:
    # batch=2, context=8 tokens, vocab=64, hidden=32, 4 heads, 2 layers, embed=64
    B, S, V, H, nh, L, E = 2, 8, 64, 32, 4, 2, 64

    # TODO(synk): real QueryEncoder takes raw strings; tokenization has no
    # Pallas equivalent, so deterministic token ids stand in for tokenizer output.
    token_ids = jax.random.randint(k_tok, (B, S), 0, V, dtype=jnp.int32)
    params = init_params(k_par, V=V, S=S, H=H, n_layers=L, ff_mult=4, E=E)

    out = query_encoder(token_ids, params, n_heads=nh)
    out = jax.block_until_ready(out)

    assert out.shape == (B, E), out.shape
    assert bool(jnp.all(jnp.isfinite(out)))
    print("KERNEL_OK")
</pallas_src>

<mosaic_0001>
module attributes {stable_mosaic.version = 11 : i64} {
  func.func @siglip_text_kernel(%arg0: i32, %arg1: memref<1x8x64xf32, #tpu.memory_space<vmem>>, %arg2: memref<8x32xf32, #tpu.memory_space<vmem>>, %arg3: memref<64x32xf32, #tpu.memory_space<vmem>>, %arg4: memref<1x32xf32, #tpu.memory_space<vmem>>, %arg5: memref<1x32xf32, #tpu.memory_space<vmem>>, %arg6: memref<32x96xf32, #tpu.memory_space<vmem>>, %arg7: memref<1x96xf32, #tpu.memory_space<vmem>>, %arg8: memref<32x32xf32, #tpu.memory_space<vmem>>, %arg9: memref<1x32xf32, #tpu.memory_space<vmem>>, %arg10: memref<1x32xf32, #tpu.memory_space<vmem>>, %arg11: memref<1x32xf32, #tpu.memory_space<vmem>>, %arg12: memref<32x128xf32, #tpu.memory_space<vmem>>, %arg13: memref<1x128xf32, #tpu.memory_space<vmem>>, %arg14: memref<128x32xf32, #tpu.memory_space<vmem>>, %arg15: memref<1x32xf32, #tpu.memory_space<vmem>>, %arg16: memref<1x32xf32, #tpu.memory_space<vmem>>, %arg17: memref<1x32xf32, #tpu.memory_space<vmem>>, %arg18: memref<32x96xf32, #tpu.memory_space<vmem>>, %arg19: memref<1x96xf32, #tpu.memory_space<vmem>>, %arg20: memref<32x32xf32, #tpu.memory_space<vmem>>, %arg21: memref<1x32xf32, #tpu.memory_space<vmem>>, %arg22: memref<1x32xf32, #tpu.memory_space<vmem>>, %arg23: memref<1x32xf32, #tpu.memory_space<vmem>>, %arg24: memref<32x128xf32, #tpu.memory_space<vmem>>, %arg25: memref<1x128xf32, #tpu.memory_space<vmem>>, %arg26: memref<128x32xf32, #tpu.memory_space<vmem>>, %arg27: memref<1x32xf32, #tpu.memory_space<vmem>>, %arg28: memref<1x32xf32, #tpu.memory_space<vmem>>, %arg29: memref<1x32xf32, #tpu.memory_space<vmem>>, %arg30: memref<32x64xf32, #tpu.memory_space<vmem>>, %arg31: memref<1x64xf32, #tpu.memory_space<vmem>>, %arg32: memref<1x1x64xf32, #tpu.memory_space<vmem>>) attributes {dimension_semantics = [#tpu.dimension_semantics<parallel>], iteration_bounds = array<i64: 2>, scalar_prefetch = 0 : i64, scratch_operands = 0 : i64, tpu.core_type = #tpu.core_type<tc>, window_params = [{transform_indices = @transform_0, window_bounds = array<i64: 1, 8, 64>}, {pipeline_mode = #tpu.pipeline_mode<synchronous>, transform_indices = @transform_1, window_bounds = array<i64: 8, 32>}, {pipeline_mode = #tpu.pipeline_mode<synchronous>, transform_indices = @transform_2, window_bounds = array<i64: 64, 32>}, {pipeline_mode = #tpu.pipeline_mode<synchronous>, transform_indices = @transform_3, window_bounds = array<i64: 1, 32>}, {pipeline_mode = #tpu.pipeline_mode<synchronous>, transform_indices = @transform_4, window_bounds = array<i64: 1, 32>}, {pipeline_mode = #tpu.pipeline_mode<synchronous>, transform_indices = @transform_5, window_bounds = array<i64: 32, 96>}, {pipeline_mode = #tpu.pipeline_mode<synchronous>, transform_indices = @transform_6, window_bounds = array<i64: 1, 96>}, {pipeline_mode = #tpu.pipeline_mode<synchronous>, transform_indices = @transform_7, window_bounds = array<i64: 32, 32>}, {pipeline_mode = #tpu.pipeline_mode<synchronous>, transform_indices = @transform_8, window_bounds = array<i64: 1, 32>}, {pipeline_mode = #tpu.pipeline_mode<synchronous>, transform_indices = @transform_9, window_bounds = array<i64: 1, 32>}, {pipeline_mode = #tpu.pipeline_mode<synchronous>, transform_indices = @transform_10, window_bounds = array<i64: 1, 32>}, {pipeline_mode = #tpu.pipeline_mode<synchronous>, transform_indices = @transform_11, window_bounds = array<i64: 32, 128>}, {pipeline_mode = #tpu.pipeline_mode<synchronous>, transform_indices = @transform_12, window_bounds = array<i64: 1, 128>}, {pipeline_mode = #tpu.pipeline_mode<synchronous>, transform_indices = @transform_13, window_bounds = array<i64: 128, 32>}, {pipeline_mode = #tpu.pipeline_mode<synchronous>, transform_indices = @transform_14, window_bounds = array<i64: 1, 32>}, {pipeline_mode = #tpu.pipeline_mode<synchronous>, transform_indices = @transform_15, window_bounds = array<i64: 1, 32>}, {pipeline_mode = #tpu.pipeline_mode<synchronous>, transform_indices = @transform_16, window_bounds = array<i64: 1, 32>}, {pipeline_mode = #tpu.pipeline_mode<synchronous>, transform_indices = @transform_17, window_bounds = array<i64: 32, 96>}, {pipeline_mode = #tpu.pipeline_mode<synchronous>, transform_indices = @transform_18, window_bounds = array<i64: 1, 96>}, {pipeline_mode = #tpu.pipeline_mode<synchronous>, transform_indices = @transform_19, window_bounds = array<i64: 32, 32>}, {pipeline_mode = #tpu.pipeline_mode<synchronous>, transform_indices = @transform_20, window_bounds = array<i64: 1, 32>}, {pipeline_mode = #tpu.pipeline_mode<synchronous>, transform_indices = @transform_21, window_bounds = array<i64: 1, 32>}, {pipeline_mode = #tpu.pipeline_mode<synchronous>, transform_indices = @transform_22, window_bounds = array<i64: 1, 32>}, {pipeline_mode = #tpu.pipeline_mode<synchronous>, transform_indices = @transform_23, window_bounds = array<i64: 32, 128>}, {pipeline_mode = #tpu.pipeline_mode<synchronous>, transform_indices = @transform_24, window_bounds = array<i64: 1, 128>}, {pipeline_mode = #tpu.pipeline_mode<synchronous>, transform_indices = @transform_25, window_bounds = array<i64: 128, 32>}, {pipeline_mode = #tpu.pipeline_mode<synchronous>, transform_indices = @transform_26, window_bounds = array<i64: 1, 32>}, {pipeline_mode = #tpu.pipeline_mode<synchronous>, transform_indices = @transform_27, window_bounds = array<i64: 1, 32>}, {pipeline_mode = #tpu.pipeline_mode<synchronous>, transform_indices = @transform_28, window_bounds = array<i64: 1, 32>}, {pipeline_mode = #tpu.pipeline_mode<synchronous>, transform_indices = @transform_29, window_bounds = array<i64: 32, 64>}, {pipeline_mode = #tpu.pipeline_mode<synchronous>, transform_indices = @transform_30, window_bounds = array<i64: 1, 64>}, {transform_indices = @transform_31, window_bounds = array<i64: 1, 1, 64>}]} {
    %c0 = arith.constant 0 : index
    %c0_0 = arith.constant 0 : index
    %c0_1 = arith.constant 0 : index
    %0 = vector.load %arg1[%c0, %c0_0, %c0_1] : memref<1x8x64xf32, #tpu.memory_space<vmem>>, vector<1x8x64xf32>
    %1 = vector.shape_cast %0 : vector<1x8x64xf32> to vector<8x64xf32>
    %c0_2 = arith.constant 0 : index
    %c0_3 = arith.constant 0 : index
    %2 = vector.load %arg3[%c0_2, %c0_3] : memref<64x32xf32, #tpu.memory_space<vmem>>, vector<64x32xf32>
    %cst = arith.constant dense<0.000000e+00> : vector<8x32xf32>
    %3 = tpu.matmul %1, %2, %cst {dimension_numbers = #tpu.dot_dimension_numbers<[1], [0], [0], [1], [0, 0, 1, 1], [], []>} : vector<8x64xf32>, vector<64x32xf32>, vector<8x32xf32> -> vector<8x32xf32>
    %c0_4 = arith.constant 0 : index
    %c0_5 = arith.constant 0 : index
    %4 = vector.load %arg2[%c0_4, %c0_5] : memref<8x32xf32, #tpu.memory_space<vmem>>, vector<8x32xf32>
    %5 = arith.addf %3, %4 : vector<8x32xf32>
    %c0_6 = arith.constant 0 : index
    %c0_7 = arith.constant 0 : index
    %6 = vector.load %arg4[%c0_6, %c0_7] : memref<1x32xf32, #tpu.memory_space<vmem>>, vector<1x32xf32>
    %c0_8 = arith.constant 0 : index
    %c0_9 = arith.constant 0 : index
    %7 = vector.load %arg5[%c0_8, %c0_9] : memref<1x32xf32, #tpu.memory_space<vmem>>, vector<1x32xf32>
    %c0_10 = arith.constant 0 : index
    %c0_11 = arith.constant 0 : index
    %8 = vector.load %arg6[%c0_10, %c0_11] : memref<32x96xf32, #tpu.memory_space<vmem>>, vector<32x96xf32>
    %c0_12 = arith.constant 0 : index
    %c0_13 = arith.constant 0 : index
    %9 = vector.load %arg7[%c0_12, %c0_13] : memref<1x96xf32, #tpu.memory_space<vmem>>, vector<1x96xf32>
    %c0_14 = arith.constant 0 : index
    %c0_15 = arith.constant 0 : index
    %10 = vector.load %arg8[%c0_14, %c0_15] : memref<32x32xf32, #tpu.memory_space<vmem>>, vector<32x32xf32>
    %c0_16 = arith.constant 0 : index
    %c0_17 = arith.constant 0 : index
    %11 = vector.load %arg9[%c0_16, %c0_17] : memref<1x32xf32, #tpu.memory_space<vmem>>, vector<1x32xf32>
    %c0_18 = arith.constant 0 : index
    %c0_19 = arith.constant 0 : index
    %12 = vector.load %arg10[%c0_18, %c0_19] : memref<1x32xf32, #tpu.memory_space<vmem>>, vector<1x32xf32>
    %c0_20 = arith.constant 0 : index
    %c0_21 = arith.constant 0 : index
    %13 = vector.load %arg11[%c0_20, %c0_21] : memref<1x32xf32, #tpu.memory_space<vmem>>, vector<1x32xf32>
    %c0_22 = arith.constant 0 : index
    %c0_23 = arith.constant 0 : index
    %14 = vector.load %arg12[%c0_22, %c0_23] : memref<32x128xf32, #tpu.memory_space<vmem>>, vector<32x128xf32>
    %c0_24 = arith.constant 0 : index
    %c0_25 = arith.constant 0 : index
    %15 = vector.load %arg13[%c0_24, %c0_25] : memref<1x128xf32, #tpu.memory_space<vmem>>, vector<1x128xf32>
    %c0_26 = arith.constant 0 : index
    %c0_27 = arith.constant 0 : index
    %16 = vector.load %arg14[%c0_26, %c0_27] : memref<128x32xf32, #tpu.memory_space<vmem>>, vector<128x32xf32>
    %c0_28 = arith.constant 0 : index
    %c0_29 = arith.constant 0 : index
    %17 = vector.load %arg15[%c0_28, %c0_29] : memref<1x32xf32, #tpu.memory_space<vmem>>, vector<1x32xf32>
    %cst_30 = arith.constant dense<0.000000e+00> : vector<8xf32>
    %18 = vector.multi_reduction <add>, %5, %cst_30 [1] : vector<8x32xf32> to vector<8xf32>
    %19 = vector.shape_cast %18 : vector<8xf32> to vector<8x1xf32>
    %cst_31 = arith.constant 3.200000e+01 : f32
    %20 = vector.broadcast %cst_31 : f32 to vector<8x1xf32>
    %21 = arith.divf %19, %20 : vector<8x1xf32>
    %22 = vector.broadcast %21 : vector<8x1xf32> to vector<8x32xf32>
    %23 = arith.subf %5, %22 : vector<8x32xf32>
    %24 = arith.mulf %23, %23 : vector<8x32xf32>
    %cst_32 = arith.constant dense<0.000000e+00> : vector<8xf32>
    %25 = vector.multi_reduction <add>, %24, %cst_32 [1] : vector<8x32xf32> to vector<8xf32>
    %26 = vector.shape_cast %25 : vector<8xf32> to vector<8x1xf32>
    %cst_33 = arith.constant 3.200000e+01 : f32
    %27 = vector.broadcast %cst_33 : f32 to vector<8x1xf32>
    %28 = arith.divf %26, %27 : vector<8x1xf32>
    %cst_34 = arith.constant 9.99999974E-6 : f32
    %29 = vector.broadcast %cst_34 : f32 to vector<8x1xf32>
    %30 = arith.addf %28, %29 : vector<8x1xf32>
    %31 = math.rsqrt %30 : vector<8x1xf32>
    %32 = vector.broadcast %31 : vector<8x1xf32> to vector<8x32xf32>
    %33 = arith.mulf %23, %32 : vector<8x32xf32>
    %34 = vector.broadcast %6 : vector<1x32xf32> to vector<8x32xf32>
    %35 = arith.mulf %33, %34 : vector<8x32xf32>
    %36 = vector.broadcast %7 : vector<1x32xf32> to vector<8x32xf32>
    %37 = arith.addf %35, %36 : vector<8x32xf32>
    %cst_35 = arith.constant dense<0.000000e+00> : vector<8x96xf32>
    %38 = tpu.matmul %37, %8, %cst_35 {dimension_numbers = #tpu.dot_dimension_numbers<[1], [0], [0], [1], [0, 0, 1, 1], [], []>} : vector<8x32xf32>, vector<32x96xf32>, vector<8x96xf32> -> vector<8x96xf32>
    %39 = vector.broadcast %9 : vector<1x96xf32> to vector<8x96xf32>
    %40 = arith.addf %38, %39 : vector<8x96xf32>
    %cst_36 = arith.constant 0.000000e+00 : f32
    %41 = vector.broadcast %cst_36 : f32 to vector<8x32xf32>
    %42 = vector.extract_strided_slice %40 {offsets = [0, 0], sizes = [8, 8], strides = [1, 1]} : vector<8x96xf32> to vector<8x8xf32>
    %cst_37 = arith.constant 0.353553385 : f32
    %43 = vector.broadcast %cst_37 : f32 to vector<8x8xf32>
    %44 = arith.mulf %42, %43 : vector<8x8xf32>
    %45 = vector.extract_strided_slice %40 {offsets = [0, 32], sizes = [8, 8], strides = [1, 1]} : vector<8x96xf32> to vector<8x8xf32>
    %46 = vector.extract_strided_slice %40 {offsets = [0, 64], sizes = [8, 8], strides = [1, 1]} : vector<8x96xf32> to vector<8x8xf32>
    %cst_38 = arith.constant dense<0.000000e+00> : vector<8x8xf32>
    %47 = tpu.matmul %44, %45, %cst_38 {dimension_numbers = #tpu.dot_dimension_numbers<[1], [1], [0], [0], [0, 0, 1, 0], [], []>} : vector<8x8xf32>, vector<8x8xf32>, vector<8x8xf32> -> vector<8x8xf32>
    %cst_39 = arith.constant dense<0xFF800000> : vector<8xf32>
    %48 = vector.multi_reduction <maximumf>, %47, %cst_39 [1] : vector<8x8xf32> to vector<8xf32>
    %49 = vector.shape_cast %48 : vector<8xf32> to vector<8x1xf32>
    %50 = vector.broadcast %49 : vector<8x1xf32> to vector<8x8xf32>
    %51 = arith.subf %47, %50 : vector<8x8xf32>
    %52 = math.exp %51 : vector<8x8xf32>
    %cst_40 = arith.constant dense<0.000000e+00> : vector<8xf32>
    %53 = vector.multi_reduction <add>, %52, %cst_40 [1] : vector<8x8xf32> to vector<8xf32>
    %54 = vector.shape_cast %53 : vector<8xf32> to vector<8x1xf32>
    %55 = tpu.reciprocal %54 {approx = true} : vector<8x1xf32> -> vector<8x1xf32>
    %56 = vector.broadcast %55 : vector<8x1xf32> to vector<8x8xf32>
    %57 = arith.mulf %52, %56 : vector<8x8xf32>
    %cst_41 = arith.constant dense<0.000000e+00> : vector<8x8xf32>
    %58 = tpu.matmul %57, %46, %cst_41 {dimension_numbers = #tpu.dot_dimension_numbers<[1], [0], [0], [1], [0, 0, 1, 1], [], []>} : vector<8x8xf32>, vector<8x8xf32>, vector<8x8xf32> -> vector<8x8xf32>
    %59 = vector.extract_strided_slice %10 {offsets = [0, 0], sizes = [8, 32], strides = [1, 1]} : vector<32x32xf32> to vector<8x32xf32>
    %cst_42 = arith.constant dense<0.000000e+00> : vector<8x32xf32>
    %60 = tpu.matmul %58, %59, %cst_42 {dimension_numbers = #tpu.dot_dimension_numbers<[1], [0], [0], [1], [0, 0, 1, 1], [], []>} : vector<8x8xf32>, vector<8x32xf32>, vector<8x32xf32> -> vector<8x32xf32>
    %61 = arith.addf %41, %60 : vector<8x32xf32>
    %62 = vector.extract_strided_slice %40 {offsets = [0, 8], sizes = [8, 8], strides = [1, 1]} : vector<8x96xf32> to vector<8x8xf32>
    %cst_43 = arith.constant 0.353553385 : f32
    %63 = vector.broadcast %cst_43 : f32 to vector<8x8xf32>
    %64 = arith.mulf %62, %63 : vector<8x8xf32>
    %65 = vector.extract_strided_slice %40 {offsets = [0, 40], sizes = [8, 8], strides = [1, 1]} : vector<8x96xf32> to vector<8x8xf32>
    %66 = vector.extract_strided_slice %40 {offsets = [0, 72], sizes = [8, 8], strides = [1, 1]} : vector<8x96xf32> to vector<8x8xf32>
    %cst_44 = arith.constant dense<0.000000e+00> : vector<8x8xf32>
    %67 = tpu.matmul %64, %65, %cst_44 {dimension_numbers = #tpu.dot_dimension_numbers<[1], [1], [0], [0], [0, 0, 1, 0], [], []>} : vector<8x8xf32>, vector<8x8xf32>, vector<8x8xf32> -> vector<8x8xf32>
    %cst_45 = arith.constant dense<0xFF800000> : vector<8xf32>
    %68 = vector.multi_reduction <maximumf>, %67, %cst_45 [1] : vector<8x8xf32> to vector<8xf32>
    %69 = vector.shape_cast %68 : vector<8xf32> to vector<8x1xf32>
    %70 = vector.broadcast %69 : vector<8x1xf32> to vector<8x8xf32>
    %71 = arith.subf %67, %70 : vector<8x8xf32>
    %72 = math.exp %71 : vector<8x8xf32>
    %cst_46 = arith.constant dense<0.000000e+00> : vector<8xf32>
    %73 = vector.multi_reduction <add>, %72, %cst_46 [1] : vector<8x8xf32> to vector<8xf32>
    %74 = vector.shape_cast %73 : vector<8xf32> to vector<8x1xf32>
    %75 = tpu.reciprocal %74 {approx = true} : vector<8x1xf32> -> vector<8x1xf32>
    %76 = vector.broadcast %75 : vector<8x1xf32> to vector<8x8xf32>
    %77 = arith.mulf %72, %76 : vector<8x8xf32>
    %cst_47 = arith.constant dense<0.000000e+00> : vector<8x8xf32>
    %78 = tpu.matmul %77, %66, %cst_47 {dimension_numbers = #tpu.dot_dimension_numbers<[1], [0], [0], [1], [0, 0, 1, 1], [], []>} : vector<8x8xf32>, vector<8x8xf32>, vector<8x8xf32> -> vector<8x8xf32>
    %79 = vector.extract_strided_slice %10 {offsets = [8, 0], sizes = [8, 32], strides = [1, 1]} : vector<32x32xf32> to vector<8x32xf32>
    %cst_48 = arith.constant dense<0.000000e+00> : vector<8x32xf32>
    %80 = tpu.matmul %78, %79, %cst_48 {dimension_numbers = #tpu.dot_dimension_numbers<[1], [0], [0], [1], [0, 0, 1, 1], [], []>} : vector<8x8xf32>, vector<8x32xf32>, vector<8x32xf32> -> vector<8x32xf32>
    %81 = arith.addf %61, %80 : vector<8x32xf32>
    %82 = vector.extract_strided_slice %40 {offsets = [0, 16], sizes = [8, 8], strides = [1, 1]} : vector<8x96xf32> to vector<8x8xf32>
    %cst_49 = arith.constant 0.353553385 : f32
    %83 = vector.broadcast %cst_49 : f32 to vector<8x8xf32>
    %84 = arith.mulf %82, %83 : vector<8x8xf32>
    %85 = vector.extract_strided_slice %40 {offsets = [0, 48], sizes = [8, 8], strides = [1, 1]} : vector<8x96xf32> to vector<8x8xf32>
    %86 = vector.extract_strided_slice %40 {offsets = [0, 80], sizes = [8, 8], strides = [1, 1]} : vector<8x96xf32> to vector<8x8xf32>
    %cst_50 = arith.constant dense<0.000000e+00> : vector<8x8xf32>
    %87 = tpu.matmul %84, %85, %cst_50 {dimension_numbers = #tpu.dot_dimension_numbers<[1], [1], [0], [0], [0, 0, 1, 0], [], []>} : vector<8x8xf32>, vector<8x8xf32>, vector<8x8xf32> -> vector<8x8xf32>
    %cst_51 = arith.constant dense<0xFF800000> : vector<8xf32>
    %88 = vector.multi_reduction <maximumf>, %87, %cst_51 [1] : vector<8x8xf32> to vector<8xf32>
    %89 = vector.shape_cast %88 : vector<8xf32> to vector<8x1xf32>
    %90 = vector.broadcast %89 : vector<8x1xf32> to vector<8x8xf32>
    %91 = arith.subf %87, %90 : vector<8x8xf32>
    %92 = math.exp %91 : vector<8x8xf32>
    %cst_52 = arith.constant dense<0.000000e+00> : vector<8xf32>
    %93 = vector.multi_reduction <add>, %92, %cst_52 [1] : vector<8x8xf32> to vector<8xf32>
    %94 = vector.shape_cast %93 : vector<8xf32> to vector<8x1xf32>
    %95 = tpu.reciprocal %94 {approx = true} : vector<8x1xf32> -> vector<8x1xf32>
    %96 = vector.broadcast %95 : vector<8x1xf32> to vector<8x8xf32>
    %97 = arith.mulf %92, %96 : vector<8x8xf32>
    %cst_53 = arith.constant dense<0.000000e+00> : vector<8x8xf32>
    %98 = tpu.matmul %97, %86, %cst_53 {dimension_numbers = #tpu.dot_dimension_numbers<[1], [0], [0], [1], [0, 0, 1, 1], [], []>} : vector<8x8xf32>, vector<8x8xf32>, vector<8x8xf32> -> vector<8x8xf32>
    %99 = vector.extract_strided_slice %10 {offsets = [16, 0], sizes = [8, 32], strides = [1, 1]} : vector<32x32xf32> to vector<8x32xf32>
    %cst_54 = arith.constant dense<0.000000e+00> : vector<8x32xf32>
    %100 = tpu.matmul %98, %99, %cst_54 {dimension_numbers = #tpu.dot_dimension_numbers<[1], [0], [0], [1], [0, 0, 1, 1], [], []>} : vector<8x8xf32>, vector<8x32xf32>, vector<8x32xf32> -> vector<8x32xf32>
    %101 = arith.addf %81, %100 : vector<8x32xf32>
    %102 = vector.extract_strided_slice %40 {offsets = [0, 24], sizes = [8, 8], strides = [1, 1]} : vector<8x96xf32> to vector<8x8xf32>
    %cst_55 = arith.constant 0.353553385 : f32
    %103 = vector.broadcast %cst_55 : f32 to vector<8x8xf32>
    %104 = arith.mulf %102, %103 : vector<8x8xf32>
    %105 = vector.extract_strided_slice %40 {offsets = [0, 56], sizes = [8, 8], strides = [1, 1]} : vector<8x96xf32> to vector<8x8xf32>
    %106 = vector.extract_strided_slice %40 {offsets = [0, 88], sizes = [8, 8], strides = [1, 1]} : vector<8x96xf32> to vector<8x8xf32>
    %cst_56 = arith.constant dense<0.000000e+00> : vector<8x8xf32>
    %107 = tpu.matmul %104, %105, %cst_56 {dimension_numbers = #tpu.dot_dimension_numbers<[1], [1], [0], [0], [0, 0, 1, 0], [], []>} : vector<8x8xf32>, vector<8x8xf32>, vector<8x8xf32> -> vector<8x8xf32>
    %cst_57 = arith.constant dense<0xFF800000> : vector<8xf32>
    %108 = vector.multi_reduction <maximumf>, %107, %cst_57 [1] : vector<8x8xf32> to vector<8xf32>
    %109 = vector.shape_cast %108 : vector<8xf32> to vector<8x1xf32>
    %110 = vector.broadcast %109 : vector<8x1xf32> to vector<8x8xf32>
    %111 = arith.subf %107, %110 : vector<8x8xf32>
    %112 = math.exp %111 : vector<8x8xf32>
    %cst_58 = arith.constant dense<0.000000e+00> : vector<8xf32>
    %113 = vector.multi_reduction <add>, %112, %cst_58 [1] : vector<8x8xf32> to vector<8xf32>
    %114 = vector.shape_cast %113 : vector<8xf32> to vector<8x1xf32>
    %115 = tpu.reciprocal %114 {approx = true} : vector<8x1xf32> -> vector<8x1xf32>
    %116 = vector.broadcast %115 : vector<8x1xf32> to vector<8x8xf32>
    %117 = arith.mulf %112, %116 : vector<8x8xf32>
    %cst_59 = arith.constant dense<0.000000e+00> : vector<8x8xf32>
    %118 = tpu.matmul %117, %106, %cst_59 {dimension_numbers = #tpu.dot_dimension_numbers<[1], [0], [0], [1], [0, 0, 1, 1], [], []>} : vector<8x8xf32>, vector<8x8xf32>, vector<8x8xf32> -> vector<8x8xf32>
    %119 = vector.extract_strided_slice %10 {offsets = [24, 0], sizes = [8, 32], strides = [1, 1]} : vector<32x32xf32> to vector<8x32xf32>
    %cst_60 = arith.constant dense<0.000000e+00> : vector<8x32xf32>
    %120 = tpu.matmul %118, %119, %cst_60 {dimension_numbers = #tpu.dot_dimension_numbers<[1], [0], [0], [1], [0, 0, 1, 1], [], []>} : vector<8x8xf32>, vector<8x32xf32>, vector<8x32xf32> -> vector<8x32xf32>
    %121 = arith.addf %101, %120 : vector<8x32xf32>
    %122 = arith.addf %5, %121 : vector<8x32xf32>
    %123 = vector.broadcast %11 : vector<1x32xf32> to vector<8x32xf32>
    %124 = arith.addf %122, %123 : vector<8x32xf32>
    %cst_61 = arith.constant dense<0.000000e+00> : vector<8xf32>
    %125 = vector.multi_reduction <add>, %124, %cst_61 [1] : vector<8x32xf32> to vector<8xf32>
    %126 = vector.shape_cast %125 : vector<8xf32> to vector<8x1xf32>
    %cst_62 = arith.constant 3.200000e+01 : f32
    %127 = vector.broadcast %cst_62 : f32 to vector<8x1xf32>
    %128 = arith.divf %126, %127 : vector<8x1xf32>
    %129 = vector.broadcast %128 : vector<8x1xf32> to vector<8x32xf32>
    %130 = arith.subf %124, %129 : vector<8x32xf32>
    %131 = arith.mulf %130, %130 : vector<8x32xf32>
    %cst_63 = arith.constant dense<0.000000e+00> : vector<8xf32>
    %132 = vector.multi_reduction <add>, %131, %cst_63 [1] : vector<8x32xf32> to vector<8xf32>
    %133 = vector.shape_cast %132 : vector<8xf32> to vector<8x1xf32>
    %cst_64 = arith.constant 3.200000e+01 : f32
    %134 = vector.broadcast %cst_64 : f32 to vector<8x1xf32>
    %135 = arith.divf %133, %134 : vector<8x1xf32>
    %cst_65 = arith.constant 9.99999974E-6 : f32
    %136 = vector.broadcast %cst_65 : f32 to vector<8x1xf32>
    %137 = arith.addf %135, %136 : vector<8x1xf32>
    %138 = math.rsqrt %137 : vector<8x1xf32>
    %139 = vector.broadcast %138 : vector<8x1xf32> to vector<8x32xf32>
    %140 = arith.mulf %130, %139 : vector<8x32xf32>
    %141 = vector.broadcast %12 : vector<1x32xf32> to vector<8x32xf32>
    %142 = arith.mulf %140, %141 : vector<8x32xf32>
    %143 = vector.broadcast %13 : vector<1x32xf32> to vector<8x32xf32>
    %144 = arith.addf %142, %143 : vector<8x32xf32>
    %cst_66 = arith.constant dense<0.000000e+00> : vector<8x128xf32>
    %145 = tpu.matmul %144, %14, %cst_66 {dimension_numbers = #tpu.dot_dimension_numbers<[1], [0], [0], [1], [0, 0, 1, 1], [], []>} : vector<8x32xf32>, vector<32x128xf32>, vector<8x128xf32> -> vector<8x128xf32>
    %146 = vector.broadcast %15 : vector<1x128xf32> to vector<8x128xf32>
    %147 = arith.addf %145, %146 : vector<8x128xf32>
    %cst_67 = arith.constant 5.000000e-01 : f32
    %148 = vector.broadcast %cst_67 : f32 to vector<8x128xf32>
    %149 = arith.mulf %148, %147 : vector<8x128xf32>
    %cst_68 = arith.constant 0.707106769 : f32
    %150 = vector.broadcast %cst_68 : f32 to vector<8x128xf32>
    %151 = arith.mulf %147, %150 : vector<8x128xf32>
    %cst_69 = arith.constant 0.000000e+00 : f32
    %152 = vector.broadcast %cst_69 : f32 to vector<8x128xf32>
    %153 = arith.cmpf oge, %151, %152 : vector<8x128xf32>
    %cst_70 = arith.constant 1.000000e+00 : f32
    %cst_71 = arith.constant -1.000000e+00 : f32
    %154 = vector.broadcast %cst_70 : f32 to vector<8x128xf32>
    %155 = vector.broadcast %cst_71 : f32 to vector<8x128xf32>
    %156 = arith.select %153, %154, %155 : vector<8x128xi1>, vector<8x128xf32>
    %157 = math.absf %151 : vector<8x128xf32>
    %cst_72 = arith.constant 0.327591091 : f32
    %158 = vector.broadcast %cst_72 : f32 to vector<8x128xf32>
    %159 = arith.mulf %158, %157 : vector<8x128xf32>
    %cst_73 = arith.constant 1.000000e+00 : f32
    %160 = vector.broadcast %cst_73 : f32 to vector<8x128xf32>
    %161 = arith.addf %160, %159 : vector<8x128xf32>
    %cst_74 = arith.constant 1.000000e+00 : f32
    %162 = vector.broadcast %cst_74 : f32 to vector<8x128xf32>
    %163 = arith.divf %162, %161 : vector<8x128xf32>
    %cst_75 = arith.constant 1.06140542 : f32
    %164 = vector.broadcast %cst_75 : f32 to vector<8x128xf32>
    %165 = arith.mulf %164, %163 : vector<8x128xf32>
    %cst_76 = arith.constant -1.45315206 : f32
    %166 = vector.broadcast %cst_76 : f32 to vector<8x128xf32>
    %167 = arith.addf %165, %166 : vector<8x128xf32>
    %168 = arith.mulf %167, %163 : vector<8x128xf32>
    %cst_77 = arith.constant 1.42141378 : f32
    %169 = vector.broadcast %cst_77 : f32 to vector<8x128xf32>
    %170 = arith.addf %168, %169 : vector<8x128xf32>
    %171 = arith.mulf %170, %163 : vector<8x128xf32>
    %cst_78 = arith.constant -0.284496725 : f32
    %172 = vector.broadcast %cst_78 : f32 to vector<8x128xf32>
    %173 = arith.addf %171, %172 : vector<8x128xf32>
    %174 = arith.mulf %173, %163 : vector<8x128xf32>
    %cst_79 = arith.constant 0.254829586 : f32
    %175 = vector.broadcast %cst_79 : f32 to vector<8x128xf32>
    %176 = arith.addf %174, %175 : vector<8x128xf32>
    %177 = arith.mulf %176, %163 : vector<8x128xf32>
    %cst_80 = arith.constant 0.000000e+00 : f32
    %178 = vector.broadcast %cst_80 : f32 to vector<8x128xf32>
    %179 = arith.subf %178, %157 : vector<8x128xf32>
    %180 = arith.mulf %179, %157 : vector<8x128xf32>
    %181 = math.exp %180 : vector<8x128xf32>
    %182 = arith.mulf %177, %181 : vector<8x128xf32>
    %cst_81 = arith.constant 1.000000e+00 : f32
    %183 = vector.broadcast %cst_81 : f32 to vector<8x128xf32>
    %184 = arith.subf %183, %182 : vector<8x128xf32>
    %185 = arith.mulf %156, %184 : vector<8x128xf32>
    %cst_82 = arith.constant 1.000000e+00 : f32
    %186 = vector.broadcast %cst_82 : f32 to vector<8x128xf32>
    %187 = arith.addf %186, %185 : vector<8x128xf32>
    %188 = arith.mulf %149, %187 : vector<8x128xf32>
    %cst_83 = arith.constant dense<0.000000e+00> : vector<8x32xf32>
    %189 = tpu.matmul %188, %16, %cst_83 {dimension_numbers = #tpu.dot_dimension_numbers<[1], [0], [0], [1], [0, 0, 1, 1], [], []>} : vector<8x128xf32>, vector<128x32xf32>, vector<8x32xf32> -> vector<8x32xf32>
    %190 = arith.addf %124, %189 : vector<8x32xf32>
    %191 = vector.broadcast %17 : vector<1x32xf32> to vector<8x32xf32>
    %192 = arith.addf %190, %191 : vector<8x32xf32>
    %c0_84 = arith.constant 0 : index
    %c0_85 = arith.constant 0 : index
    %193 = vector.load %arg16[%c0_84, %c0_85] : memref<1x32xf32, #tpu.memory_space<vmem>>, vector<1x32xf32>
    %c0_86 = arith.constant 0 : index
    %c0_87 = arith.constant 0 : index
    %194 = vector.load %arg17[%c0_86, %c0_87] : memref<1x32xf32, #tpu.memory_space<vmem>>, vector<1x32xf32>
    %c0_88 = arith.constant 0 : index
    %c0_89 = arith.constant 0 : index
    %195 = vector.load %arg18[%c0_88, %c0_89] : memref<32x96xf32, #tpu.memory_space<vmem>>, vector<32x96xf32>
    %c0_90 = arith.constant 0 : index
    %c0_91 = arith.constant 0 : index
    %196 = vector.load %arg19[%c0_90, %c0_91] : memref<1x96xf32, #tpu.memory_space<vmem>>, vector<1x96xf32>
    %c0_92 = arith.constant 0 : index
    %c0_93 = arith.constant 0 : index
    %197 = vector.load %arg20[%c0_92, %c0_93] : memref<32x32xf32, #tpu.memory_space<vmem>>, vector<32x32xf32>
    %c0_94 = arith.constant 0 : index
    %c0_95 = arith.constant 0 : index
    %198 = vector.load %arg21[%c0_94, %c0_95] : memref<1x32xf32, #tpu.memory_space<vmem>>, vector<1x32xf32>
    %c0_96 = arith.constant 0 : index
    %c0_97 = arith.constant 0 : index
    %199 = vector.load %arg22[%c0_96, %c0_97] : memref<1x32xf32, #tpu.memory_space<vmem>>, vector<1x32xf32>
    %c0_98 = arith.constant 0 : index
    %c0_99 = arith.constant 0 : index
    %200 = vector.load %arg23[%c0_98, %c0_99] : memref<1x32xf32, #tpu.memory_space<vmem>>, vector<1x32xf32>
    %c0_100 = arith.constant 0 : index
    %c0_101 = arith.constant 0 : index
    %201 = vector.load %arg24[%c0_100, %c0_101] : memref<32x128xf32, #tpu.memory_space<vmem>>, vector<32x128xf32>
    %c0_102 = arith.constant 0 : index
    %c0_103 = arith.constant 0 : index
    %202 = vector.load %arg25[%c0_102, %c0_103] : memref<1x128xf32, #tpu.memory_space<vmem>>, vector<1x128xf32>
    %c0_104 = arith.constant 0 : index
    %c0_105 = arith.constant 0 : index
    %203 = vector.load %arg26[%c0_104, %c0_105] : memref<128x32xf32, #tpu.memory_space<vmem>>, vector<128x32xf32>
    %c0_106 = arith.constant 0 : index
    %c0_107 = arith.constant 0 : index
    %204 = vector.load %arg27[%c0_106, %c0_107] : memref<1x32xf32, #tpu.memory_space<vmem>>, vector<1x32xf32>
    %cst_108 = arith.constant dense<0.000000e+00> : vector<8xf32>
    %205 = vector.multi_reduction <add>, %192, %cst_108 [1] : vector<8x32xf32> to vector<8xf32>
    %206 = vector.shape_cast %205 : vector<8xf32> to vector<8x1xf32>
    %cst_109 = arith.constant 3.200000e+01 : f32
    %207 = vector.broadcast %cst_109 : f32 to vector<8x1xf32>
    %208 = arith.divf %206, %207 : vector<8x1xf32>
    %209 = vector.broadcast %208 : vector<8x1xf32> to vector<8x32xf32>
    %210 = arith.subf %192, %209 : vector<8x32xf32>
    %211 = arith.mulf %210, %210 : vector<8x32xf32>
    %cst_110 = arith.constant dense<0.000000e+00> : vector<8xf32>
    %212 = vector.multi_reduction <add>, %211, %cst_110 [1] : vector<8x32xf32> to vector<8xf32>
    %213 = vector.shape_cast %212 : vector<8xf32> to vector<8x1xf32>
    %cst_111 = arith.constant 3.200000e+01 : f32
    %214 = vector.broadcast %cst_111 : f32 to vector<8x1xf32>
    %215 = arith.divf %213, %214 : vector<8x1xf32>
    %cst_112 = arith.constant 9.99999974E-6 : f32
    %216 = vector.broadcast %cst_112 : f32 to vector<8x1xf32>
    %217 = arith.addf %215, %216 : vector<8x1xf32>
    %218 = math.rsqrt %217 : vector<8x1xf32>
    %219 = vector.broadcast %218 : vector<8x1xf32> to vector<8x32xf32>
    %220 = arith.mulf %210, %219 : vector<8x32xf32>
    %221 = vector.broadcast %193 : vector<1x32xf32> to vector<8x32xf32>
    %222 = arith.mulf %220, %221 : vector<8x32xf32>
    %223 = vector.broadcast %194 : vector<1x32xf32> to vector<8x32xf32>
    %224 = arith.addf %222, %223 : vector<8x32xf32>
    %cst_113 = arith.constant dense<0.000000e+00> : vector<8x96xf32>
    %225 = tpu.matmul %224, %195, %cst_113 {dimension_numbers = #tpu.dot_dimension_numbers<[1], [0], [0], [1], [0, 0, 1, 1], [], []>} : vector<8x32xf32>, vector<32x96xf32>, vector<8x96xf32> -> vector<8x96xf32>
    %226 = vector.broadcast %196 : vector<1x96xf32> to vector<8x96xf32>
    %227 = arith.addf %225, %226 : vector<8x96xf32>
    %cst_114 = arith.constant 0.000000e+00 : f32
    %228 = vector.broadcast %cst_114 : f32 to vector<8x32xf32>
    %229 = vector.extract_strided_slice %227 {offsets = [0, 0], sizes = [8, 8], strides = [1, 1]} : vector<8x96xf32> to vector<8x8xf32>
    %cst_115 = arith.constant 0.353553385 : f32
    %230 = vector.broadcast %cst_115 : f32 to vector<8x8xf32>
    %231 = arith.mulf %229, %230 : vector<8x8xf32>
    %232 = vector.extract_strided_slice %227 {offsets = [0, 32], sizes = [8, 8], strides = [1, 1]} : vector<8x96xf32> to vector<8x8xf32>
    %233 = vector.extract_strided_slice %227 {offsets = [0, 64], sizes = [8, 8], strides = [1, 1]} : vector<8x96xf32> to vector<8x8xf32>
    %cst_116 = arith.constant dense<0.000000e+00> : vector<8x8xf32>
    %234 = tpu.matmul %231, %232, %cst_116 {dimension_numbers = #tpu.dot_dimension_numbers<[1], [1], [0], [0], [0, 0, 1, 0], [], []>} : vector<8x8xf32>, vector<8x8xf32>, vector<8x8xf32> -> vector<8x8xf32>
    %cst_117 = arith.constant dense<0xFF800000> : vector<8xf32>
    %235 = vector.multi_reduction <maximumf>, %234, %cst_117 [1] : vector<8x8xf32> to vector<8xf32>
    %236 = vector.shape_cast %235 : vector<8xf32> to vector<8x1xf32>
    %237 = vector.broadcast %236 : vector<8x1xf32> to vector<8x8xf32>
    %238 = arith.subf %234, %237 : vector<8x8xf32>
    %239 = math.exp %238 : vector<8x8xf32>
    %cst_118 = arith.constant dense<0.000000e+00> : vector<8xf32>
    %240 = vector.multi_reduction <add>, %239, %cst_118 [1] : vector<8x8xf32> to vector<8xf32>
    %241 = vector.shape_cast %240 : vector<8xf32> to vector<8x1xf32>
    %242 = tpu.reciprocal %241 {approx = true} : vector<8x1xf32> -> vector<8x1xf32>
    %243 = vector.broadcast %242 : vector<8x1xf32> to vector<8x8xf32>
    %244 = arith.mulf %239, %243 : vector<8x8xf32>
    %cst_119 = arith.constant dense<0.000000e+00> : vector<8x8xf32>
    %245 = tpu.matmul %244, %233, %cst_119 {dimension_numbers = #tpu.dot_dimension_numbers<[1], [0], [0], [1], [0, 0, 1, 1], [], []>} : vector<8x8xf32>, vector<8x8xf32>, vector<8x8xf32> -> vector<8x8xf32>
    %246 = vector.extract_strided_slice %197 {offsets = [0, 0], sizes = [8, 32], strides = [1, 1]} : vector<32x32xf32> to vector<8x32xf32>
    %cst_120 = arith.constant dense<0.000000e+00> : vector<8x32xf32>
    %247 = tpu.matmul %245, %246, %cst_120 {dimension_numbers = #tpu.dot_dimension_numbers<[1], [0], [0], [1], [0, 0, 1, 1], [], []>} : vector<8x8xf32>, vector<8x32xf32>, vector<8x32xf32> -> vector<8x32xf32>
    %248 = arith.addf %228, %247 : vector<8x32xf32>
    %249 = vector.extract_strided_slice %227 {offsets = [0, 8], sizes = [8, 8], strides = [1, 1]} : vector<8x96xf32> to vector<8x8xf32>
    %cst_121 = arith.constant 0.353553385 : f32
    %250 = vector.broadcast %cst_121 : f32 to vector<8x8xf32>
    %251 = arith.mulf %249, %250 : vector<8x8xf32>
    %252 = vector.extract_strided_slice %227 {offsets = [0, 40], sizes = [8, 8], strides = [1, 1]} : vector<8x96xf32> to vector<8x8xf32>
    %253 = vector.extract_strided_slice %227 {offsets = [0, 72], sizes = [8, 8], strides = [1, 1]} : vector<8x96xf32> to vector<8x8xf32>
    %cst_122 = arith.constant dense<0.000000e+00> : vector<8x8xf32>
    %254 = tpu.matmul %251, %252, %cst_122 {dimension_numbers = #tpu.dot_dimension_numbers<[1], [1], [0], [0], [0, 0, 1, 0], [], []>} : vector<8x8xf32>, vector<8x8xf32>, vector<8x8xf32> -> vector<8x8xf32>
    %cst_123 = arith.constant dense<0xFF800000> : vector<8xf32>
    %255 = vector.multi_reduction <maximumf>, %254, %cst_123 [1] : vector<8x8xf32> to vector<8xf32>
    %256 = vector.shape_cast %255 : vector<8xf32> to vector<8x1xf32>
    %257 = vector.broadcast %256 : vector<8x1xf32> to vector<8x8xf32>
    %258 = arith.subf %254, %257 : vector<8x8xf32>
    %259 = math.exp %258 : vector<8x8xf32>
    %cst_124 = arith.constant dense<0.000000e+00> : vector<8xf32>
    %260 = vector.multi_reduction <add>, %259, %cst_124 [1] : vector<8x8xf32> to vector<8xf32>
    %261 = vector.shape_cast %260 : vector<8xf32> to vector<8x1xf32>
    %262 = tpu.reciprocal %261 {approx = true} : vector<8x1xf32> -> vector<8x1xf32>
    %263 = vector.broadcast %262 : vector<8x1xf32> to vector<8x8xf32>
    %264 = arith.mulf %259, %263 : vector<8x8xf32>
    %cst_125 = arith.constant dense<0.000000e+00> : vector<8x8xf32>
    %265 = tpu.matmul %264, %253, %cst_125 {dimension_numbers = #tpu.dot_dimension_numbers<[1], [0], [0], [1], [0, 0, 1, 1], [], []>} : vector<8x8xf32>, vector<8x8xf32>, vector<8x8xf32> -> vector<8x8xf32>
    %266 = vector.extract_strided_slice %197 {offsets = [8, 0], sizes = [8, 32], strides = [1, 1]} : vector<32x32xf32> to vector<8x32xf32>
    %cst_126 = arith.constant dense<0.000000e+00> : vector<8x32xf32>
    %267 = tpu.matmul %265, %266, %cst_126 {dimension_numbers = #tpu.dot_dimension_numbers<[1], [0], [0], [1], [0, 0, 1, 1], [], []>} : vector<8x8xf32>, vector<8x32xf32>, vector<8x32xf32> -> vector<8x32xf32>
    %268 = arith.addf %248, %267 : vector<8x32xf32>
    %269 = vector.extract_strided_slice %227 {offsets = [0, 16], sizes = [8, 8], strides = [1, 1]} : vector<8x96xf32> to vector<8x8xf32>
    %cst_127 = arith.constant 0.353553385 : f32
    %270 = vector.broadcast %cst_127 : f32 to vector<8x8xf32>
    %271 = arith.mulf %269, %270 : vector<8x8xf32>
    %272 = vector.extract_strided_slice %227 {offsets = [0, 48], sizes = [8, 8], strides = [1, 1]} : vector<8x96xf32> to vector<8x8xf32>
    %273 = vector.extract_strided_slice %227 {offsets = [0, 80], sizes = [8, 8], strides = [1, 1]} : vector<8x96xf32> to vector<8x8xf32>
    %cst_128 = arith.constant dense<0.000000e+00> : vector<8x8xf32>
    %274 = tpu.matmul %271, %272, %cst_128 {dimension_numbers = #tpu.dot_dimension_numbers<[1], [1], [0], [0], [0, 0, 1, 0], [], []>} : vector<8x8xf32>, vector<8x8xf32>, vector<8x8xf32> -> vector<8x8xf32>
    %cst_129 = arith.constant dense<0xFF800000> : vector<8xf32>
    %275 = vector.multi_reduction <maximumf>, %274, %cst_129 [1] : vector<8x8xf32> to vector<8xf32>
    %276 = vector.shape_cast %275 : vector<8xf32> to vector<8x1xf32>
    %277 = vector.broadcast %276 : vector<8x1xf32> to vector<8x8xf32>
    %278 = arith.subf %274, %277 : vector<8x8xf32>
    %279 = math.exp %278 : vector<8x8xf32>
    %cst_130 = arith.constant dense<0.000000e+00> : vector<8xf32>
    %280 = vector.multi_reduction <add>, %279, %cst_130 [1] : vector<8x8xf32> to vector<8xf32>
    %281 = vector.shape_cast %280 : vector<8xf32> to vector<8x1xf32>
    %282 = tpu.reciprocal %281 {approx = true} : vector<8x1xf32> -> vector<8x1xf32>
    %283 = vector.broadcast %282 : vector<8x1xf32> to vector<8x8xf32>
    %284 = arith.mulf %279, %283 : vector<8x8xf32>
    %cst_131 = arith.constant dense<0.000000e+00> : vector<8x8xf32>
    %285 = tpu.matmul %284, %273, %cst_131 {dimension_numbers = #tpu.dot_dimension_numbers<[1], [0], [0], [1], [0, 0, 1, 1], [], []>} : vector<8x8xf32>, vector<8x8xf32>, vector<8x8xf32> -> vector<8x8xf32>
    %286 = vector.extract_strided_slice %197 {offsets = [16, 0], sizes = [8, 32], strides = [1, 1]} : vector<32x32xf32> to vector<8x32xf32>
    %cst_132 = arith.constant dense<0.000000e+00> : vector<8x32xf32>
    %287 = tpu.matmul %285, %286, %cst_132 {dimension_numbers = #tpu.dot_dimension_numbers<[1], [0], [0], [1], [0, 0, 1, 1], [], []>} : vector<8x8xf32>, vector<8x32xf32>, vector<8x32xf32> -> vector<8x32xf32>
    %288 = arith.addf %268, %287 : vector<8x32xf32>
    %289 = vector.extract_strided_slice %227 {offsets = [0, 24], sizes = [8, 8], strides = [1, 1]} : vector<8x96xf32> to vector<8x8xf32>
    %cst_133 = arith.constant 0.353553385 : f32
    %290 = vector.broadcast %cst_133 : f32 to vector<8x8xf32>
    %291 = arith.mulf %289, %290 : vector<8x8xf32>
    %292 = vector.extract_strided_slice %227 {offsets = [0, 56], sizes = [8, 8], strides = [1, 1]} : vector<8x96xf32> to vector<8x8xf32>
    %293 = vector.extract_strided_slice %227 {offsets = [0, 88], sizes = [8, 8], strides = [1, 1]} : vector<8x96xf32> to vector<8x8xf32>
    %cst_134 = arith.constant dense<0.000000e+00> : vector<8x8xf32>
    %294 = tpu.matmul %291, %292, %cst_134 {dimension_numbers = #tpu.dot_dimension_numbers<[1], [1], [0], [0], [0, 0, 1, 0], [], []>} : vector<8x8xf32>, vector<8x8xf32>, vector<8x8xf32> -> vector<8x8xf32>
    %cst_135 = arith.constant dense<0xFF800000> : vector<8xf32>
    %295 = vector.multi_reduction <maximumf>, %294, %cst_135 [1] : vector<8x8xf32> to vector<8xf32>
    %296 = vector.shape_cast %295 : vector<8xf32> to vector<8x1xf32>
    %297 = vector.broadcast %296 : vector<8x1xf32> to vector<8x8xf32>
    %298 = arith.subf %294, %297 : vector<8x8xf32>
    %299 = math.exp %298 : vector<8x8xf32>
    %cst_136 = arith.constant dense<0.000000e+00> : vector<8xf32>
    %300 = vector.multi_reduction <add>, %299, %cst_136 [1] : vector<8x8xf32> to vector<8xf32>
    %301 = vector.shape_cast %300 : vector<8xf32> to vector<8x1xf32>
    %302 = tpu.reciprocal %301 {approx = true} : vector<8x1xf32> -> vector<8x1xf32>
    %303 = vector.broadcast %302 : vector<8x1xf32> to vector<8x8xf32>
    %304 = arith.mulf %299, %303 : vector<8x8xf32>
    %cst_137 = arith.constant dense<0.000000e+00> : vector<8x8xf32>
    %305 = tpu.matmul %304, %293, %cst_137 {dimension_numbers = #tpu.dot_dimension_numbers<[1], [0], [0], [1], [0, 0, 1, 1], [], []>} : vector<8x8xf32>, vector<8x8xf32>, vector<8x8xf32> -> vector<8x8xf32>
    %306 = vector.extract_strided_slice %197 {offsets = [24, 0], sizes = [8, 32], strides = [1, 1]} : vector<32x32xf32> to vector<8x32xf32>
    %cst_138 = arith.constant dense<0.000000e+00> : vector<8x32xf32>
    %307 = tpu.matmul %305, %306, %cst_138 {dimension_numbers = #tpu.dot_dimension_numbers<[1], [0], [0], [1], [0, 0, 1, 1], [], []>} : vector<8x8xf32>, vector<8x32xf32>, vector<8x32xf32> -> vector<8x32xf32>
    %308 = arith.addf %288, %307 : vector<8x32xf32>
    %309 = arith.addf %192, %308 : vector<8x32xf32>
    %310 = vector.broadcast %198 : vector<1x32xf32> to vector<8x32xf32>
    %311 = arith.addf %309, %310 : vector<8x32xf32>
    %cst_139 = arith.constant dense<0.000000e+00> : vector<8xf32>
    %312 = vector.multi_reduction <add>, %311, %cst_139 [1] : vector<8x32xf32> to vector<8xf32>
    %313 = vector.shape_cast %312 : vector<8xf32> to vector<8x1xf32>
    %cst_140 = arith.constant 3.200000e+01 : f32
    %314 = vector.broadcast %cst_140 : f32 to vector<8x1xf32>
    %315 = arith.divf %313, %314 : vector<8x1xf32>
    %316 = vector.broadcast %315 : vector<8x1xf32> to vector<8x32xf32>
    %317 = arith.subf %311, %316 : vector<8x32xf32>
    %318 = arith.mulf %317, %317 : vector<8x32xf32>
    %cst_141 = arith.constant dense<0.000000e+00> : vector<8xf32>
    %319 = vector.multi_reduction <add>, %318, %cst_141 [1] : vector<8x32xf32> to vector<8xf32>
    %320 = vector.shape_cast %319 : vector<8xf32> to vector<8x1xf32>
    %cst_142 = arith.constant 3.200000e+01 : f32
    %321 = vector.broadcast %cst_142 : f32 to vector<8x1xf32>
    %322 = arith.divf %320, %321 : vector<8x1xf32>
    %cst_143 = arith.constant 9.99999974E-6 : f32
    %323 = vector.broadcast %cst_143 : f32 to vector<8x1xf32>
    %324 = arith.addf %322, %323 : vector<8x1xf32>
    %325 = math.rsqrt %324 : vector<8x1xf32>
    %326 = vector.broadcast %325 : vector<8x1xf32> to vector<8x32xf32>
    %327 = arith.mulf %317, %326 : vector<8x32xf32>
    %328 = vector.broadcast %199 : vector<1x32xf32> to vector<8x32xf32>
    %329 = arith.mulf %327, %328 : vector<8x32xf32>
    %330 = vector.broadcast %200 : vector<1x32xf32> to vector<8x32xf32>
    %331 = arith.addf %329, %330 : vector<8x32xf32>
    %cst_144 = arith.constant dense<0.000000e+00> : vector<8x128xf32>
    %332 = tpu.matmul %331, %201, %cst_144 {dimension_numbers = #tpu.dot_dimension_numbers<[1], [0], [0], [1], [0, 0, 1, 1], [], []>} : vector<8x32xf32>, vector<32x128xf32>, vector<8x128xf32> -> vector<8x128xf32>
    %333 = vector.broadcast %202 : vector<1x128xf32> to vector<8x128xf32>
    %334 = arith.addf %332, %333 : vector<8x128xf32>
    %cst_145 = arith.constant 5.000000e-01 : f32
    %335 = vector.broadcast %cst_145 : f32 to vector<8x128xf32>
    %336 = arith.mulf %335, %334 : vector<8x128xf32>
    %cst_146 = arith.constant 0.707106769 : f32
    %337 = vector.broadcast %cst_146 : f32 to vector<8x128xf32>
    %338 = arith.mulf %334, %337 : vector<8x128xf32>
    %cst_147 = arith.constant 0.000000e+00 : f32
    %339 = vector.broadcast %cst_147 : f32 to vector<8x128xf32>
    %340 = arith.cmpf oge, %338, %339 : vector<8x128xf32>
    %cst_148 = arith.constant 1.000000e+00 : f32
    %cst_149 = arith.constant -1.000000e+00 : f32
    %341 = vector.broadcast %cst_148 : f32 to vector<8x128xf32>
    %342 = vector.broadcast %cst_149 : f32 to vector<8x128xf32>
    %343 = arith.select %340, %341, %342 : vector<8x128xi1>, vector<8x128xf32>
    %344 = math.absf %338 : vector<8x128xf32>
    %cst_150 = arith.constant 0.327591091 : f32
    %345 = vector.broadcast %cst_150 : f32 to vector<8x128xf32>
    %346 = arith.mulf %345, %344 : vector<8x128xf32>
    %cst_151 = arith.constant 1.000000e+00 : f32
    %347 = vector.broadcast %cst_151 : f32 to vector<8x128xf32>
    %348 = arith.addf %347, %346 : vector<8x128xf32>
    %cst_152 = arith.constant 1.000000e+00 : f32
    %349 = vector.broadcast %cst_152 : f32 to vector<8x128xf32>
    %350 = arith.divf %349, %348 : vector<8x128xf32>
    %cst_153 = arith.constant 1.06140542 : f32
    %351 = vector.broadcast %cst_153 : f32 to vector<8x128xf32>
    %352 = arith.mulf %351, %350 : vector<8x128xf32>
    %cst_154 = arith.constant -1.45315206 : f32
    %353 = vector.broadcast %cst_154 : f32 to vector<8x128xf32>
    %354 = arith.addf %352, %353 : vector<8x128xf32>
    %355 = arith.mulf %354, %350 : vector<8x128xf32>
    %cst_155 = arith.constant 1.42141378 : f32
    %356 = vector.broadcast %cst_155 : f32 to vector<8x128xf32>
    %357 = arith.addf %355, %356 : vector<8x128xf32>
    %358 = arith.mulf %357, %350 : vector<8x128xf32>
    %cst_156 = arith.constant -0.284496725 : f32
    %359 = vector.broadcast %cst_156 : f32 to vector<8x128xf32>
    %360 = arith.addf %358, %359 : vector<8x128xf32>
    %361 = arith.mulf %360, %350 : vector<8x128xf32>
    %cst_157 = arith.constant 0.254829586 : f32
    %362 = vector.broadcast %cst_157 : f32 to vector<8x128xf32>
    %363 = arith.addf %361, %362 : vector<8x128xf32>
    %364 = arith.mulf %363, %350 : vector<8x128xf32>
    %cst_158 = arith.constant 0.000000e+00 : f32
    %365 = vector.broadcast %cst_158 : f32 to vector<8x128xf32>
    %366 = arith.subf %365, %344 : vector<8x128xf32>
    %367 = arith.mulf %366, %344 : vector<8x128xf32>
    %368 = math.exp %367 : vector<8x128xf32>
    %369 = arith.mulf %364, %368 : vector<8x128xf32>
    %cst_159 = arith.constant 1.000000e+00 : f32
    %370 = vector.broadcast %cst_159 : f32 to vector<8x128xf32>
    %371 = arith.subf %370, %369 : vector<8x128xf32>
    %372 = arith.mulf %343, %371 : vector<8x128xf32>
    %cst_160 = arith.constant 1.000000e+00 : f32
    %373 = vector.broadcast %cst_160 : f32 to vector<8x128xf32>
    %374 = arith.addf %373, %372 : vector<8x128xf32>
    %375 = arith.mulf %336, %374 : vector<8x128xf32>
    %cst_161 = arith.constant dense<0.000000e+00> : vector<8x32xf32>
    %376 = tpu.matmul %375, %203, %cst_161 {dimension_numbers = #tpu.dot_dimension_numbers<[1], [0], [0], [1], [0, 0, 1, 1], [], []>} : vector<8x128xf32>, vector<128x32xf32>, vector<8x32xf32> -> vector<8x32xf32>
    %377 = arith.addf %311, %376 : vector<8x32xf32>
    %378 = vector.broadcast %204 : vector<1x32xf32> to vector<8x32xf32>
    %379 = arith.addf %377, %378 : vector<8x32xf32>
    %c0_162 = arith.constant 0 : index
    %c0_163 = arith.constant 0 : index
    %380 = vector.load %arg28[%c0_162, %c0_163] : memref<1x32xf32, #tpu.memory_space<vmem>>, vector<1x32xf32>
    %c0_164 = arith.constant 0 : index
    %c0_165 = arith.constant 0 : index
    %381 = vector.load %arg29[%c0_164, %c0_165] : memref<1x32xf32, #tpu.memory_space<vmem>>, vector<1x32xf32>
    %cst_166 = arith.constant dense<0.000000e+00> : vector<8xf32>
    %382 = vector.multi_reduction <add>, %379, %cst_166 [1] : vector<8x32xf32> to vector<8xf32>
    %383 = vector.shape_cast %382 : vector<8xf32> to vector<8x1xf32>
    %cst_167 = arith.constant 3.200000e+01 : f32
    %384 = vector.broadcast %cst_167 : f32 to vector<8x1xf32>
    %385 = arith.divf %383, %384 : vector<8x1xf32>
    %386 = vector.broadcast %385 : vector<8x1xf32> to vector<8x32xf32>
    %387 = arith.subf %379, %386 : vector<8x32xf32>
    %388 = arith.mulf %387, %387 : vector<8x32xf32>
    %cst_168 = arith.constant dense<0.000000e+00> : vector<8xf32>
    %389 = vector.multi_reduction <add>, %388, %cst_168 [1] : vector<8x32xf32> to vector<8xf32>
    %390 = vector.shape_cast %389 : vector<8xf32> to vector<8x1xf32>
    %cst_169 = arith.constant 3.200000e+01 : f32
    %391 = vector.broadcast %cst_169 : f32 to vector<8x1xf32>
    %392 = arith.divf %390, %391 : vector<8x1xf32>
    %cst_170 = arith.constant 9.99999974E-6 : f32
    %393 = vector.broadcast %cst_170 : f32 to vector<8x1xf32>
    %394 = arith.addf %392, %393 : vector<8x1xf32>
    %395 = math.rsqrt %394 : vector<8x1xf32>
    %396 = vector.broadcast %395 : vector<8x1xf32> to vector<8x32xf32>
    %397 = arith.mulf %387, %396 : vector<8x32xf32>
    %398 = vector.broadcast %380 : vector<1x32xf32> to vector<8x32xf32>
    %399 = arith.mulf %397, %398 : vector<8x32xf32>
    %400 = vector.broadcast %381 : vector<1x32xf32> to vector<8x32xf32>
    %401 = arith.addf %399, %400 : vector<8x32xf32>
    %402 = vector.extract_strided_slice %401 {offsets = [7, 0], sizes = [1, 32], strides = [1, 1]} : vector<8x32xf32> to vector<1x32xf32>
    %c0_171 = arith.constant 0 : index
    %c0_172 = arith.constant 0 : index
    %403 = vector.load %arg30[%c0_171, %c0_172] : memref<32x64xf32, #tpu.memory_space<vmem>>, vector<32x64xf32>
    %cst_173 = arith.constant dense<0.000000e+00> : vector<1x64xf32>
    %404 = tpu.matmul %402, %403, %cst_173 {dimension_numbers = #tpu.dot_dimension_numbers<[1], [0], [0], [1], [0, 0, 1, 1], [], []>} : vector<1x32xf32>, vector<32x64xf32>, vector<1x64xf32> -> vector<1x64xf32>
    %c0_174 = arith.constant 0 : index
    %c0_175 = arith.constant 0 : index
    %405 = vector.load %arg31[%c0_174, %c0_175] : memref<1x64xf32, #tpu.memory_space<vmem>>, vector<1x64xf32>
    %406 = arith.addf %404, %405 : vector<1x64xf32>
    %c0_176 = arith.constant 0 : index
    %c0_177 = arith.constant 0 : index
    %c0_178 = arith.constant 0 : index
    %407 = vector.load %arg32[%c0_176, %c0_177, %c0_178] : memref<1x1x64xf32, #tpu.memory_space<vmem>>, vector<1x1x64xf32>
    %408 = vector.shape_cast %407 : vector<1x1x64xf32> to vector<1x64xf32>
    %409 = vector.shape_cast %406 : vector<1x64xf32> to vector<1x1x64xf32>
    tpu.vector_store %arg32[%c0_176, %c0_177, %c0_178], %409 {strides = array<i32>} : memref<1x1x64xf32, #tpu.memory_space<vmem>>, vector<1x1x64xf32>,
    return
  }
  func.func @transform_0(%arg0: i32) -> (i32, i32, i32) {
    %c0_i32 = arith.constant 0 : i32
    %c0_i32_0 = arith.constant 0 : i32
    %c0_i32_1 = arith.constant 0 : i32
    return %arg0, %c0_i32, %c0_i32_0 : i32, i32, i32
  }
  func.func @transform_1(%arg0: i32) -> (i32, i32) {
    %c0_i32 = arith.constant 0 : i32
    %c0_i32_0 = arith.constant 0 : i32
    %c0_i32_1 = arith.constant 0 : i32
    return %c0_i32, %c0_i32_0 : i32, i32
  }
  func.func @transform_2(%arg0: i32) -> (i32, i32) {
    %c0_i32 = arith.constant 0 : i32
    %c0_i32_0 = arith.constant 0 : i32
    %c0_i32_1 = arith.constant 0 : i32
    return %c0_i32, %c0_i32_0 : i32, i32
  }
  func.func @transform_3(%arg0: i32) -> (i32, i32) {
    %c0_i32 = arith.constant 0 : i32
    %c0_i32_0 = arith.constant 0 : i32
    %c0_i32_1 = arith.constant 0 : i32
    return %c0_i32, %c0_i32_0 : i32, i32
  }
  func.func @transform_4(%arg0: i32) -> (i32, i32) {
    %c0_i32 = arith.constant 0 : i32
    %c0_i32_0 = arith.constant 0 : i32
    %c0_i32_1 = arith.constant 0 : i32
    return %c0_i32, %c0_i32_0 : i32, i32
  }
  func.func @transform_5(%arg0: i32) -> (i32, i32) {
    %c0_i32 = arith.constant 0 : i32
    %c0_i32_0 = arith.constant 0 : i32
    %c0_i32_1 = arith.constant 0 : i32
    return %c0_i32, %c0_i32_0 : i32, i32
  }
  func.func @transform_6(%arg0: i32) -> (i32, i32) {
    %c0_i32 = arith.constant 0 : i32
    %c0_i32_0 = arith.constant 0 : i32
    %c0_i32_1 = arith.constant 0 : i32
    return %c0_i32, %c0_i32_0 : i32, i32
  }
  func.func @transform_7(%arg0: i32) -> (i32, i32) {
    %c0_i32 = arith.constant 0 : i32
    %c0_i32_0 = arith.constant 0 : i32
    %c0_i32_1 = arith.constant 0 : i32
    return %c0_i32, %c0_i32_0 : i32, i32
  }
  func.func @transform_8(%arg0: i32) -> (i32, i32) {
    %c0_i32 = arith.constant 0 : i32
    %c0_i32_0 = arith.constant 0 : i32
    %c0_i32_1 = arith.constant 0 : i32
    return %c0_i32, %c0_i32_0 : i32, i32
  }
  func.func @transform_9(%arg0: i32) -> (i32, i32) {
    %c0_i32 = arith.constant 0 : i32
    %c0_i32_0 = arith.constant 0 : i32
    %c0_i32_1 = arith.constant 0 : i32
    return %c0_i32, %c0_i32_0 : i32, i32
  }
  func.func @transform_10(%arg0: i32) -> (i32, i32) {
    %c0_i32 = arith.constant 0 : i32
    %c0_i32_0 = arith.constant 0 : i32
    %c0_i32_1 = arith.constant 0 : i32
    return %c0_i32, %c0_i32_0 : i32, i32
  }
  func.func @transform_11(%arg0: i32) -> (i32, i32) {
    %c0_i32 = arith.constant 0 : i32
    %c0_i32_0 = arith.constant 0 : i32
    %c0_i32_1 = arith.constant 0 : i32
    return %c0_i32, %c0_i32_0 : i32, i32
  }
  func.func @transform_12(%arg0: i32) -> (i32, i32) {
    %c0_i32 = arith.constant 0 : i32
    %c0_i32_0 = arith.constant 0 : i32
    %c0_i32_1 = arith.constant 0 : i32
    return %c0_i32, %c0_i32_0 : i32, i32
  }
  func.func @transform_13(%arg0: i32) -> (i32, i32) {
    %c0_i32 = arith.constant 0 : i32
    %c0_i32_0 = arith.constant 0 : i32
    %c0_i32_1 = arith.constant 0 : i32
    return %c0_i32, %c0_i32_0 : i32, i32
  }
  func.func @transform_14(%arg0: i32) -> (i32, i32) {
    %c0_i32 = arith.constant 0 : i32
    %c0_i32_0 = arith.constant 0 : i32
    %c0_i32_1 = arith.constant 0 : i32
    return %c0_i32, %c0_i32_0 : i32, i32
  }
  func.func @transform_15(%arg0: i32) -> (i32, i32) {
    %c0_i32 = arith.constant 0 : i32
    %c0_i32_0 = arith.constant 0 : i32
    %c0_i32_1 = arith.constant 0 : i32
    return %c0_i32, %c0_i32_0 : i32, i32
  }
  func.func @transform_16(%arg0: i32) -> (i32, i32) {
    %c0_i32 = arith.constant 0 : i32
    %c0_i32_0 = arith.constant 0 : i32
    %c0_i32_1 = arith.constant 0 : i32
    return %c0_i32, %c0_i32_0 : i32, i32
  }
  func.func @transform_17(%arg0: i32) -> (i32, i32) {
    %c0_i32 = arith.constant 0 : i32
    %c0_i32_0 = arith.constant 0 : i32
    %c0_i32_1 = arith.constant 0 : i32
    return %c0_i32, %c0_i32_0 : i32, i32
  }
  func.func @transform_18(%arg0: i32) -> (i32, i32) {
    %c0_i32 = arith.constant 0 : i32
    %c0_i32_0 = arith.constant 0 : i32
    %c0_i32_1 = arith.constant 0 : i32
    return %c0_i32, %c0_i32_0 : i32, i32
  }
  func.func @transform_19(%arg0: i32) -> (i32, i32) {
    %c0_i32 = arith.constant 0 : i32
    %c0_i32_0 = arith.constant 0 : i32
    %c0_i32_1 = arith.constant 0 : i32
    return %c0_i32, %c0_i32_0 : i32, i32
  }
  func.func @transform_20(%arg0: i32) -> (i32, i32) {
    %c0_i32 = arith.constant 0 : i32
    %c0_i32_0 = arith.constant 0 : i32
    %c0_i32_1 = arith.constant 0 : i32
    return %c0_i32, %c0_i32_0 : i32, i32
  }
  func.func @transform_21(%arg0: i32) -> (i32, i32) {
    %c0_i32 = arith.constant 0 : i32
    %c0_i32_0 = arith.constant 0 : i32
    %c0_i32_1 = arith.constant 0 : i32
    return %c0_i32, %c0_i32_0 : i32, i32
  }
  func.func @transform_22(%arg0: i32) -> (i32, i32) {
    %c0_i32 = arith.constant 0 : i32
    %c0_i32_0 = arith.constant 0 : i32
    %c0_i32_1 = arith.constant 0 : i32
    return %c0_i32, %c0_i32_0 : i32, i32
  }
  func.func @transform_23(%arg0: i32) -> (i32, i32) {
    %c0_i32 = arith.constant 0 : i32
    %c0_i32_0 = arith.constant 0 : i32
    %c0_i32_1 = arith.constant 0 : i32
    return %c0_i32, %c0_i32_0 : i32, i32
  }
  func.func @transform_24(%arg0: i32) -> (i32, i32) {
    %c0_i32 = arith.constant 0 : i32
    %c0_i32_0 = arith.constant 0 : i32
    %c0_i32_1 = arith.constant 0 : i32
    return %c0_i32, %c0_i32_0 : i32, i32
  }
  func.func @transform_25(%arg0: i32) -> (i32, i32) {
    %c0_i32 = arith.constant 0 : i32
    %c0_i32_0 = arith.constant 0 : i32
    %c0_i32_1 = arith.constant 0 : i32
    return %c0_i32, %c0_i32_0 : i32, i32
  }
  func.func @transform_26(%arg0: i32) -> (i32, i32) {
    %c0_i32 = arith.constant 0 : i32
    %c0_i32_0 = arith.constant 0 : i32
    %c0_i32_1 = arith.constant 0 : i32
    return %c0_i32, %c0_i32_0 : i32, i32
  }
  func.func @transform_27(%arg0: i32) -> (i32, i32) {
    %c0_i32 = arith.constant 0 : i32
    %c0_i32_0 = arith.constant 0 : i32
    %c0_i32_1 = arith.constant 0 : i32
    return %c0_i32, %c0_i32_0 : i32, i32
  }
  func.func @transform_28(%arg0: i32) -> (i32, i32) {
    %c0_i32 = arith.constant 0 : i32
    %c0_i32_0 = arith.constant 0 : i32
    %c0_i32_1 = arith.constant 0 : i32
    return %c0_i32, %c0_i32_0 : i32, i32
  }
  func.func @transform_29(%arg0: i32) -> (i32, i32) {
    %c0_i32 = arith.constant 0 : i32
    %c0_i32_0 = arith.constant 0 : i32
    %c0_i32_1 = arith.constant 0 : i32
    return %c0_i32, %c0_i32_0 : i32, i32
  }
  func.func @transform_30(%arg0: i32) -> (i32, i32) {
    %c0_i32 = arith.constant 0 : i32
    %c0_i32_0 = arith.constant 0 : i32
    %c0_i32_1 = arith.constant 0 : i32
    return %c0_i32, %c0_i32_0 : i32, i32
  }
  func.func @transform_31(%arg0: i32) -> (i32, i32, i32) {
    %c0_i32 = arith.constant 0 : i32
    %c0_i32_0 = arith.constant 0 : i32
    %c0_i32_1 = arith.constant 0 : i32
    return %arg0, %c0_i32, %c0_i32_0 : i32, i32, i32
  }
}

</mosaic_0001>

<llo_original>
// kernel: tpu_custom_call.1
$region0: #{tpu_custom_call.1}
  #allocation0 [shape = 'u32[]', space=smem, size = 0x4, offset = 0x4, fixed_abs, tag = 'smem constant byte address 0x4 - core index']
  #allocation1 [shape = 'u32[144,128]{1,0:T(1,128)}', space=vmem, size = 0x12000, scoped, tag = 'internal scratch']
  %s0 = inlined_call_operand.smem [shape: u32[32], index: -1, kind: input, shape index: {}]
  %s1 = sld [smem:[%s0]]
  %s2 = scalar_lea.smem %s0, 1
  %s3 = sld [smem:[%s2]]
  %s4 = scalar_lea.smem %s0, 2
  %s5 = sld [smem:[%s4]]
  %s6 = scalar_lea.smem %s0, 3
  %s7 = sld [smem:[%s6]]
  %s8 = scalar_lea.smem %s0, 4
  %s9 = sld [smem:[%s8]]
  %s10 = scalar_lea.smem %s0, 5
  %s11 = sld [smem:[%s10]]
  %s12 = scalar_lea.smem %s0, 6
  %s13 = sld [smem:[%s12]]
  %s14 = scalar_lea.smem %s0, 7
  %s15 = sld [smem:[%s14]]
  %s16 = scalar_lea.smem %s0, 8
  %s17 = sld [smem:[%s16]]
  %s18 = scalar_lea.smem %s0, 9
  %s19 = sld [smem:[%s18]]
  %s20 = scalar_lea.smem %s0, 10
  %s21 = sld [smem:[%s20]]
  %s22 = scalar_lea.smem %s0, 11
  %s23 = sld [smem:[%s22]]
  %s24 = scalar_lea.smem %s0, 12
  %s25 = sld [smem:[%s24]]
  %s26 = scalar_lea.smem %s0, 13
  %s27 = sld [smem:[%s26]]
  %s28 = scalar_lea.smem %s0, 14
  %s29 = sld [smem:[%s28]]
  %s30 = scalar_lea.smem %s0, 15
  %s31 = sld [smem:[%s30]]
  %s32 = scalar_lea.smem %s0, 16
  %s33 = sld [smem:[%s32]]
  %s34 = scalar_lea.smem %s0, 17
  %s35 = sld [smem:[%s34]]
  %s36 = scalar_lea.smem %s0, 18
  %s37 = sld [smem:[%s36]]
  %s38 = scalar_lea.smem %s0, 19
  %s39 = sld [smem:[%s38]]
  %s40 = scalar_lea.smem %s0, 20
  %s41 = sld [smem:[%s40]]
  %s42 = scalar_lea.smem %s0, 21
  %s43 = sld [smem:[%s42]]
  %s44 = scalar_lea.smem %s0, 22
  %s45 = sld [smem:[%s44]]
  %s46 = scalar_lea.smem %s0, 23
  %s47 = sld [smem:[%s46]]
  %s48 = scalar_lea.smem %s0, 24
  %s49 = sld [smem:[%s48]]
  %s50 = scalar_lea.smem %s0, 25
  %s51 = sld [smem:[%s50]]
  %s52 = scalar_lea.smem %s0, 26
  %s53 = sld [smem:[%s52]]
  %s54 = scalar_lea.smem %s0, 27
  %s55 = sld [smem:[%s54]]
  %s56 = scalar_lea.smem %s0, 28
  %s57 = sld [smem:[%s56]]
  %s58 = scalar_lea.smem %s0, 29
  %s59 = sld [smem:[%s58]]
  %s60 = scalar_lea.smem %s0, 30
  %s61 = sld [smem:[%s60]]
  %s62 = scalar_lea.smem %s0, 31
  %s63 = sld [smem:[%s62]]
  %s64 = sld [smem:[#allocation0]]
  $region157: #{tpu_custom_call.1} parent=0
    _
  %s66 = ssub.s32 1, %s64
  %s67 = scalar_select 0, %s66, %s64
  $region1: #{tpu_custom_call.1} parent=0
    #allocation2 [shape = 'u8[1024]{0}', space=vmem, size = 0x400, scoped, tag = 'output window, operand 0']
    #allocation3 [shape = 's32[2]{0}', space=sflag, size = 0x8, scoped, tag = 'scoped memory for tpu_custom_call.1']
    %68 = vsyncpa [#allocation3], 0
    %s69 = scalar_lea.sflag [#allocation3], 1
    %70 = vsyncpa %s69, 0
    loop: start=0, step=1, limit=4
    $region2: #{tpu_custom_call.1} parent=1 // loop_pre_header
      _
    $region3: #{tpu_custom_call.1} parent=1 // loop_header
      %s72 = sphi 0, %s76
      %p73 = scmp.ge.s32.totalorder %s72, 4
      %s82 = sphi 0, %s84
      %s85 = sphi 0, %s82
      %s86 = sphi 0, %s85
      %s102 = sphi 0, %s86
      %s106 = sphi 0, %s106
      %s108 = sphi 0, %s106
      %s109 = sphi 0, %s108
      %s123 = sphi 0, %s109
      %s127 = sphi 0, %s127
      %s129 = sphi 0, %s127
      %s130 = sphi 0, %s129
      %s144 = sphi 0, %s130
      %s148 = sphi 0, %s148
      %s150 = sphi 0, %s148
      %s151 = sphi 0, %s150
      %s165 = sphi 0, %s151
      %s169 = sphi 0, %s169
      %s171 = sphi 0, %s169
      %s172 = sphi 0, %s171
      %s186 = sphi 0, %s172
      %s190 = sphi 0, %s190
      %s192 = sphi 0, %s190
      %s193 = sphi 0, %s192
      %s207 = sphi 0, %s193
      %s211 = sphi 0, %s211
      %s213 = sphi 0, %s211
      %s214 = sphi 0, %s213
      %s228 = sphi 0, %s214
      %s232 = sphi 0, %s232
      %s234 = sphi 0, %s232
      %s235 = sphi 0, %s234
      %s249 = sphi 0, %s235
      %s253 = sphi 0, %s253
      %s255 = sphi 0, %s253
      %s256 = sphi 0, %s255
      %s270 = sphi 0, %s256
      %s274 = sphi 0, %s274
      %s276 = sphi 0, %s274
      %s277 = sphi 0, %s276
      %s291 = sphi 0, %s277
      %s295 = sphi 0, %s295
      %s297 = sphi 0, %s295
      %s298 = sphi 0, %s297
      %s312 = sphi 0, %s298
      %s316 = sphi 0, %s316
      %s318 = sphi 0, %s316
      %s319 = sphi 0, %s318
      %s333 = sphi 0, %s319
      %s337 = sphi 0, %s337
      %s339 = sphi 0, %s337
      %s340 = sphi 0, %s339
      %s354 = sphi 0, %s340
      %s358 = sphi 0, %s358
      %s360 = sphi 0, %s358
      %s361 = sphi 0, %s360
      %s375 = sphi 0, %s361
      %s379 = sphi 0, %s379
      %s381 = sphi 0, %s379
      %s382 = sphi 0, %s381
      %s396 = sphi 0, %s382
      %s400 = sphi 0, %s400
      %s402 = sphi 0, %s400
      %s403 = sphi 0, %s402
      %s417 = sphi 0, %s403
      %s421 = sphi 0, %s421
      %s423 = sphi 0, %s421
      %s424 = sphi 0, %s423
      %s438 = sphi 0, %s424
      %s442 = sphi 0, %s442
      %s444 = sphi 0, %s442
      %s445 = sphi 0, %s444
      %s459 = sphi 0, %s445
      %s463 = sphi 0, %s463
      %s465 = sphi 0, %s463
      %s466 = sphi 0, %s465
      %s480 = sphi 0, %s466
      %s484 = sphi 0, %s484
      %s486 = sphi 0, %s484
      %s487 = sphi 0, %s486
      %s501 = sphi 0, %s487
      %s505 = sphi 0, %s505
      %s507 = sphi 0, %s505
      %s508 = sphi 0, %s507
      %s522 = sphi 0, %s508
      %s526 = sphi 0, %s526
      %s528 = sphi 0, %s526
      %s529 = sphi 0, %s528
      %s543 = sphi 0, %s529
      %s547 = sphi 0, %s547
      %s549 = sphi 0, %s547
      %s550 = sphi 0, %s549
      %s564 = sphi 0, %s550
      %s568 = sphi 0, %s568
      %s570 = sphi 0, %s568
      %s571 = sphi 0, %s570
      %s585 = sphi 0, %s571
      %s589 = sphi 0, %s589
      %s591 = sphi 0, %s589
      %s592 = sphi 0, %s591
      %s606 = sphi 0, %s592
      %s610 = sphi 0, %s610
      %s612 = sphi 0, %s610
      %s613 = sphi 0, %s612
      %s627 = sphi 0, %s613
      %s631 = sphi 0, %s631
      %s633 = sphi 0, %s631
      %s634 = sphi 0, %s633
      %s648 = sphi 0, %s634
      %s652 = sphi 0, %s652
      %s654 = sphi 0, %s652
      %s655 = sphi 0, %s654
      %s669 = sphi 0, %s655
      %s673 = sphi 0, %s673
      %s675 = sphi 0, %s673
      %s676 = sphi 0, %s675
      %s690 = sphi 0, %s676
      %s694 = sphi 0, %s694
      %s696 = sphi 0, %s694
      %s697 = sphi 0, %s696
      %s711 = sphi 0, %s697
      %s715 = sphi 0, %s715
      %s717 = sphi 0, %s715
      %s718 = sphi 0, %s717
      %s732 = sphi 0, %s718
      %s738 = sphi 0, %s740
      %s741 = sphi 0, %s738
      %s742 = sphi 0, %s741
      %s758 = sphi 0, %s742
    $region4: #{tpu_custom_call.1} parent=1 // loop_header_branch
      %75 = sbr.rel (%p73) target = $region8
    $region5: #{tpu_custom_call.1} parent=1 // loop_body
      %s77 = ssub.s32 %s72, 1
      %s78 = ssub.s32 %s72, 2
      %s79 = sadd.s32 %s72, 1
      %s80 = ssub.s32 %s72, %s79
      %p81 = scmp.eq.s32.totalorder %s80, 0
      %s83 = sadd.s32 %s82, 1
      %s84 = scalar_select %p81, %s82, %s83
      %p87 = pneg %p81
      %p88 = scmp.eq.s32.totalorder %s72, 1
      %p89 = por %p87, %p88
      %p90 = scmp.ne.s32.totalorder %s82, %s85
      %p91 = scmp.eq.s32.totalorder %s72, 0
      %p92 = por %p90, %p91
      %p93 = scmp.ne.s32.totalorder %s82, %s85
      %p94 = scmp.eq.s32.totalorder %s77, 1
      %p95 = por %p93, %p94
      %p96 = scmp.ne.s32.totalorder %s85, %s86
      %p97 = scmp.eq.s32.totalorder %s77, 0
      %p98 = por %p96, %p97
      %p99 = scmp.ne.s32.totalorder %s85, %s86
      %p100 = scmp.eq.s32.totalorder %s78, 1
      %p101 = por %p99, %p100
      %p103 = scmp.ne.s32.totalorder %s86, %s102
      %p104 = scmp.eq.s32.totalorder %s78, 0
      %p105 = por %p103, %p104
      %s107 = sadd.s32 %s106, 1
      %p110 = scmp.eq.s32.totalorder %s72, 1
      %p111 = scmp.ne.s32.totalorder %s106, %s108
      %p112 = scmp.eq.s32.totalorder %s72, 0
      %p113 = por %p111, %p112
      %p114 = scmp.ne.s32.totalorder %s106, %s108
      %p115 = scmp.eq.s32.totalorder %s77, 1
      %p116 = por %p114, %p115
      %p117 = scmp.ne.s32.totalorder %s108, %s109
      %p118 = scmp.eq.s32.totalorder %s77, 0
      %p119 = por %p117, %p118
      %p120 = scmp.ne.s32.totalorder %s108, %s109
      %p121 = scmp.eq.s32.totalorder %s78, 1
      %p122 = por %p120, %p121
      %p124 = scmp.ne.s32.totalorder %s109, %s123
      %p125 = scmp.eq.s32.totalorder %s78, 0
      %p126 = por %p124, %p125
      %s128 = sadd.s32 %s127, 1
      %p131 = scmp.eq.s32.totalorder %s72, 1
      %p132 = scmp.ne.s32.totalorder %s127, %s129
      %p133 = scmp.eq.s32.totalorder %s72, 0
      %p134 = por %p132, %p133
      %p135 = scmp.ne.s32.totalorder %s127, %s129
      %p136 = scmp.eq.s32.totalorder %s77, 1
      %p137 = por %p135, %p136
      %p138 = scmp.ne.s32.totalorder %s129, %s130
      %p139 = scmp.eq.s32.totalorder %s77, 0
      %p140 = por %p138, %p139
      %p141 = scmp.ne.s32.totalorder %s129, %s130
      %p142 = scmp.eq.s32.totalorder %s78, 1
      %p143 = por %p141, %p142
      %p145 = scmp.ne.s32.totalorder %s130, %s144
      %p146 = scmp.eq.s32.totalorder %s78, 0
      %p147 = por %p145, %p146
      %s149 = sadd.s32 %s148, 1
      %p152 = scmp.eq.s32.totalorder %s72, 1
      %p153 = scmp.ne.s32.totalorder %s148, %s150
      %p154 = scmp.eq.s32.totalorder %s72, 0
      %p155 = por %p153, %p154
      %p156 = scmp.ne.s32.totalorder %s148, %s150
      %p157 = scmp.eq.s32.totalorder %s77, 1
      %p158 = por %p156, %p157
      %p159 = scmp.ne.s32.totalorder %s150, %s151
      %p160 = scmp.eq.s32.totalorder %s77, 0
      %p161 = por %p159, %p160
      %p162 = scmp.ne.s32.totalorder %s150, %s151
      %p163 = scmp.eq.s32.totalorder %s78, 1
      %p164 = por %p162, %p163
      %p166 = scmp.ne.s32.totalorder %s151, %s165
      %p167 = scmp.eq.s32.totalorder %s78, 0
      %p168 = por %p166, %p167
      %s170 = sadd.s32 %s169, 1
      %p173 = scmp.eq.s32.totalorder %s72, 1
      %p174 = scmp.ne.s32.totalorder %s169, %s171
      %p175 = scmp.eq.s32.totalorder %s72, 0
      %p176 = por %p174, %p175
      %p177 = scmp.ne.s32.totalorder %s169, %s171
      %p178 = scmp.eq.s32.totalorder %s77, 1
      %p179 = por %p177, %p178
      %p180 = scmp.ne.s32.totalorder %s171, %s172
      %p181 = scmp.eq.s32.totalorder %s77, 0
      %p182 = por %p180, %p181
      %p183 = scmp.ne.s32.totalorder %s171, %s172
      %p184 = scmp.eq.s32.totalorder %s78, 1
      %p185 = por %p183, %p184
      %p187 = scmp.ne.s32.totalorder %s172, %s186
      %p188 = scmp.eq.s32.totalorder %s78, 0
      %p189 = por %p187, %p188
      %s191 = sadd.s32 %s190, 1
      %p194 = scmp.eq.s32.totalorder %s72, 1
      %p195 = scmp.ne.s32.totalorder %s190, %s192
      %p196 = scmp.eq.s32.totalorder %s72, 0
      %p197 = por %p195, %p196
      %p198 = scmp.ne.s32.totalorder %s190, %s192
      %p199 = scmp.eq.s32.totalorder %s77, 1
      %p200 = por %p198, %p199
      %p201 = scmp.ne.s32.totalorder %s192, %s193
      %p202 = scmp.eq.s32.totalorder %s77, 0
      %p203 = por %p201, %p202
      %p204 = scmp.ne.s32.totalorder %s192, %s193
      %p205 = scmp.eq.s32.totalorder %s78, 1
      %p206 = por %p204, %p205
      %p208 = scmp.ne.s32.totalorder %s193, %s207
      %p209 = scmp.eq.s32.totalorder %s78, 0
      %p210 = por %p208, %p209
      %s212 = sadd.s32 %s211, 1
      %p215 = scmp.eq.s32.totalorder %s72, 1
      %p216 = scmp.ne.s32.totalorder %s211, %s213
      %p217 = scmp.eq.s32.totalorder %s72, 0
      %p218 = por %p216, %p217
      %p219 = scmp.ne.s32.totalorder %s211, %s213
      %p220 = scmp.eq.s32.totalorder %s77, 1
      %p221 = por %p219, %p220
      %p222 = scmp.ne.s32.totalorder %s213, %s214
      %p223 = scmp.eq.s32.totalorder %s77, 0
      %p224 = por %p222, %p223
      %p225 = scmp.ne.s32.totalorder %s213, %s214
      %p226 = scmp.eq.s32.totalorder %s78, 1
      %p227 = por %p225, %p226
      %p229 = scmp.ne.s32.totalorder %s214, %s228
      %p230 = scmp.eq.s32.totalorder %s78, 0
      %p231 = por %p229, %p230
      %s233 = sadd.s32 %s232, 1
      %p236 = scmp.eq.s32.totalorder %s72, 1
      %p237 = scmp.ne.s32.totalorder %s232, %s234
      %p238 = scmp.eq.s32.totalorder %s72, 0
      %p239 = por %p237, %p238
      %p240 = scmp.ne.s32.totalorder %s232, %s234
      %p241 = scmp.eq.s32.totalorder %s77, 1
      %p242 = por %p240, %p241
      %p243 = scmp.ne.s32.totalorder %s234, %s235
      %p244 = scmp.eq.s32.totalorder %s77, 0
      %p245 = por %p243, %p244
      %p246 = scmp.ne.s32.totalorder %s234, %s235
      %p247 = scmp.eq.s32.totalorder %s78, 1
      %p248 = por %p246, %p247
      %p250 = scmp.ne.s32.totalorder %s235, %s249
      %p251 = scmp.eq.s32.totalorder %s78, 0
      %p252 = por %p250, %p251
      %s254 = sadd.s32 %s253, 1
      %p257 = scmp.eq.s32.totalorder %s72, 1
      %p258 = scmp.ne.s32.totalorder %s253, %s255
      %p259 = scmp.eq.s32.totalorder %s72, 0
      %p260 = por %p258, %p259
      %p261 = scmp.ne.s32.totalorder %s253, %s255
      %p262 = scmp.eq.s32.totalorder %s77, 1
      %p263 = por %p261, %p262
      %p264 = scmp.ne.s32.totalorder %s255, %s256
      %p265 = scmp.eq.s32.totalorder %s77, 0
      %p266 = por %p264, %p265
      %p267 = scmp.ne.s32.totalorder %s255, %s256
      %p268 = scmp.eq.s32.totalorder %s78, 1
      %p269 = por %p267, %p268
      %p271 = scmp.ne.s32.totalorder %s256, %s270
      %p272 = scmp.eq.s32.totalorder %s78, 0
      %p273 = por %p271, %p272
      %s275 = sadd.s32 %s274, 1
      %p278 = scmp.eq.s32.totalorder %s72, 1
      %p279 = scmp.ne.s32.totalorder %s274, %s276
      %p280 = scmp.eq.s32.totalorder %s72, 0
      %p281 = por %p279, %p280
      %p282 = scmp.ne.s32.totalorder %s274, %s276
      %p283 = scmp.eq.s32.totalorder %s77, 1
      %p284 = por %p282, %p283
      %p285 = scmp.ne.s32.totalorder %s276, %s277
      %p286 = scmp.eq.s32.totalorder %s77, 0
      %p287 = por %p285, %p286
      %p288 = scmp.ne.s32.totalorder %s276, %s277
      %p289 = scmp.eq.s32.totalorder %s78, 1
      %p290 = por %p288, %p289
      %p292 = scmp.ne.s32.totalorder %s277, %s291
      %p293 = scmp.eq.s32.totalorder %s78, 0
      %p294 = por %p292, %p293
      %s296 = sadd.s32 %s295, 1
      %p299 = scmp.eq.s32.totalorder %s72, 1
      %p300 = scmp.ne.s32.totalorder %s295, %s297
      %p301 = scmp.eq.s32.totalorder %s72, 0
      %p302 = por %p300, %p301
      %p303 = scmp.ne.s32.totalorder %s295, %s297
      %p304 = scmp.eq.s32.totalorder %s77, 1
      %p305 = por %p303, %p304
      %p306 = scmp.ne.s32.totalorder %s297, %s298
      %p307 = scmp.eq.s32.totalorder %s77, 0
      %p308 = por %p306, %p307
      %p309 = scmp.ne.s32.totalorder %s297, %s298
      %p310 = scmp.eq.s32.totalorder %s78, 1
      %p311 = por %p309, %p310
      %p313 = scmp.ne.s32.totalorder %s298, %s312
      %p314 = scmp.eq.s32.totalorder %s78, 0
      %p315 = por %p313, %p314
      %s317 = sadd.s32 %s316, 1
      %p320 = scmp.eq.s32.totalorder %s72, 1
      %p321 = scmp.ne.s32.totalorder %s316, %s318
      %p322 = scmp.eq.s32.totalorder %s72, 0
      %p323 = por %p321, %p322
      %p324 = scmp.ne.s32.totalorder %s316, %s318
      %p325 = scmp.eq.s32.totalorder %s77, 1
      %p326 = por %p324, %p325
      %p327 = scmp.ne.s32.totalorder %s318, %s319
      %p328 = scmp.eq.s32.totalorder %s77, 0
      %p329 = por %p327, %p328
      %p330 = scmp.ne.s32.totalorder %s318, %s319
      %p331 = scmp.eq.s32.totalorder %s78, 1
      %p332 = por %p330, %p331
      %p334 = scmp.ne.s32.totalorder %s319, %s333
      %p335 = scmp.eq.s32.totalorder %s78, 0
      %p336 = por %p334, %p335
      %s338 = sadd.s32 %s337, 1
      %p341 = scmp.eq.s32.totalorder %s72, 1
      %p342 = scmp.ne.s32.totalorder %s337, %s339
      %p343 = scmp.eq.s32.totalorder %s72, 0
      %p344 = por %p342, %p343
      %p345 = scmp.ne.s32.totalorder %s337, %s339
      %p346 = scmp.eq.s32.totalorder %s77, 1
      %p347 = por %p345, %p346
      %p348 = scmp.ne.s32.totalorder %s339, %s340
      %p349 = scmp.eq.s32.totalorder %s77, 0
      %p350 = por %p348, %p349
      %p351 = scmp.ne.s32.totalorder %s339, %s340
      %p352 = scmp.eq.s32.totalorder %s78, 1
      %p353 = por %p351, %p352
      %p355 = scmp.ne.s32.totalorder %s340, %s354
      %p356 = scmp.eq.s32.totalorder %s78, 0
      %p357 = por %p355, %p356
      %s359 = sadd.s32 %s358, 1
      %p362 = scmp.eq.s32.totalorder %s72, 1
      %p363 = scmp.ne.s32.totalorder %s358, %s360
      %p364 = scmp.eq.s32.totalorder %s72, 0
      %p365 = por %p363, %p364
      %p366 = scmp.ne.s32.totalorder %s358, %s360
      %p367 = scmp.eq.s32.totalorder %s77, 1
      %p368 = por %p366, %p367
      %p369 = scmp.ne.s32.totalorder %s360, %s361
      %p370 = scmp.eq.s32.totalorder %s77, 0
      %p371 = por %p369, %p370
      %p372 = scmp.ne.s32.totalorder %s360, %s361
      %p373 = scmp.eq.s32.totalorder %s78, 1
      %p374 = por %p372, %p373
      %p376 = scmp.ne.s32.totalorder %s361, %s375
      %p377 = scmp.eq.s32.totalorder %s78, 0
      %p378 = por %p376, %p377
      %s380 = sadd.s32 %s379, 1
      %p383 = scmp.eq.s32.totalorder %s72, 1
      %p384 = scmp.ne.s32.totalorder %s379, %s381
      %p385 = scmp.eq.s32.totalorder %s72, 0
      %p386 = por %p384, %p385
      %p387 = scmp.ne.s32.totalorder %s379, %s381
      %p388 = scmp.eq.s32.totalorder %s77, 1
      %p389 = por %p387, %p388
      %p390 = scmp.ne.s32.totalorder %s381, %s382
      %p391 = scmp.eq.s32.totalorder %s77, 0
      %p392 = por %p390, %p391
      %p393 = scmp.ne.s32.totalorder %s381, %s382
      %p394 = scmp.eq.s32.totalorder %s78, 1
      %p395 = por %p393, %p394
      %p397 = scmp.ne.s32.totalorder %s382, %s396
      %p398 = scmp.eq.s32.totalorder %s78, 0
      %p399 = por %p397, %p398
      %s401 = sadd.s32 %s400, 1
      %p404 = scmp.eq.s32.totalorder %s72, 1
      %p405 = scmp.ne.s32.totalorder %s400, %s402
      %p406 = scmp.eq.s32.totalorder %s72, 0
      %p407 = por %p405, %p406
      %p408 = scmp.ne.s32.totalorder %s400, %s402
      %p409 = scmp.eq.s32.totalorder %s77, 1
      %p410 = por %p408, %p409
      %p411 = scmp.ne.s32.totalorder %s402, %s403
      %p412 = scmp.eq.s32.totalorder %s77, 0
      %p413 = por %p411, %p412
      %p414 = scmp.ne.s32.totalorder %s402, %s403
      %p415 = scmp.eq.s32.totalorder %s78, 1
      %p416 = por %p414, %p415
      %p418 = scmp.ne.s32.totalorder %s403, %s417
      %p419 = scmp.eq.s32.totalorder %s78, 0
      %p420 = por %p418, %p419
      %s422 = sadd.s32 %s421, 1
      %p425 = scmp.eq.s32.totalorder %s72, 1
      %p426 = scmp.ne.s32.totalorder %s421, %s423
      %p427 = scmp.eq.s32.totalorder %s72, 0
      %p428 = por %p426, %p427
      %p429 = scmp.ne.s32.totalorder %s421, %s423
      %p430 = scmp.eq.s32.totalorder %s77, 1
      %p431 = por %p429, %p430
      %p432 = scmp.ne.s32.totalorder %s423, %s424
      %p433 = scmp.eq.s32.totalorder %s77, 0
      %p434 = por %p432, %p433
      %p435 = scmp.ne.s32.totalorder %s423, %s424
      %p436 = scmp.eq.s32.totalorder %s78, 1
      %p437 = por %p435, %p436
      %p439 = scmp.ne.s32.totalorder %s424, %s438
      %p440 = scmp.eq.s32.totalorder %s78, 0
      %p441 = por %p439, %p440
      %s443 = sadd.s32 %s442, 1
      %p446 = scmp.eq.s32.totalorder %s72, 1
      %p447 = scmp.ne.s32.totalorder %s442, %s444
      %p448 = scmp.eq.s32.totalorder %s72, 0
      %p449 = por %p447, %p448
      %p450 = scmp.ne.s32.totalorder %s442, %s444
      %p451 = scmp.eq.s32.totalorder %s77, 1
      %p452 = por %p450, %p451
      %p453 = scmp.ne.s32.totalorder %s444, %s445
      %p454 = scmp.eq.s32.totalorder %s77, 0
      %p455 = por %p453, %p454
      %p456 = scmp.ne.s32.totalorder %s444, %s445
      %p457 = scmp.eq.s32.totalorder %s78, 1
      %p458 = por %p456, %p457
      %p460 = scmp.ne.s32.totalorder %s445, %s459
      %p461 = scmp.eq.s32.totalorder %s78, 0
      %p462 = por %p460, %p461
      %s464 = sadd.s32 %s463, 1
      %p467 = scmp.eq.s32.totalorder %s72, 1
      %p468 = scmp.ne.s32.totalorder %s463, %s465
      %p469 = scmp.eq.s32.totalorder %s72, 0
      %p470 = por %p468, %p469
      %p471 = scmp.ne.s32.totalorder %s463, %s465
      %p472 = scmp.eq.s32.totalorder %s77, 1
      %p473 = por %p471, %p472
      %p474 = scmp.ne.s32.totalorder %s465, %s466
      %p475 = scmp.eq.s32.totalorder %s77, 0
      %p476 = por %p474, %p475
      %p477 = scmp.ne.s32.totalorder %s465, %s466
      %p478 = scmp.eq.s32.totalorder %s78, 1
      %p479 = por %p477, %p478
      %p481 = scmp.ne.s32.totalorder %s466, %s480
      %p482 = scmp.eq.s32.totalorder %s78, 0
      %p483 = por %p481, %p482
      %s485 = sadd.s32 %s484, 1
      %p488 = scmp.eq.s32.totalorder %s72, 1
      %p489 = scmp.ne.s32.totalorder %s484, %s486
      %p490 = scmp.eq.s32.totalorder %s72, 0
      %p491 = por %p489, %p490
      %p492 = scmp.ne.s32.totalorder %s484, %s486
      %p493 = scmp.eq.s32.totalorder %s77, 1
      %p494 = por %p492, %p493
      %p495 = scmp.ne.s32.totalorder %s486, %s487
      %p496 = scmp.eq.s32.totalorder %s77, 0
      %p497 = por %p495, %p496
      %p498 = scmp.ne.s32.totalorder %s486, %s487
      %p499 = scmp.eq.s32.totalorder %s78, 1
      %p500 = por %p498, %p499
      %p502 = scmp.ne.s32.totalorder %s487, %s501
      %p503 = scmp.eq.s32.totalorder %s78, 0
      %p504 = por %p502, %p503
      %s506 = sadd.s32 %s505, 1
      %p509 = scmp.eq.s32.totalorder %s72, 1
      %p510 = scmp.ne.s32.totalorder %s505, %s507
      %p511 = scmp.eq.s32.totalorder %s72, 0
      %p512 = por %p510, %p511
      %p513 = scmp.ne.s32.totalorder %s505, %s507
      %p514 = scmp.eq.s32.totalorder %s77, 1
      %p515 = por %p513, %p514
      %p516 = scmp.ne.s32.totalorder %s507, %s508
      %p517 = scmp.eq.s32.totalorder %s77, 0
      %p518 = por %p516, %p517
      %p519 = scmp.ne.s32.totalorder %s507, %s508
      %p520 = scmp.eq.s32.totalorder %s78, 1
      %p521 = por %p519, %p520
      %p523 = scmp.ne.s32.totalorder %s508, %s522
      %p524 = scmp.eq.s32.totalorder %s78, 0
      %p525 = por %p523, %p524
      %s527 = sadd.s32 %s526, 1
      %p530 = scmp.eq.s32.totalorder %s72, 1
      %p531 = scmp.ne.s32.totalorder %s526, %s528
      %p532 = scmp.eq.s32.totalorder %s72, 0
      %p533 = por %p531, %p532
      %p534 = scmp.ne.s32.totalorder %s526, %s528
      %p535 = scmp.eq.s32.totalorder %s77, 1
      %p536 = por %p534, %p535
      %p537 = scmp.ne.s32.totalorder %s528, %s529
      %p538 = scmp.eq.s32.totalorder %s77, 0
      %p539 = por %p537, %p538
      %p540 = scmp.ne.s32.totalorder %s528, %s529
      %p541 = scmp.eq.s32.totalorder %s78, 1
      %p542 = por %p540, %p541
      %p544 = scmp.ne.s32.totalorder %s529, %s543
      %p545 = scmp.eq.s32.totalorder %s78, 0
      %p546 = por %p544, %p545
      %s548 = sadd.s32 %s547, 1
      %p551 = scmp.eq.s32.totalorder %s72, 1
      %p552 = scmp.ne.s32.totalorder %s547, %s549
      %p553 = scmp.eq.s32.totalorder %s72, 0
      %p554 = por %p552, %p553
      %p555 = scmp.ne.s32.totalorder %s547, %s549
      %p556 = scmp.eq.s32.totalorder %s77, 1
      %p557 = por %p555, %p556
      %p558 = scmp.ne.s32.totalorder %s549, %s550
      %p559 = scmp.eq.s32.totalorder %s77, 0
      %p560 = por %p558, %p559
      %p561 = scmp.ne.s32.totalorder %s549, %s550
      %p562 = scmp.eq.s32.totalorder %s78, 1
      %p563 = por %p561, %p562
      %p565 = scmp.ne.s32.totalorder %s550, %s564
      %p566 = scmp.eq.s32.totalorder %s78, 0
      %p567 = por %p565, %p566
      %s569 = sadd.s32 %s568, 1
      %p572 = scmp.eq.s32.totalorder %s72, 1
      %p573 = scmp.ne.s32.totalorder %s568, %s570
      %p574 = scmp.eq.s32.totalorder %s72, 0
      %p575 = por %p573, %p574
      %p576 = scmp.ne.s32.totalorder %s568, %s570
      %p577 = scmp.eq.s32.totalorder %s77, 1
      %p578 = por %p576, %p577
      %p579 = scmp.ne.s32.totalorder %s570, %s571
      %p580 = scmp.eq.s32.totalorder %s77, 0
      %p581 = por %p579, %p580
      %p582 = scmp.ne.s32.totalorder %s570, %s571
      %p583 = scmp.eq.s32.totalorder %s78, 1
      %p584 = por %p582, %p583
      %p586 = scmp.ne.s32.totalorder %s571, %s585
      %p587 = scmp.eq.s32.totalorder %s78, 0
      %p588 = por %p586, %p587
      %s590 = sadd.s32 %s589, 1
      %p593 = scmp.eq.s32.totalorder %s72, 1
      %p594 = scmp.ne.s32.totalorder %s589, %s591
      %p595 = scmp.eq.s32.totalorder %s72, 0
      %p596 = por %p594, %p595
      %p597 = scmp.ne.s32.totalorder %s589, %s591
      %p598 = scmp.eq.s32.totalorder %s77, 1
      %p599 = por %p597, %p598
      %p600 = scmp.ne.s32.totalorder %s591, %s592
      %p601 = scmp.eq.s32.totalorder %s77, 0
      %p602 = por %p600, %p601
      %p603 = scmp.ne.s32.totalorder %s591, %s592
      %p604 = scmp.eq.s32.totalorder %s78, 1
      %p605 = por %p603, %p604
      %p607 = scmp.ne.s32.totalorder %s592, %s606
      %p608 = scmp.eq.s32.totalorder %s78, 0
      %p609 = por %p607, %p608
      %s611 = sadd.s32 %s610, 1
      %p614 = scmp.eq.s32.totalorder %s72, 1
      %p615 = scmp.ne.s32.totalorder %s610, %s612
      %p616 = scmp.eq.s32.totalorder %s72, 0
      %p617 = por %p615, %p616
      %p618 = scmp.ne.s32.totalorder %s610, %s612
      %p619 = scmp.eq.s32.totalorder %s77, 1
      %p620 = por %p618, %p619
      %p621 = scmp.ne.s32.totalorder %s612, %s613
      %p622 = scmp.eq.s32.totalorder %s77, 0
      %p623 = por %p621, %p622
      %p624 = scmp.ne.s32.totalorder %s612, %s613
      %p625 = scmp.eq.s32.totalorder %s78, 1
      %p626 = por %p624, %p625
      %p628 = scmp.ne.s32.totalorder %s613, %s627
      %p629 = scmp.eq.s32.totalorder %s78, 0
      %p630 = por %p628, %p629
      %s632 = sadd.s32 %s631, 1
      %p635 = scmp.eq.s32.totalorder %s72, 1
      %p636 = scmp.ne.s32.totalorder %s631, %s633
      %p637 = scmp.eq.s32.totalorder %s72, 0
      %p638 = por %p636, %p637
      %p639 = scmp.ne.s32.totalorder %s631, %s633
      %p640 = scmp.eq.s32.totalorder %s77, 1
      %p641 = por %p639, %p640
      %p642 = scmp.ne.s32.totalorder %s633, %s634
      %p643 = scmp.eq.s32.totalorder %s77, 0
      %p644 = por %p642, %p643
      %p645 = scmp.ne.s32.totalorder %s633, %s634
      %p646 = scmp.eq.s32.totalorder %s78, 1
      %p647 = por %p645, %p646
      %p649 = scmp.ne.s32.totalorder %s634, %s648
      %p650 = scmp.eq.s32.totalorder %s78, 0
      %p651 = por %p649, %p650
      %s653 = sadd.s32 %s652, 1
      %p656 = scmp.eq.s32.totalorder %s72, 1
      %p657 = scmp.ne.s32.totalorder %s652, %s654
      %p658 = scmp.eq.s32.totalorder %s72, 0
      %p659 = por %p657, %p658
      %p660 = scmp.ne.s32.totalorder %s652, %s654
      %p661 = scmp.eq.s32.totalorder %s77, 1
      %p662 = por %p660, %p661
      %p663 = scmp.ne.s32.totalorder %s654, %s655
      %p664 = scmp.eq.s32.totalorder %s77, 0
      %p665 = por %p663, %p664
      %p666 = scmp.ne.s32.totalorder %s654, %s655
      %p667 = scmp.eq.s32.totalorder %s78, 1
      %p668 = por %p666, %p667
      %p670 = scmp.ne.s32.totalorder %s655, %s669
      %p671 = scmp.eq.s32.totalorder %s78, 0
      %p672 = por %p670, %p671
      %s674 = sadd.s32 %s673, 1
      %p677 = scmp.eq.s32.totalorder %s72, 1
      %p678 = scmp.ne.s32.totalorder %s673, %s675
      %p679 = scmp.eq.s32.totalorder %s72, 0
      %p680 = por %p678, %p679
      %p681 = scmp.ne.s32.totalorder %s673, %s675
      %p682 = scmp.eq.s32.totalorder %s77, 1
      %p683 = por %p681, %p682
      %p684 = scmp.ne.s32.totalorder %s675, %s676
      %p685 = scmp.eq.s32.totalorder %s77, 0
      %p686 = por %p684, %p685
      %p687 = scmp.ne.s32.totalorder %s675, %s676
      %p688 = scmp.eq.s32.totalorder %s78, 1
      %p689 = por %p687, %p688
      %p691 = scmp.ne.s32.totalorder %s676, %s690
      %p692 = scmp.eq.s32.totalorder %s78, 0
      %p693 = por %p691, %p692
      %s695 = sadd.s32 %s694, 1
      %p698 = scmp.eq.s32.totalorder %s72, 1
      %p699 = scmp.ne.s32.totalorder %s694, %s696
      %p700 = scmp.eq.s32.totalorder %s72, 0
      %p701 = por %p699, %p700
      %p702 = scmp.ne.s32.totalorder %s694, %s696
      %p703 = scmp.eq.s32.totalorder %s77, 1
      %p704 = por %p702, %p703
      %p705 = scmp.ne.s32.totalorder %s696, %s697
      %p706 = scmp.eq.s32.totalorder %s77, 0
      %p707 = por %p705, %p706
      %p708 = scmp.ne.s32.totalorder %s696, %s697
      %p709 = scmp.eq.s32.totalorder %s78, 1
      %p710 = por %p708, %p709
      %p712 = scmp.ne.s32.totalorder %s697, %s711
      %p713 = scmp.eq.s32.totalorder %s78, 0
      %p714 = por %p712, %p713
      %s716 = sadd.s32 %s715, 1
      %p719 = scmp.eq.s32.totalorder %s72, 1
      %p720 = scmp.ne.s32.totalorder %s715, %s717
      %p721 = scmp.eq.s32.totalorder %s72, 0
      %p722 = por %p720, %p721
      %p723 = scmp.ne.s32.totalorder %s715, %s717
      %p724 = scmp.eq.s32.totalorder %s77, 1
      %p725 = por %p723, %p724
      %p726 = scmp.ne.s32.totalorder %s717, %s718
      %p727 = scmp.eq.s32.totalorder %s77, 0
      %p728 = por %p726, %p727
      %p729 = scmp.ne.s32.totalorder %s717, %s718
      %p730 = scmp.eq.s32.totalorder %s78, 1
      %p731 = por %p729, %p730
      %p733 = scmp.ne.s32.totalorder %s718, %s732
      %p734 = scmp.eq.s32.totalorder %s78, 0
      %p735 = por %p733, %p734
      %s736 = ssub.s32 %s72, %s79
      %p737 = scmp.eq.s32.totalorder %s736, 0
      %s739 = sadd.s32 %s738, 1
      %s740 = scalar_select %p737, %s738, %s739
      %p743 = pneg %p737
      %p744 = scmp.eq.s32.totalorder %s72, 1
      %p745 = por %p743, %p744
      %p746 = scmp.ne.s32.totalorder %s738, %s741
      %p747 = scmp.eq.s32.totalorder %s72, 0
      %p748 = por %p746, %p747
      %p749 = scmp.ne.s32.totalorder %s738, %s741
      %p750 = scmp.eq.s32.totalorder %s77, 1
      %p751 = por %p749, %p750
      %p752 = scmp.ne.s32.totalorder %s741, %s742
      %p753 = scmp.eq.s32.totalorder %s77, 0
      %p754 = por %p752, %p753
      %p755 = scmp.ne.s32.totalorder %s741, %s742
      %p756 = scmp.eq.s32.totalorder %s78, 1
      %p757 = por %p755, %p756
      %p759 = scmp.ne.s32.totalorder %s742, %s758
      %p760 = scmp.eq.s32.totalorder %s78, 0
      %p761 = por %p759, %p760
      %p762 = scmp.le.s32.totalorder 1, %s72
      %p763 = scmp.lt.s32.totalorder %s72, 3
      %p764 = pnand %p762, %p763
      %p765 = pneg %p764
      // Predicated region
      $region9: #{tpu_custom_call.1} parent=5 // pred_check
        _
      $region10: #{tpu_custom_call.1} parent=5 // pred_check_branch
        %767 = sbr.rel (%p764) target = $region12
      $region11: #{tpu_custom_call.1} parent=5 // pred_region
        %s768 = ssub.s32 %s72, 1
        // Predicated region
        $region13: #{tpu_custom_call.1} parent=11 // pred_check
          %p769 = pneg %p119
        $region14: #{tpu_custom_call.1} parent=11 // pred_check_branch
          %771 = sbr.rel (%p769) target = $region16
        $region15: #{tpu_custom_call.1} parent=11 // pred_region
          _
        $region16: #{tpu_custom_call.1} parent=11 // pred_fallthru
          _
        // Predicated region
        $region17: #{tpu_custom_call.1} parent=11 // pred_check
          %p772 = pneg %p140
        $region18: #{tpu_custom_call.1} parent=11 // pred_check_branch
          %774 = sbr.rel (%p772) target = $region20
        $region19: #{tpu_custom_call.1} parent=11 // pred_region
          _
        $region20: #{tpu_custom_call.1} parent=11 // pred_fallthru
          _
        // Predicated region
        $region21: #{tpu_custom_call.1} parent=11 // pred_check
          %p775 = pneg %p161
        $region22: #{tpu_custom_call.1} parent=11 // pred_check_branch
          %777 = sbr.rel (%p775) target = $region24
        $region23: #{tpu_custom_call.1} parent=11 // pred_region
          _
        $region24: #{tpu_custom_call.1} parent=11 // pred_fallthru
          _
        // Predicated region
        $region25: #{tpu_custom_call.1} parent=11 // pred_check
          %p778 = pneg %p182
        $region26: #{tpu_custom_call.1} parent=11 // pred_check_branch
          %780 = sbr.rel (%p778) target = $region28
        $region27: #{tpu_custom_call.1} parent=11 // pred_region
          _
        $region28: #{tpu_custom_call.1} parent=11 // pred_fallthru
          _
        // Predicated region
        $region29: #{tpu_custom_call.1} parent=11 // pred_check
          %p781 = pneg %p203
        $region30: #{tpu_custom_call.1} parent=11 // pred_check_branch
          %783 = sbr.rel (%p781) target = $region32
        $region31: #{tpu_custom_call.1} parent=11 // pred_region
          _
        $region32: #{tpu_custom_call.1} parent=11 // pred_fallthru
          _
        // Predicated region
        $region33: #{tpu_custom_call.1} parent=11 // pred_check
          %p784 = pneg %p224
        $region34: #{tpu_custom_call.1} parent=11 // pred_check_branch
          %786 = sbr.rel (%p784) target = $region36
        $region35: #{tpu_custom_call.1} parent=11 // pred_region
          _
        $region36: #{tpu_custom_call.1} parent=11 // pred_fallthru
          _
        // Predicated region
        $region37: #{tpu_custom_call.1} parent=11 // pred_check
          %p787 = pneg %p245
        $region38: #{tpu_custom_call.1} parent=11 // pred_check_branch
          %789 = sbr.rel (%p787) target = $region40
        $region39: #{tpu_custom_call.1} parent=11 // pred_region
          _
        $region40: #{tpu_custom_call.1} parent=11 // pred_fallthru
          _
        // Predicated region
        $region41: #{tpu_custom_call.1} parent=11 // pred_check
          %p790 = pneg %p266
        $region42: #{tpu_custom_call.1} parent=11 // pred_check_branch
          %792 = sbr.rel (%p790) target = $region44
        $region43: #{tpu_custom_call.1} parent=11 // pred_region
          _
        $region44: #{tpu_custom_call.1} parent=11 // pred_fallthru
          _
        // Predicated region
        $region45: #{tpu_custom_call.1} parent=11 // pred_check
          %p793 = pneg %p287
        $region46: #{tpu_custom_call.1} parent=11 // pred_check_branch
          %795 = sbr.rel (%p793) target = $region48
        $region47: #{tpu_custom_call.1} parent=11 // pred_region
          _
        $region48: #{tpu_custom_call.1} parent=11 // pred_fallthru
          _
        // Predicated region
        $region49: #{tpu_custom_call.1} parent=11 // pred_check
          %p796 = pneg %p308
        $region50: #{tpu_custom_call.1} parent=11 // pred_check_branch
          %798 = sbr.rel (%p796) target = $region52
        $region51: #{tpu_custom_call.1} parent=11 // pred_region
          _
        $region52: #{tpu_custom_call.1} parent=11 // pred_fallthru
          _
        // Predicated region
        $region53: #{tpu_custom_call.1} parent=11 // pred_check
          %p799 = pneg %p329
        $region54: #{tpu_custom_call.1} parent=11 // pred_check_branch
          %801 = sbr.rel (%p799) target = $region56
        $region55: #{tpu_custom_call.1} parent=11 // pred_region
          _
        $region56: #{tpu_custom_call.1} parent=11 // pred_fallthru
          _
        // Predicated region
        $region57: #{tpu_custom_call.1} parent=11 // pred_check
          %p802 = pneg %p350
        $region58: #{tpu_custom_call.1} parent=11 // pred_check_branch
          %804 = sbr.rel (%p802) target = $region60
        $region59: #{tpu_custom_call.1} parent=11 // pred_region
          _
        $region60: #{tpu_custom_call.1} parent=11 // pred_fallthru
          _
        // Predicated region
        $region61: #{tpu_custom_call.1} parent=11 // pred_check
          %p805 = pneg %p371
        $region62: #{tpu_custom_call.1} parent=11 // pred_check_branch
          %807 = sbr.rel (%p805) target = $region64
        $region63: #{tpu_custom_call.1} parent=11 // pred_region
          _
        $region64: #{tpu_custom_call.1} parent=11 // pred_fallthru
          _
        // Predicated region
        $region65: #{tpu_custom_call.1} parent=11 // pred_check
          %p808 = pneg %p392
        $region66: #{tpu_custom_call.1} parent=11 // pred_check_branch
          %810 = sbr.rel (%p808) target = $region68
        $region67: #{tpu_custom_call.1} parent=11 // pred_region
          _
        $region68: #{tpu_custom_call.1} parent=11 // pred_fallthru
          _
        // Predicated region
        $region69: #{tpu_custom_call.1} parent=11 // pred_check
          %p811 = pneg %p413
        $region70: #{tpu_custom_call.1} parent=11 // pred_check_branch
          %813 = sbr.rel (%p811) target = $region72
        $region71: #{tpu_custom_call.1} parent=11 // pred_region
          _
        $region72: #{tpu_custom_call.1} parent=11 // pred_fallthru
          _
        // Predicated region
        $region73: #{tpu_custom_call.1} parent=11 // pred_check
          %p814 = pneg %p434
        $region74: #{tpu_custom_call.1} parent=11 // pred_check_branch
          %816 = sbr.rel (%p814) target = $region76
        $region75: #{tpu_custom_call.1} parent=11 // pred_region
          _
        $region76: #{tpu_custom_call.1} parent=11 // pred_fallthru
          _
        // Predicated region
        $region77: #{tpu_custom_call.1} parent=11 // pred_check
          %p817 = pneg %p455
        $region78: #{tpu_custom_call.1} parent=11 // pred_check_branch
          %819 = sbr.rel (%p817) target = $region80
        $region79: #{tpu_custom_call.1} parent=11 // pred_region
          _
        $region80: #{tpu_custom_call.1} parent=11 // pred_fallthru
          _
        // Predicated region
        $region81: #{tpu_custom_call.1} parent=11 // pred_check
          %p820 = pneg %p476
        $region82: #{tpu_custom_call.1} parent=11 // pred_check_branch
          %822 = sbr.rel (%p820) target = $region84
        $region83: #{tpu_custom_call.1} parent=11 // pred_region
          _
        $region84: #{tpu_custom_call.1} parent=11 // pred_fallthru
          _
        // Predicated region
        $region85: #{tpu_custom_call.1} parent=11 // pred_check
          %p823 = pneg %p497
        $region86: #{tpu_custom_call.1} parent=11 // pred_check_branch
          %825 = sbr.rel (%p823) target = $region88
        $region87: #{tpu_custom_call.1} parent=11 // pred_region
          _
        $region88: #{tpu_custom_call.1} parent=11 // pred_fallthru
          _
        // Predicated region
        $region89: #{tpu_custom_call.1} parent=11 // pred_check
          %p826 = pneg %p518
        $region90: #{tpu_custom_call.1} parent=11 // pred_check_branch
          %828 = sbr.rel (%p826) target = $region92
        $region91: #{tpu_custom_call.1} parent=11 // pred_region
          _
        $region92: #{tpu_custom_call.1} parent=11 // pred_fallthru
          _
        // Predicated region
        $region93: #{tpu_custom_call.1} parent=11 // pred_check
          %p829 = pneg %p539
        $region94: #{tpu_custom_call.1} parent=11 // pred_check_branch
          %831 = sbr.rel (%p829) target = $region96
        $region95: #{tpu_custom_call.1} parent=11 // pred_region
          _
        $region96: #{tpu_custom_call.1} parent=11 // pred_fallthru
          _
        // Predicated region
        $region97: #{tpu_custom_call.1} parent=11 // pred_check
          %p832 = pneg %p560
        $region98: #{tpu_custom_call.1} parent=11 // pred_check_branch
          %834 = sbr.rel (%p832) target = $region100
        $region99: #{tpu_custom_call.1} parent=11 // pred_region
          _
        $region100: #{tpu_custom_call.1} parent=11 // pred_fallthru
          _
        // Predicated region
        $region101: #{tpu_custom_call.1} parent=11 // pred_check
          %p835 = pneg %p581
        $region102: #{tpu_custom_call.1} parent=11 // pred_check_branch
          %837 = sbr.rel (%p835) target = $region104
        $region103: #{tpu_custom_call.1} parent=11 // pred_region
          _
        $region104: #{tpu_custom_call.1} parent=11 // pred_fallthru
          _
        // Predicated region
        $region105: #{tpu_custom_call.1} parent=11 // pred_check
          %p838 = pneg %p602
        $region106: #{tpu_custom_call.1} parent=11 // pred_check_branch
          %840 = sbr.rel (%p838) target = $region108
        $region107: #{tpu_custom_call.1} parent=11 // pred_region
          _
        $region108: #{tpu_custom_call.1} parent=11 // pred_fallthru
          _
        // Predicated region
        $region109: #{tpu_custom_call.1} parent=11 // pred_check
          %p841 = pneg %p623
        $region110: #{tpu_custom_call.1} parent=11 // pred_check_branch
          %843 = sbr.rel (%p841) target = $region112
        $region111: #{tpu_custom_call.1} parent=11 // pred_region
          _
        $region112: #{tpu_custom_call.1} parent=11 // pred_fallthru
          _
        // Predicated region
        $region113: #{tpu_custom_call.1} parent=11 // pred_check
          %p844 = pneg %p644
        $region114: #{tpu_custom_call.1} parent=11 // pred_check_branch
          %846 = sbr.rel (%p844) target = $region116
        $region115: #{tpu_custom_call.1} parent=11 // pred_region
          _
        $region116: #{tpu_custom_call.1} parent=11 // pred_fallthru
          _
        // Predicated region
        $region117: #{tpu_custom_call.1} parent=11 // pred_check
          %p847 = pneg %p665
        $region118: #{tpu_custom_call.1} parent=11 // pred_check_branch
          %849 = sbr.rel (%p847) target = $region120
        $region119: #{tpu_custom_call.1} parent=11 // pred_region
          _
        $region120: #{tpu_custom_call.1} parent=11 // pred_fallthru
          _
        // Predicated region
        $region121: #{tpu_custom_call.1} parent=11 // pred_check
          %p850 = pneg %p686
        $region122: #{tpu_custom_call.1} parent=11 // pred_check_branch
          %852 = sbr.rel (%p850) target = $region124
        $region123: #{tpu_custom_call.1} parent=11 // pred_region
          _
        $region124: #{tpu_custom_call.1} parent=11 // pred_fallthru
          _
        // Predicated region
        $region125: #{tpu_custom_call.1} parent=11 // pred_check
          %p853 = pneg %p707
        $region126: #{tpu_custom_call.1} parent=11 // pred_check_branch
          %855 = sbr.rel (%p853) target = $region128
        $region127: #{tpu_custom_call.1} parent=11 // pred_region
          _
        $region128: #{tpu_custom_call.1} parent=11 // pred_fallthru
          _
        // Predicated region
        $region129: #{tpu_custom_call.1} parent=11 // pred_check
          %p856 = pneg %p728
        $region130: #{tpu_custom_call.1} parent=11 // pred_check_branch
          %858 = sbr.rel (%p856) target = $region132
        $region131: #{tpu_custom_call.1} parent=11 // pred_region
          _
        $region132: #{tpu_custom_call.1} parent=11 // pred_fallthru
          _
      $region12: #{tpu_custom_call.1} parent=5 // pred_fallthru
        _
      %p859 = scmp.lt.s32.totalorder %s72, 2
      // Predicated region
      $region133: #{tpu_custom_call.1} parent=5 // pred_check
        %p860 = pneg %p859
      $region134: #{tpu_custom_call.1} parent=5 // pred_check_branch
        %862 = sbr.rel (%p860) target = $region136
      $region135: #{tpu_custom_call.1} parent=5 // pred_region
        // Predicated region
        $region137: #{tpu_custom_call.1} parent=135 // pred_check
          %p863 = pneg %p92
        $region138: #{tpu_custom_call.1} parent=135 // pred_check_branch
          %865 = sbr.rel (%p863) target = $region140
        $region139: #{tpu_custom_call.1} parent=135 // pred_region
          %p866 = scmp.lt.s32.totalorder %s72, 1
          %s867 = scalar_select %p866, %s72, 1
          %s868 = smul.addr %s867, 8
          %s869 = scalar_lea.vmem %s1, %s868
        $region140: #{tpu_custom_call.1} parent=135 // pred_fallthru
          _
      $region136: #{tpu_custom_call.1} parent=5 // pred_fallthru
        _
      %p870 = scmp.le.s32.totalorder 1, %s72
      %p871 = scmp.lt.s32.totalorder %s72, 3
      %p872 = pnand %p870, %p871
      %p873 = pneg %p872
      // Predicated region
      $region141: #{tpu_custom_call.1} parent=5 // pred_check
        _
      $region142: #{tpu_custom_call.1} parent=5 // pred_check_branch
        %875 = sbr.rel (%p872) target = $region144
      $region143: #{tpu_custom_call.1} parent=5 // pred_region
        %s876 = ssub.s32 %s72, 1
        %p877 = scmp.lt.s32.totalorder %s77, 1
        %s878 = scalar_select %p877, %s77, 1
        %s879 = smul.addr %s878, 8
        %s880 = scalar_lea.vmem %s1, %s879
        %p881 = pneg %p98
        %p882 = pneg %p95
        %p883 = pneg %p119
        %p884 = pneg %p116
        %p885 = pneg %p140
        %p886 = pneg %p137
        %p887 = pneg %p161
        %p888 = pneg %p158
        %p889 = pneg %p182
        %p890 = pneg %p179
        %p891 = pneg %p203
        %p892 = pneg %p200
        %p893 = pneg %p224
        %p894 = pneg %p221
        %p895 = pneg %p245
        %p896 = pneg %p242
        %p897 = pneg %p266
        %p898 = pneg %p263
        %p899 = pneg %p287
        %p900 = pneg %p284
        %p901 = pneg %p308
        %p902 = pneg %p305
        %p903 = pneg %p329
        %p904 = pneg %p326
        %p905 = pneg %p350
        %p906 = pneg %p347
        %p907 = pneg %p371
        %p908 = pneg %p368
        %p909 = pneg %p392
        %p910 = pneg %p389
        %p911 = pneg %p413
        %p912 = pneg %p410
        %p913 = pneg %p434
        %p914 = pneg %p431
        %p915 = pneg %p455
        %p916 = pneg %p452
        %p917 = pneg %p476
        %p918 = pneg %p473
        %p919 = pneg %p497
        %p920 = pneg %p494
        %p921 = pneg %p518
        %p922 = pneg %p515
        %p923 = pneg %p539
        %p924 = pneg %p536
        %p925 = pneg %p560
        %p926 = pneg %p557
        %p927 = pneg %p581
        %p928 = pneg %p578
        %p929 = pneg %p602
        %p930 = pneg %p599
        %p931 = pneg %p623
        %p932 = pneg %p620
        %p933 = pneg %p644
        %p934 = pneg %p641
        %p935 = pneg %p665
        %p936 = pneg %p662
        %p937 = pneg %p686
        %p938 = pneg %p683
        %p939 = pneg %p707
        %p940 = pneg %p704
        %p941 = pneg %p728
        %p942 = pneg %p725
        %p943 = pneg %p754
        %p944 = pneg %p751
        %s945 = sand.u32 %s741, 1
        %s946 = scalar_lea.sflag [#allocation3], %s945
        %s947 = sand.u32 %s741, 1
        %s948 = scalar_lea.vmem [#allocation2], %s947
        %p949 = scmp.lt.s32.totalorder %s77, 1
        %s950 = scalar_select %p949, %s77, 1
        %s951 = smul.addr %s950, 8
        %s952 = scalar_lea.vmem %s1, %s951
        %v953 = vld [vmem:[%s952] sm:$0xff]
        %v954 = vld [vmem:[%s5] sm:$0xff]
        %v955 = vld [vmem:[%s5 + $0x8] sm:$0xff]
        %v956 = vld [vmem:[%s5 + $0x10] sm:$0xff]
        %v957 = vld [vmem:[%s5 + $0x18] sm:$0xff]
        %v958 = vld [vmem:[%s5 + $0x20] sm:$0xff]
        %v959 = vld [vmem:[%s5 + $0x28] sm:$0xff]
        %v960 = vld [vmem:[%s5 + $0x30] sm:$0xff]
        %v961 = vld [vmem:[%s5 + $0x38] sm:$0xff]
        %v962 = vld [vmem:[%s3] sm:$0xff]
        %vm963 = vcmask 523264
        %v965 = vsel %vm963, %v953, 0
        %967 = vmatprep.subr.mxu0 0.0
        %968 = vmatpush1.msra.mxu0 %v954
        %969 = vmatprep.subr.mxu0 0.0
        %970 = vmatpush1.msra.mxu0 %v955
        %971 = vmatprep.subr.mxu0 0.0
        %972 = vmatpush1.msra.mxu0 %v956
        %973 = vmatprep.subr.mxu0 0.0
        %974 = vmatpush1.msra.mxu0 %v957
        %975 = vmatprep.subr.mxu0 0.0
        %976 = vmatpush1.msra.mxu0 %v958
        %977 = vmatprep.subr.mxu0 0.0
        %978 = vmatpush1.msra.mxu0 %v959
        %979 = vmatprep.subr.mxu0 0.0
        %980 = vmatpush1.msra.mxu0 %v960
        %981 = vmatprep.subr.mxu0 0.0
        %982 = vmatpush1.msra.mxu0 %v961
        %983 = vmatprep.subr.mxu0 0.0
        %984 = vmatpush1.msra.mxu0 0.0
        %985 = vmatprep.subr.mxu0 0.0
        %986 = vmatpush1.msra.mxu0 0.0
        %987 = vmatprep.subr.mxu0 0.0
        %988 = vmatpush1.msra.mxu0 0.0
        %989 = vmatprep.subr.mxu0 0.0
        %990 = vmatpush1.msra.mxu0 0.0
        %991 = vmatprep.subr.mxu0 0.0
        %992 = vmatpush1.msra.mxu0 0.0
        %993 = vmatprep.subr.mxu0 0.0
        %994 = vmatpush1.msra.mxu0 0.0
        %995 = vmatprep.subr.mxu0 0.0
        %996 = vmatpush1.msra.mxu0 0.0
        %997 = vmatprep.subr.mxu0 0.0
        %998 = vmatpush1.msra.mxu0 0.0
        %999 = vmatprep.subr.mxu0 0.0
        %1000 = vmatpush1.msra.mxu0 0.0
        %1001 = vmatprep.subr.mxu0 0.0
        %1002 = vmatpush1.msra.mxu0 0.0
        %1003 = vmatprep.subr.mxu0 0.0
        %1004 = vmatpush1.msra.mxu0 0.0
        %1005 = vmatprep.subr.mxu0 0.0
        %1006 = vmatpush1.msra.mxu0 0.0
        %1007 = vmatprep.subr.mxu0 0.0
        %1008 = vmatpush1.msra.mxu0 0.0
        %1009 = vmatprep.subr.mxu0 0.0
        %1010 = vmatpush1.msra.mxu0 0.0
        %1011 = vmatprep.subr.mxu0 0.0
        %1012 = vmatpush1.msra.mxu0 0.0
        %1013 = vmatprep.subr.mxu0 0.0
        %1014 = vmatpush1.msra.mxu0 0.0
        %1015 = vmatprep.subr.mxu0 0.0
        %1016 = vmatpush1.msra.mxu0 0.0
        %1017 = vmatprep.subr.mxu0 0.0
        %1018 = vmatpush1.msra.mxu0 0.0
        %1019 = vmatprep.subr.mxu0 0.0
        %1020 = vmatpush1.msra.mxu0 0.0
        %1021 = vmatprep.subr.mxu0 0.0
        %1022 = vmatpush1.msra.mxu0 0.0
        %1023 = vmatprep.subr.mxu0 0.0
        %1024 = vmatpush1.msra.mxu0 0.0
        %1025 = vmatprep.subr.mxu0 0.0
        %1026 = vmatpush1.msra.mxu0 0.0
        %1027 = vmatprep.subr.mxu0 0.0
        %1028 = vmatpush1.msra.mxu0 0.0
        %1029 = vmatprep.subr.mxu0 0.0
        %1030 = vmatpush1.msra.mxu0 0.0
        %1031 = vmatprep.mubr.f32.mxu0 0.0
        %1032 = vmatmul.mubr.f32.gmra.mrb[0].mxu0 %v965
        %v1033 = vpop.f32.mrb[0].mxu0
        %v1034 = vadd.f32 %v962, %v1033
        %v1035 = vpop.f32.mrb[0].mxu0
        %1036 = vdwg.mxu0
        %v1037 = vld [vmem:[%s7] sm:$0x1]
        %v1038 = vld [vmem:[%s9] sm:$0x1]
        %v1039 = vld [vmem:[%s11] sm:$0xff]
        %v1040 = vld [vmem:[%s11 + $0x8] sm:$0xff]
        %v1041 = vld [vmem:[%s11 + $0x10] sm:$0xff]
        %v1042 = vld [vmem:[%s11 + $0x18] sm:$0xff]
        %v1043 = vld [vmem:[%s13] sm:$0x1]
        %v1044 = vld [vmem:[%s15] sm:$0xff]
        %v1045 = vld [vmem:[%s15 + $0x8] sm:$0xff]
        %v1046 = vld [vmem:[%s15 + $0x10] sm:$0xff]
        %v1047 = vld [vmem:[%s15 + $0x18] sm:$0xff]
        %v1048 = vld [vmem:[%s17] sm:$0x1]
        %v1049 = vld [vmem:[%s19] sm:$0x1]
        %v1050 = vld [vmem:[%s21] sm:$0x1]
        %v1051 = vld [vmem:[%s23] sm:$0xff]
        %v1052 = vld [vmem:[%s23 + $0x8] sm:$0xff]
        %v1053 = vld [vmem:[%s23 + $0x10] sm:$0xff]
        %v1054 = vld [vmem:[%s23 + $0x18] sm:$0xff]
        %v1055 = vld [vmem:[%s25] sm:$0x1]
        %v1056 = vld [vmem:[%s27] sm:$0xff]
        %v1057 = vld [vmem:[%s27 + $0x8] sm:$0xff]
        %v1058 = vld [vmem:[%s27 + $0x10] sm:$0xff]
        %v1059 = vld [vmem:[%s27 + $0x18] sm:$0xff]
        %v1060 = vld [vmem:[%s27 + $0x20] sm:$0xff]
        %v1061 = vld [vmem:[%s27 + $0x28] sm:$0xff]
        %v1062 = vld [vmem:[%s27 + $0x30] sm:$0xff]
        %v1063 = vld [vmem:[%s27 + $0x38] sm:$0xff]
        %v1064 = vld [vmem:[%s27 + $0x40] sm:$0xff]
        %v1065 = vld [vmem:[%s27 + $0x48] sm:$0xff]
        %v1066 = vld [vmem:[%s27 + $0x50] sm:$0xff]
        %v1067 = vld [vmem:[%s27 + $0x58] sm:$0xff]
        %v1068 = vld [vmem:[%s27 + $0x60] sm:$0xff]
        %v1069 = vld [vmem:[%s27 + $0x68] sm:$0xff]
        %v1070 = vld [vmem:[%s27 + $0x70] sm:$0xff]
        %v1071 = vld [vmem:[%s27 + $0x78] sm:$0xff]
        %v1072 = vld [vmem:[%s29] sm:$0x1]
        %vm1073 = vcmask 261120
        %v1074 = vsel %vm1073, %v1034, 0.0
        %1075 = vadd.xlane.f32.xlu0 %v1074
        %v1076 = vpop.xlane.xlu0 %1075
        %v1077 = vrcp.pop 32.0
        %v1078 = vmul.f32 %v1076, %v1077
        %v1079 = vsub.f32 %v1034, %v1078
        %v1080 = vmul.f32 %v1079, %v1079
        %v1081 = vsel %vm1073, %v1080, 0.0
        %1082 = vadd.xlane.f32.xlu0 %v1081
        %v1083 = vpop.xlane.xlu0 %1082
        %v1084 = vmul.f32 %v1083, %v1077
        %v1085 = vadd.f32 %v1084, 1e-05
        %v1086 = vrsqrt.pop %v1085
        %v1087 = vmul.f32 %v1079, %v1086
        %v1089 = vlaneseq
        %v1090 = vshrl.u32 %v1089, 7
        %v1091 = vsub.s32 0, %v1090
        %v1092 = vrot.slane %v1037, %v1091
        %v1094 = vmul.f32 %v1087, %v1092
        %v1096 = vlaneseq
        %v1097 = vshrl.u32 %v1096, 7
        %v1098 = vsub.s32 0, %v1097
        %v1099 = vrot.slane %v1038, %v1098
        %v1101 = vadd.f32 %v1094, %v1099
        %v1103 = vlaneseq
        %v1104 = vshrl.u32 %v1103, 7
        %v1105 = vsub.s32 0, %v1104
        %v1106 = vrot.slane %v1043, %v1105
        %v1109 = vsel %vm1073, %v1101, 0
        %1111 = vmatprep.subr.mxu0 0.0
        %1112 = vmatpush1.msra.mxu0 %v1039
        %1113 = vmatprep.subr.mxu0 0.0
        %1114 = vmatpush1.msra.mxu0 %v1040
        %1115 = vmatprep.subr.mxu0 0.0
        %1116 = vmatpush1.msra.mxu0 %v1041
        %1117 = vmatprep.subr.mxu0 0.0
        %1118 = vmatpush1.msra.mxu0 %v1042
        %1119 = vmatprep.subr.mxu0 0.0
        %1120 = vmatpush1.msra.mxu0 0.0
        %1121 = vmatprep.subr.mxu0 0.0
        %1122 = vmatpush1.msra.mxu0 0.0
        %1123 = vmatprep.subr.mxu0 0.0
        %1124 = vmatpush1.msra.mxu0 0.0
        %1125 = vmatprep.subr.mxu0 0.0
        %1126 = vmatpush1.msra.mxu0 0.0
        %1127 = vmatprep.subr.mxu0 0.0
        %1128 = vmatpush1.msra.mxu0 0.0
        %1129 = vmatprep.subr.mxu0 0.0
        %1130 = vmatpush1.msra.mxu0 0.0
        %1131 = vmatprep.subr.mxu0 0.0
        %1132 = vmatpush1.msra.mxu0 0.0
        %1133 = vmatprep.subr.mxu0 0.0
        %1134 = vmatpush1.msra.mxu0 0.0
        %1135 = vmatprep.subr.mxu0 0.0
        %1136 = vmatpush1.msra.mxu0 0.0
        %1137 = vmatprep.subr.mxu0 0.0
        %1138 = vmatpush1.msra.mxu0 0.0
        %1139 = vmatprep.subr.mxu0 0.0
        %1140 = vmatpush1.msra.mxu0 0.0
        %1141 = vmatprep.subr.mxu0 0.0
        %1142 = vmatpush1.msra.mxu0 0.0
        %1143 = vmatprep.subr.mxu0 0.0
        %1144 = vmatpush1.msra.mxu0 0.0
        %1145 = vmatprep.subr.mxu0 0.0
        %1146 = vmatpush1.msra.mxu0 0.0
        %1147 = vmatprep.subr.mxu0 0.0
        %1148 = vmatpush1.msra.mxu0 0.0
        %1149 = vmatprep.subr.mxu0 0.0
        %1150 = vmatpush1.msra.mxu0 0.0
        %1151 = vmatprep.subr.mxu0 0.0
        %1152 = vmatpush1.msra.mxu0 0.0
        %1153 = vmatprep.subr.mxu0 0.0
        %1154 = vmatpush1.msra.mxu0 0.0
        %1155 = vmatprep.subr.mxu0 0.0
        %1156 = vmatpush1.msra.mxu0 0.0
        %1157 = vmatprep.subr.mxu0 0.0
        %1158 = vmatpush1.msra.mxu0 0.0
        %1159 = vmatprep.subr.mxu0 0.0
        %1160 = vmatpush1.msra.mxu0 0.0
        %1161 = vmatprep.subr.mxu0 0.0
        %1162 = vmatpush1.msra.mxu0 0.0
        %1163 = vmatprep.subr.mxu0 0.0
        %1164 = vmatpush1.msra.mxu0 0.0
        %1165 = vmatprep.subr.mxu0 0.0
        %1166 = vmatpush1.msra.mxu0 0.0
        %1167 = vmatprep.subr.mxu0 0.0
        %1168 = vmatpush1.msra.mxu0 0.0
        %1169 = vmatprep.subr.mxu0 0.0
        %1170 = vmatpush1.msra.mxu0 0.0
        %1171 = vmatprep.subr.mxu0 0.0
        %1172 = vmatpush1.msra.mxu0 0.0
        %1173 = vmatprep.subr.mxu0 0.0
        %1174 = vmatpush1.msra.mxu0 0.0
        %1175 = vmatprep.mubr.f32.mxu0 0.0
        %1176 = vmatmul.mubr.f32.gmra.mrb[0].mxu0 %v1109
        %v1177 = vpop.f32.mrb[0].mxu0
        %v1178 = vadd.f32 %v1106, %v1177
        %v1179 = vpop.f32.mrb[0].mxu0
        %1180 = vdwg.mxu0
        %v1181 = vmul.f32 %v1178, 0.35355338
        %1183 = vrot.lane.b32.xlu0 %v1178, 96
        %v1184 = vpop.permute.xlu0 %1183
        %vm1185 = vcmask 64512
        %v1187 = vsel %vm1185, %v1181, 0
        %v1189 = vsel %vm1185, %v1184, 0
        %1191 = vmatprep.subr.mxu0 0.0
        %1192 = vmatpush1.xpose.msra.mxu0 %v1189
        %1193 = vmatprep.subr.mxu0 0.0
        %1194 = vmatpush1.xpose.msra.mxu0 0.0
        %1195 = vmatprep.subr.mxu0 0.0
        %1196 = vmatpush1.xpose.msra.mxu0 0.0
        %1197 = vmatprep.subr.mxu0 0.0
        %1198 = vmatpush1.xpose.msra.mxu0 0.0
        %1199 = vmatprep.subr.mxu0 0.0
        %1200 = vmatpush1.xpose.msra.mxu0 0.0
        %1201 = vmatprep.subr.mxu0 0.0
        %1202 = vmatpush1.xpose.msra.mxu0 0.0
        %1203 = vmatprep.subr.mxu0 0.0
        %1204 = vmatpush1.xpose.msra.mxu0 0.0
        %1205 = vmatprep.subr.mxu0 0.0
        %1206 = vmatpush1.xpose.msra.mxu0 0.0
        %1207 = vmatprep.subr.mxu0 0.0
        %1208 = vmatpush1.xpose.msra.mxu0 0.0
        %1209 = vmatprep.subr.mxu0 0.0
        %1210 = vmatpush1.xpose.msra.mxu0 0.0
        %1211 = vmatprep.subr.mxu0 0.0
        %1212 = vmatpush1.xpose.msra.mxu0 0.0
        %1213 = vmatprep.subr.mxu0 0.0
        %1214 = vmatpush1.xpose.msra.mxu0 0.0
        %1215 = vmatprep.subr.mxu0 0.0
        %1216 = vmatpush1.xpose.msra.mxu0 0.0
        %1217 = vmatprep.subr.mxu0 0.0
        %1218 = vmatpush1.xpose.msra.mxu0 0.0
        %1219 = vmatprep.subr.mxu0 0.0
        %1220 = vmatpush1.xpose.msra.mxu0 0.0
        %1221 = vmatprep.subr.mxu0 0.0
        %1222 = vmatpush1.xpose.msra.mxu0 0.0
        %1223 = vmatprep.subr.mxu0 0.0
        %1224 = vmatpush1.xpose.msra.mxu0 0.0
        %1225 = vmatprep.subr.mxu0 0.0
        %1226 = vmatpush1.xpose.msra.mxu0 0.0
        %1227 = vmatprep.subr.mxu0 0.0
        %1228 = vmatpush1.xpose.msra.mxu0 0.0
        %1229 = vmatprep.subr.mxu0 0.0
        %1230 = vmatpush1.xpose.msra.mxu0 0.0
        %1231 = vmatprep.subr.mxu0 0.0
        %1232 = vmatpush1.xpose.msra.mxu0 0.0
        %1233 = vmatprep.subr.mxu0 0.0
        %1234 = vmatpush1.xpose.msra.mxu0 0.0
        %1235 = vmatprep.subr.mxu0 0.0
        %1236 = vmatpush1.xpose.msra.mxu0 0.0
        %1237 = vmatprep.subr.mxu0 0.0
        %1238 = vmatpush1.xpose.msra.mxu0 0.0
        %1239 = vmatprep.subr.mxu0 0.0
        %1240 = vmatpush1.xpose.msra.mxu0 0.0
        %1241 = vmatprep.subr.mxu0 0.0
        %1242 = vmatpush1.xpose.msra.mxu0 0.0
        %1243 = vmatprep.subr.mxu0 0.0
        %1244 = vmatpush1.xpose.msra.mxu0 0.0
        %1245 = vmatprep.subr.mxu0 0.0
        %1246 = vmatpush1.xpose.msra.mxu0 0.0
        %1247 = vmatprep.subr.mxu0 0.0
        %1248 = vmatpush1.xpose.msra.mxu0 0.0
        %1249 = vmatprep.subr.mxu0 0.0
        %1250 = vmatpush1.xpose.msra.mxu0 0.0
        %1251 = vmatprep.subr.mxu0 0.0
        %1252 = vmatpush1.xpose.msra.mxu0 0.0
        %1253 = vmatprep.subr.mxu0 0.0
        %1254 = vmatpush1.xpose.msra.mxu0 0.0
        %1255 = vmatprep.mubr.f32.mxu0 0.0
        %1256 = vmatmul.mubr.f32.gmra.mrb[0].mxu0 %v1187
        %v1257 = vpop.f32.mrb[0].mxu0
        %v1258 = vadd.f32 0.0, %v1257
        %v1259 = vpop.f32.mrb[0].mxu0
        %1260 = vdwg.mxu0
        %v1261 = vsel %vm1185, %v1258, -inf
        %1262 = vmax.xlane.f32.xlu0 %v1261
        %v1263 = vpop.xlane.xlu0 %1262
        %v1264 = vsub.f32 %v1258, %v1263
        %v1265 = vmul.f32 %v1264, 1.442695
        %v1266 = vpow.pop %v1265
        %v1267 = vsel %vm1185, %v1266, 0.0
        %1268 = vadd.xlane.f32.xlu0 %v1267
        %v1269 = vpop.xlane.xlu0 %1268
        %v1270 = vrcp.pop %v1269
        %v1271 = vmul.f32 %v1266, %v1270
        %1272 = vrot.lane.b32.xlu0 %v1178, 64
        %v1273 = vpop.permute.xlu0 %1272
        %v1276 = vsel %vm1185, %v1271, 0
        %1278 = vmatprep.subr.mxu0 0.0
        %1279 = vmatpush1.msra.mxu0 %v1273
        %1280 = vmatprep.subr.mxu0 0.0
        %1281 = vmatpush1.msra.mxu0 0.0
        %1282 = vmatprep.subr.mxu0 0.0
        %1283 = vmatpush1.msra.mxu0 0.0
        %1284 = vmatprep.subr.mxu0 0.0
        %1285 = vmatpush1.msra.mxu0 0.0
        %1286 = vmatprep.subr.mxu0 0.0
        %1287 = vmatpush1.msra.mxu0 0.0
        %1288 = vmatprep.subr.mxu0 0.0
        %1289 = vmatpush1.msra.mxu0 0.0
        %1290 = vmatprep.subr.mxu0 0.0
        %1291 = vmatpush1.msra.mxu0 0.0
        %1292 = vmatprep.subr.mxu0 0.0
        %1293 = vmatpush1.msra.mxu0 0.0
        %1294 = vmatprep.subr.mxu0 0.0
        %1295 = vmatpush1.msra.mxu0 0.0
        %1296 = vmatprep.subr.mxu0 0.0
        %1297 = vmatpush1.msra.mxu0 0.0
        %1298 = vmatprep.subr.mxu0 0.0
        %1299 = vmatpush1.msra.mxu0 0.0
        %1300 = vmatprep.subr.mxu0 0.0
        %1301 = vmatpush1.msra.mxu0 0.0
        %1302 = vmatprep.subr.mxu0 0.0
        %1303 = vmatpush1.msra.mxu0 0.0
        %1304 = vmatprep.subr.mxu0 0.0
        %1305 = vmatpush1.msra.mxu0 0.0
        %1306 = vmatprep.subr.mxu0 0.0
        %1307 = vmatpush1.msra.mxu0 0.0
        %1308 = vmatprep.subr.mxu0 0.0
        %1309 = vmatpush1.msra.mxu0 0.0
        %1310 = vmatprep.subr.mxu0 0.0
        %1311 = vmatpush1.msra.mxu0 0.0
        %1312 = vmatprep.subr.mxu0 0.0
        %1313 = vmatpush1.msra.mxu0 0.0
        %1314 = vmatprep.subr.mxu0 0.0
        %1315 = vmatpush1.msra.mxu0 0.0
        %1316 = vmatprep.subr.mxu0 0.0
        %1317 = vmatpush1.msra.mxu0 0.0
        %1318 = vmatprep.subr.mxu0 0.0
        %1319 = vmatpush1.msra.mxu0 0.0
        %1320 = vmatprep.subr.mxu0 0.0
        %1321 = vmatpush1.msra.mxu0 0.0
        %1322 = vmatprep.subr.mxu0 0.0
        %1323 = vmatpush1.msra.mxu0 0.0
        %1324 = vmatprep.subr.mxu0 0.0
        %1325 = vmatpush1.msra.mxu0 0.0
        %1326 = vmatprep.subr.mxu0 0.0
        %1327 = vmatpush1.msra.mxu0 0.0
        %1328 = vmatprep.subr.mxu0 0.0
        %1329 = vmatpush1.msra.mxu0 0.0
        %1330 = vmatprep.subr.mxu0 0.0
        %1331 = vmatpush1.msra.mxu0 0.0
        %1332 = vmatprep.subr.mxu0 0.0
        %1333 = vmatpush1.msra.mxu0 0.0
        %1334 = vmatprep.subr.mxu0 0.0
        %1335 = vmatpush1.msra.mxu0 0.0
        %1336 = vmatprep.subr.mxu0 0.0
        %1337 = vmatpush1.msra.mxu0 0.0
        %1338 = vmatprep.subr.mxu0 0.0
        %1339 = vmatpush1.msra.mxu0 0.0
        %1340 = vmatprep.subr.mxu0 0.0
        %1341 = vmatpush1.msra.mxu0 0.0
        %1342 = vmatprep.mubr.f32.mxu0 0.0
        %1343 = vmatmul.mubr.f32.gmra.mrb[0].mxu0 %v1276
        %v1344 = vpop.f32.mrb[0].mxu0
        %v1345 = vadd.f32 0.0, %v1344
        %v1346 = vpop.f32.mrb[0].mxu0
        %1347 = vdwg.mxu0
        %1348 = vrot.lane.b32.xlu0 %v1181, 120
        %v1349 = vpop.permute.xlu0 %1348
        %1350 = vrot.lane.b32.xlu0 %v1178, 88
        %v1351 = vpop.permute.xlu0 %1350
        %v1352 = vsel %vm1185, %v1349, 0
        %v1354 = vsel %vm1185, %v1351, 0
        %1356 = vmatprep.subr.mxu0 0.0
        %1357 = vmatpush1.xpose.msra.mxu0 %v1354
        %1358 = vmatprep.subr.mxu0 0.0
        %1359 = vmatpush1.xpose.msra.mxu0 0.0
        %1360 = vmatprep.subr.mxu0 0.0
        %1361 = vmatpush1.xpose.msra.mxu0 0.0
        %1362 = vmatprep.subr.mxu0 0.0
        %1363 = vmatpush1.xpose.msra.mxu0 0.0
        %1364 = vmatprep.subr.mxu0 0.0
        %1365 = vmatpush1.xpose.msra.mxu0 0.0
        %1366 = vmatprep.subr.mxu0 0.0
        %1367 = vmatpush1.xpose.msra.mxu0 0.0
        %1368 = vmatprep.subr.mxu0 0.0
        %1369 = vmatpush1.xpose.msra.mxu0 0.0
        %1370 = vmatprep.subr.mxu0 0.0
        %1371 = vmatpush1.xpose.msra.mxu0 0.0
        %1372 = vmatprep.subr.mxu0 0.0
        %1373 = vmatpush1.xpose.msra.mxu0 0.0
        %1374 = vmatprep.subr.mxu0 0.0
        %1375 = vmatpush1.xpose.msra.mxu0 0.0
        %1376 = vmatprep.subr.mxu0 0.0
        %1377 = vmatpush1.xpose.msra.mxu0 0.0
        %1378 = vmatprep.subr.mxu0 0.0
        %1379 = vmatpush1.xpose.msra.mxu0 0.0
        %1380 = vmatprep.subr.mxu0 0.0
        %1381 = vmatpush1.xpose.msra.mxu0 0.0
        %1382 = vmatprep.subr.mxu0 0.0
        %1383 = vmatpush1.xpose.msra.mxu0 0.0
        %1384 = vmatprep.subr.mxu0 0.0
        %1385 = vmatpush1.xpose.msra.mxu0 0.0
        %1386 = vmatprep.subr.mxu0 0.0
        %1387 = vmatpush1.xpose.msra.mxu0 0.0
        %1388 = vmatprep.subr.mxu0 0.0
        %1389 = vmatpush1.xpose.msra.mxu0 0.0
        %1390 = vmatprep.subr.mxu0 0.0
        %1391 = vmatpush1.xpose.msra.mxu0 0.0
        %1392 = vmatprep.subr.mxu0 0.0
        %1393 = vmatpush1.xpose.msra.mxu0 0.0
        %1394 = vmatprep.subr.mxu0 0.0
        %1395 = vmatpush1.xpose.msra.mxu0 0.0
        %1396 = vmatprep.subr.mxu0 0.0
        %1397 = vmatpush1.xpose.msra.mxu0 0.0
        %1398 = vmatprep.subr.mxu0 0.0
        %1399 = vmatpush1.xpose.msra.mxu0 0.0
        %1400 = vmatprep.subr.mxu0 0.0
        %1401 = vmatpush1.xpose.msra.mxu0 0.0
        %1402 = vmatprep.subr.mxu0 0.0
        %1403 = vmatpush1.xpose.msra.mxu0 0.0
        %1404 = vmatprep.subr.mxu0 0.0
        %1405 = vmatpush1.xpose.msra.mxu0 0.0
        %1406 = vmatprep.subr.mxu0 0.0
        %1407 = vmatpush1.xpose.msra.mxu0 0.0
        %1408 = vmatprep.subr.mxu0 0.0
        %1409 = vmatpush1.xpose.msra.mxu0 0.0
        %1410 = vmatprep.subr.mxu0 0.0
        %1411 = vmatpush1.xpose.msra.mxu0 0.0
        %1412 = vmatprep.subr.mxu0 0.0
        %1413 = vmatpush1.xpose.msra.mxu0 0.0
        %1414 = vmatprep.subr.mxu0 0.0
        %1415 = vmatpush1.xpose.msra.mxu0 0.0
        %1416 = vmatprep.subr.mxu0 0.0
        %1417 = vmatpush1.xpose.msra.mxu0 0.0
        %1418 = vmatprep.subr.mxu0 0.0
        %1419 = vmatpush1.xpose.msra.mxu0 0.0
        %1420 = vmatprep.mubr.f32.mxu0 0.0
        %1421 = vmatmul.mubr.f32.gmra.mrb[0].mxu0 %v1352
        %v1422 = vpop.f32.mrb[0].mxu0
        %v1423 = vadd.f32 0.0, %v1422
        %v1424 = vpop.f32.mrb[0].mxu0
        %1425 = vdwg.mxu0
        %v1426 = vsel %vm1185, %v1423, -inf
        %1427 = vmax.xlane.f32.xlu0 %v1426
        %v1428 = vpop.xlane.xlu0 %1427
        %v1429 = vsub.f32 %v1423, %v1428
        %v1430 = vmul.f32 %v1429, 1.442695
        %v1431 = vpow.pop %v1430
        %v1432 = vsel %vm1185, %v1431, 0.0
        %1433 = vadd.xlane.f32.xlu0 %v1432
        %v1434 = vpop.xlane.xlu0 %1433
        %v1435 = vrcp.pop %v1434
        %v1436 = vmul.f32 %v1431, %v1435
        %1437 = vrot.lane.b32.xlu0 %v1178, 56
        %v1438 = vpop.permute.xlu0 %1437
        %v1441 = vsel %vm1185, %v1436, 0
        %1443 = vmatprep.subr.mxu0 0.0
        %1444 = vmatpush1.msra.mxu0 %v1438
        %1445 = vmatprep.subr.mxu0 0.0
        %1446 = vmatpush1.msra.mxu0 0.0
        %1447 = vmatprep.subr.mxu0 0.0
        %1448 = vmatpush1.msra.mxu0 0.0
        %1449 = vmatprep.subr.mxu0 0.0
        %1450 = vmatpush1.msra.mxu0 0.0
        %1451 = vmatprep.subr.mxu0 0.0
        %1452 = vmatpush1.msra.mxu0 0.0
        %1453 = vmatprep.subr.mxu0 0.0
        %1454 = vmatpush1.msra.mxu0 0.0
        %1455 = vmatprep.subr.mxu0 0.0
        %1456 = vmatpush1.msra.mxu0 0.0
        %1457 = vmatprep.subr.mxu0 0.0
        %1458 = vmatpush1.msra.mxu0 0.0
        %1459 = vmatprep.subr.mxu0 0.0
        %1460 = vmatpush1.msra.mxu0 0.0
        %1461 = vmatprep.subr.mxu0 0.0
        %1462 = vmatpush1.msra.mxu0 0.0
        %1463 = vmatprep.subr.mxu0 0.0
        %1464 = vmatpush1.msra.mxu0 0.0
        %1465 = vmatprep.subr.mxu0 0.0
        %1466 = vmatpush1.msra.mxu0 0.0
        %1467 = vmatprep.subr.mxu0 0.0
        %1468 = vmatpush1.msra.mxu0 0.0
        %1469 = vmatprep.subr.mxu0 0.0
        %1470 = vmatpush1.msra.mxu0 0.0
        %1471 = vmatprep.subr.mxu0 0.0
        %1472 = vmatpush1.msra.mxu0 0.0
        %1473 = vmatprep.subr.mxu0 0.0
        %1474 = vmatpush1.msra.mxu0 0.0
        %1475 = vmatprep.subr.mxu0 0.0
        %1476 = vmatpush1.msra.mxu0 0.0
        %1477 = vmatprep.subr.mxu0 0.0
        %1478 = vmatpush1.msra.mxu0 0.0
        %1479 = vmatprep.subr.mxu0 0.0
        %1480 = vmatpush1.msra.mxu0 0.0
        %1481 = vmatprep.subr.mxu0 0.0
        %1482 = vmatpush1.msra.mxu0 0.0
        %1483 = vmatprep.subr.mxu0 0.0
        %1484 = vmatpush1.msra.mxu0 0.0
        %1485 = vmatprep.subr.mxu0 0.0
        %1486 = vmatpush1.msra.mxu0 0.0
        %1487 = vmatprep.subr.mxu0 0.0
        %1488 = vmatpush1.msra.mxu0 0.0
        %1489 = vmatprep.subr.mxu0 0.0
        %1490 = vmatpush1.msra.mxu0 0.0
        %1491 = vmatprep.subr.mxu0 0.0
        %1492 = vmatpush1.msra.mxu0 0.0
        %1493 = vmatprep.subr.mxu0 0.0
        %1494 = vmatpush1.msra.mxu0 0.0
        %1495 = vmatprep.subr.mxu0 0.0
        %1496 = vmatpush1.msra.mxu0 0.0
        %1497 = vmatprep.subr.mxu0 0.0
        %1498 = vmatpush1.msra.mxu0 0.0
        %1499 = vmatprep.subr.mxu0 0.0
        %1500 = vmatpush1.msra.mxu0 0.0
        %1501 = vmatprep.subr.mxu0 0.0
        %1502 = vmatpush1.msra.mxu0 0.0
        %1503 = vmatprep.subr.mxu0 0.0
        %1504 = vmatpush1.msra.mxu0 0.0
        %1505 = vmatprep.subr.mxu0 0.0
        %1506 = vmatpush1.msra.mxu0 0.0
        %1507 = vmatprep.mubr.f32.mxu0 0.0
        %1508 = vmatmul.mubr.f32.gmra.mrb[0].mxu0 %v1441
        %v1509 = vpop.f32.mrb[0].mxu0
        %v1510 = vadd.f32 0.0, %v1509
        %v1511 = vpop.f32.mrb[0].mxu0
        %1512 = vdwg.mxu0
        %v1514 = vsel %vm1185, %v1510, 0
        %1516 = vmatprep.subr.mxu0 0.0
        %1517 = vmatpush1.msra.mxu0 %v1045
        %1518 = vmatprep.subr.mxu0 0.0
        %1519 = vmatpush1.msra.mxu0 0.0
        %1520 = vmatprep.subr.mxu0 0.0
        %1521 = vmatpush1.msra.mxu0 0.0
        %1522 = vmatprep.subr.mxu0 0.0
        %1523 = vmatpush1.msra.mxu0 0.0
        %1524 = vmatprep.subr.mxu0 0.0
        %1525 = vmatpush1.msra.mxu0 0.0
        %1526 = vmatprep.subr.mxu0 0.0
        %1527 = vmatpush1.msra.mxu0 0.0
        %1528 = vmatprep.subr.mxu0 0.0
        %1529 = vmatpush1.msra.mxu0 0.0
        %1530 = vmatprep.subr.mxu0 0.0
        %1531 = vmatpush1.msra.mxu0 0.0
        %1532 = vmatprep.subr.mxu0 0.0
        %1533 = vmatpush1.msra.mxu0 0.0
        %1534 = vmatprep.subr.mxu0 0.0
        %1535 = vmatpush1.msra.mxu0 0.0
        %1536 = vmatprep.subr.mxu0 0.0
        %1537 = vmatpush1.msra.mxu0 0.0
        %1538 = vmatprep.subr.mxu0 0.0
        %1539 = vmatpush1.msra.mxu0 0.0
        %1540 = vmatprep.subr.mxu0 0.0
        %1541 = vmatpush1.msra.mxu0 0.0
        %1542 = vmatprep.subr.mxu0 0.0
        %1543 = vmatpush1.msra.mxu0 0.0
        %1544 = vmatprep.subr.mxu0 0.0
        %1545 = vmatpush1.msra.mxu0 0.0
        %1546 = vmatprep.subr.mxu0 0.0
        %1547 = vmatpush1.msra.mxu0 0.0
        %1548 = vmatprep.subr.mxu0 0.0
        %1549 = vmatpush1.msra.mxu0 0.0
        %1550 = vmatprep.subr.mxu0 0.0
        %1551 = vmatpush1.msra.mxu0 0.0
        %1552 = vmatprep.subr.mxu0 0.0
        %1553 = vmatpush1.msra.mxu0 0.0
        %1554 = vmatprep.subr.mxu0 0.0
        %1555 = vmatpush1.msra.mxu0 0.0
        %1556 = vmatprep.subr.mxu0 0.0
        %1557 = vmatpush1.msra.mxu0 0.0
        %1558 = vmatprep.subr.mxu0 0.0
        %1559 = vmatpush1.msra.mxu0 0.0
        %1560 = vmatprep.subr.mxu0 0.0
        %1561 = vmatpush1.msra.mxu0 0.0
        %1562 = vmatprep.subr.mxu0 0.0
        %1563 = vmatpush1.msra.mxu0 0.0
        %1564 = vmatprep.subr.mxu0 0.0
        %1565 = vmatpush1.msra.mxu0 0.0
        %1566 = vmatprep.subr.mxu0 0.0
        %1567 = vmatpush1.msra.mxu0 0.0
        %1568 = vmatprep.subr.mxu0 0.0
        %1569 = vmatpush1.msra.mxu0 0.0
        %1570 = vmatprep.subr.mxu0 0.0
        %1571 = vmatpush1.msra.mxu0 0.0
        %1572 = vmatprep.subr.mxu0 0.0
        %1573 = vmatpush1.msra.mxu0 0.0
        %1574 = vmatprep.subr.mxu0 0.0
        %1575 = vmatpush1.msra.mxu0 0.0
        %1576 = vmatprep.subr.mxu0 0.0
        %1577 = vmatpush1.msra.mxu0 0.0
        %1578 = vmatprep.subr.mxu0 0.0
        %1579 = vmatpush1.msra.mxu0 0.0
        %1580 = vmatprep.mubr.f32.mxu0 0.0
        %1581 = vmatmul.mubr.f32.gmra.mrb[0].mxu0 %v1514
        %v1582 = vpop.f32.mrb[0].mxu0
        %v1583 = vadd.f32 0.0, %v1582
        %v1584 = vpop.f32.mrb[0].mxu0
        %1585 = vdwg.mxu0
        %v1587 = vsel %vm1185, %v1345, 0
        %1589 = vmatprep.subr.mxu0 0.0
        %1590 = vmatpush1.msra.mxu0 %v1044
        %1591 = vmatprep.subr.mxu0 0.0
        %1592 = vmatpush1.msra.mxu0 0.0
        %1593 = vmatprep.subr.mxu0 0.0
        %1594 = vmatpush1.msra.mxu0 0.0
        %1595 = vmatprep.subr.mxu0 0.0
        %1596 = vmatpush1.msra.mxu0 0.0
        %1597 = vmatprep.subr.mxu0 0.0
        %1598 = vmatpush1.msra.mxu0 0.0
        %1599 = vmatprep.subr.mxu0 0.0
        %1600 = vmatpush1.msra.mxu0 0.0
        %1601 = vmatprep.subr.mxu0 0.0
        %1602 = vmatpush1.msra.mxu0 0.0
        %1603 = vmatprep.subr.mxu0 0.0
        %1604 = vmatpush1.msra.mxu0 0.0
        %1605 = vmatprep.subr.mxu0 0.0
        %1606 = vmatpush1.msra.mxu0 0.0
        %1607 = vmatprep.subr.mxu0 0.0
        %1608 = vmatpush1.msra.mxu0 0.0
        %1609 = vmatprep.subr.mxu0 0.0
        %1610 = vmatpush1.msra.mxu0 0.0
        %1611 = vmatprep.subr.mxu0 0.0
        %1612 = vmatpush1.msra.mxu0 0.0
        %1613 = vmatprep.subr.mxu0 0.0
        %1614 = vmatpush1.msra.mxu0 0.0
        %1615 = vmatprep.subr.mxu0 0.0
        %1616 = vmatpush1.msra.mxu0 0.0
        %1617 = vmatprep.subr.mxu0 0.0
        %1618 = vmatpush1.msra.mxu0 0.0
        %1619 = vmatprep.subr.mxu0 0.0
        %1620 = vmatpush1.msra.mxu0 0.0
        %1621 = vmatprep.subr.mxu0 0.0
        %1622 = vmatpush1.msra.mxu0 0.0
        %1623 = vmatprep.subr.mxu0 0.0
        %1624 = vmatpush1.msra.mxu0 0.0
        %1625 = vmatprep.subr.mxu0 0.0
        %1626 = vmatpush1.msra.mxu0 0.0
        %1627 = vmatprep.subr.mxu0 0.0
        %1628 = vmatpush1.msra.mxu0 0.0
        %1629 = vmatprep.subr.mxu0 0.0
        %1630 = vmatpush1.msra.mxu0 0.0
        %1631 = vmatprep.subr.mxu0 0.0
        %1632 = vmatpush1.msra.mxu0 0.0
        %1633 = vmatprep.subr.mxu0 0.0
        %1634 = vmatpush1.msra.mxu0 0.0
        %1635 = vmatprep.subr.mxu0 0.0
        %1636 = vmatpush1.msra.mxu0 0.0
        %1637 = vmatprep.subr.mxu0 0.0
        %1638 = vmatpush1.msra.mxu0 0.0
        %1639 = vmatprep.subr.mxu0 0.0
        %1640 = vmatpush1.msra.mxu0 0.0
        %1641 = vmatprep.subr.mxu0 0.0
        %1642 = vmatpush1.msra.mxu0 0.0
        %1643 = vmatprep.subr.mxu0 0.0
        %1644 = vmatpush1.msra.mxu0 0.0
        %1645 = vmatprep.subr.mxu0 0.0
        %1646 = vmatpush1.msra.mxu0 0.0
        %1647 = vmatprep.subr.mxu0 0.0
        %1648 = vmatpush1.msra.mxu0 0.0
        %1649 = vmatprep.subr.mxu0 0.0
        %1650 = vmatpush1.msra.mxu0 0.0
        %1651 = vmatprep.subr.mxu0 0.0
        %1652 = vmatpush1.msra.mxu0 0.0
        %1653 = vmatprep.mubr.f32.mxu0 0.0
        %1654 = vmatmul.mubr.f32.gmra.mrb[0].mxu0 %v1587
        %v1655 = vpop.f32.mrb[0].mxu0
        %v1656 = vadd.f32 %v1583, %v1655
        %v1657 = vpop.f32.mrb[0].mxu0
        %1658 = vdwg.mxu0
        %1659 = vrot.lane.b32.xlu0 %v1181, 112
        %v1660 = vpop.permute.xlu0 %1659
        %1661 = vrot.lane.b32.xlu0 %v1178, 80
        %v1662 = vpop.permute.xlu0 %1661
        %v1663 = vsel %vm1185, %v1660, 0
        %v1665 = vsel %vm1185, %v1662, 0
        %1667 = vmatprep.subr.mxu0 0.0
        %1668 = vmatpush1.xpose.msra.mxu0 %v1665
        %1669 = vmatprep.subr.mxu0 0.0
        %1670 = vmatpush1.xpose.msra.mxu0 0.0
        %1671 = vmatprep.subr.mxu0 0.0
        %1672 = vmatpush1.xpose.msra.mxu0 0.0
        %1673 = vmatprep.subr.mxu0 0.0
        %1674 = vmatpush1.xpose.msra.mxu0 0.0
        %1675 = vmatprep.subr.mxu0 0.0
        %1676 = vmatpush1.xpose.msra.mxu0 0.0
        %1677 = vmatprep.subr.mxu0 0.0
        %1678 = vmatpush1.xpose.msra.mxu0 0.0
        %1679 = vmatprep.subr.mxu0 0.0
        %1680 = vmatpush1.xpose.msra.mxu0 0.0
        %1681 = vmatprep.subr.mxu0 0.0
        %1682 = vmatpush1.xpose.msra.mxu0 0.0
        %1683 = vmatprep.subr.mxu0 0.0
        %1684 = vmatpush1.xpose.msra.mxu0 0.0
        %1685 = vmatprep.subr.mxu0 0.0
        %1686 = vmatpush1.xpose.msra.mxu0 0.0
        %1687 = vmatprep.subr.mxu0 0.0
        %1688 = vmatpush1.xpose.msra.mxu0 0.0
        %1689 = vmatprep.subr.mxu0 0.0
        %1690 = vmatpush1.xpose.msra.mxu0 0.0
        %1691 = vmatprep.subr.mxu0 0.0
        %1692 = vmatpush1.xpose.msra.mxu0 0.0
        %1693 = vmatprep.subr.mxu0 0.0
        %1694 = vmatpush1.xpose.msra.mxu0 0.0
        %1695 = vmatprep.subr.mxu0 0.0
        %1696 = vmatpush1.xpose.msra.mxu0 0.0
        %1697 = vmatprep.subr.mxu0 0.0
        %1698 = vmatpush1.xpose.msra.mxu0 0.0
        %1699 = vmatprep.subr.mxu0 0.0
        %1700 = vmatpush1.xpose.msra.mxu0 0.0
        %1701 = vmatprep.subr.mxu0 0.0
        %1702 = vmatpush1.xpose.msra.mxu0 0.0
        %1703 = vmatprep.subr.mxu0 0.0
        %1704 = vmatpush1.xpose.msra.mxu0 0.0
        %1705 = vmatprep.subr.mxu0 0.0
        %1706 = vmatpush1.xpose.msra.mxu0 0.0
        %1707 = vmatprep.subr.mxu0 0.0
        %1708 = vmatpush1.xpose.msra.mxu0 0.0
        %1709 = vmatprep.subr.mxu0 0.0
        %1710 = vmatpush1.xpose.msra.mxu0 0.0
        %1711 = vmatprep.subr.mxu0 0.0
        %1712 = vmatpush1.xpose.msra.mxu0 0.0
        %1713 = vmatprep.subr.mxu0 0.0
        %1714 = vmatpush1.xpose.msra.mxu0 0.0
        %1715 = vmatprep.subr.mxu0 0.0
        %1716 = vmatpush1.xpose.msra.mxu0 0.0
        %1717 = vmatprep.subr.mxu0 0.0
        %1718 = vmatpush1.xpose.msra.mxu0 0.0
        %1719 = vmatprep.subr.mxu0 0.0
        %1720 = vmatpush1.xpose.msra.mxu0 0.0
        %1721 = vmatprep.subr.mxu0 0.0
        %1722 = vmatpush1.xpose.msra.mxu0 0.0
        %1723 = vmatprep.subr.mxu0 0.0
        %1724 = vmatpush1.xpose.msra.mxu0 0.0
        %1725 = vmatprep.subr.mxu0 0.0
        %1726 = vmatpush1.xpose.msra.mxu0 0.0
        %1727 = vmatprep.subr.mxu0 0.0
        %1728 = vmatpush1.xpose.msra.mxu0 0.0
        %1729 = vmatprep.subr.mxu0 0.0
        %1730 = vmatpush1.xpose.msra.mxu0 0.0
        %1731 = vmatprep.mubr.f32.mxu0 0.0
        %1732 = vmatmul.mubr.f32.gmra.mrb[0].mxu0 %v1663
        %v1733 = vpop.f32.mrb[0].mxu0
        %v1734 = vadd.f32 0.0, %v1733
        %v1735 = vpop.f32.mrb[0].mxu0
        %1736 = vdwg.mxu0
        %v1737 = vsel %vm1185, %v1734, -inf
        %1738 = vmax.xlane.f32.xlu0 %v1737
        %v1739 = vpop.xlane.xlu0 %1738
        %v1740 = vsub.f32 %v1734, %v1739
        %v1741 = vmul.f32 %v1740, 1.442695
        %v1742 = vpow.pop %v1741
        %v1743 = vsel %vm1185, %v1742, 0.0
        %1744 = vadd.xlane.f32.xlu0 %v1743
        %v1745 = vpop.xlane.xlu0 %1744
        %v1746 = vrcp.pop %v1745
        %v1747 = vmul.f32 %v1742, %v1746
        %1748 = vrot.lane.b32.xlu0 %v1178, 48
        %v1749 = vpop.permute.xlu0 %1748
        %v1752 = vsel %vm1185, %v1747, 0
        %1754 = vmatprep.subr.mxu0 0.0
        %1755 = vmatpush1.msra.mxu0 %v1749
        %1756 = vmatprep.subr.mxu0 0.0
        %1757 = vmatpush1.msra.mxu0 0.0
        %1758 = vmatprep.subr.mxu0 0.0
        %1759 = vmatpush1.msra.mxu0 0.0
        %1760 = vmatprep.subr.mxu0 0.0
        %1761 = vmatpush1.msra.mxu0 0.0
        %1762 = vmatprep.subr.mxu0 0.0
        %1763 = vmatpush1.msra.mxu0 0.0
        %1764 = vmatprep.subr.mxu0 0.0
        %1765 = vmatpush1.msra.mxu0 0.0
        %1766 = vmatprep.subr.mxu0 0.0
        %1767 = vmatpush1.msra.mxu0 0.0
        %1768 = vmatprep.subr.mxu0 0.0
        %1769 = vmatpush1.msra.mxu0 0.0
        %1770 = vmatprep.subr.mxu0 0.0
        %1771 = vmatpush1.msra.mxu0 0.0
        %1772 = vmatprep.subr.mxu0 0.0
        %1773 = vmatpush1.msra.mxu0 0.0
        %1774 = vmatprep.subr.mxu0 0.0
        %1775 = vmatpush1.msra.mxu0 0.0
        %1776 = vmatprep.subr.mxu0 0.0
        %1777 = vmatpush1.msra.mxu0 0.0
        %1778 = vmatprep.subr.mxu0 0.0
        %1779 = vmatpush1.msra.mxu0 0.0
        %1780 = vmatprep.subr.mxu0 0.0
        %1781 = vmatpush1.msra.mxu0 0.0
        %1782 = vmatprep.subr.mxu0 0.0
        %1783 = vmatpush1.msra.mxu0 0.0
        %1784 = vmatprep.subr.mxu0 0.0
        %1785 = vmatpush1.msra.mxu0 0.0
        %1786 = vmatprep.subr.mxu0 0.0
        %1787 = vmatpush1.msra.mxu0 0.0
        %1788 = vmatprep.subr.mxu0 0.0
        %1789 = vmatpush1.msra.mxu0 0.0
        %1790 = vmatprep.subr.mxu0 0.0
        %1791 = vmatpush1.msra.mxu0 0.0
        %1792 = vmatprep.subr.mxu0 0.0
        %1793 = vmatpush1.msra.mxu0 0.0
        %1794 = vmatprep.subr.mxu0 0.0
        %1795 = vmatpush1.msra.mxu0 0.0
        %1796 = vmatprep.subr.mxu0 0.0
        %1797 = vmatpush1.msra.mxu0 0.0
        %1798 = vmatprep.subr.mxu0 0.0
        %1799 = vmatpush1.msra.mxu0 0.0
        %1800 = vmatprep.subr.mxu0 0.0
        %1801 = vmatpush1.msra.mxu0 0.0
        %1802 = vmatprep.subr.mxu0 0.0
        %1803 = vmatpush1.msra.mxu0 0.0
        %1804 = vmatprep.subr.mxu0 0.0
        %1805 = vmatpush1.msra.mxu0 0.0
        %1806 = vmatprep.subr.mxu0 0.0
        %1807 = vmatpush1.msra.mxu0 0.0
        %1808 = vmatprep.subr.mxu0 0.0
        %1809 = vmatpush1.msra.mxu0 0.0
        %1810 = vmatprep.subr.mxu0 0.0
        %1811 = vmatpush1.msra.mxu0 0.0
        %1812 = vmatprep.subr.mxu0 0.0
        %1813 = vmatpush1.msra.mxu0 0.0
        %1814 = vmatprep.subr.mxu0 0.0
        %1815 = vmatpush1.msra.mxu0 0.0
        %1816 = vmatprep.subr.mxu0 0.0
        %1817 = vmatpush1.msra.mxu0 0.0
        %1818 = vmatprep.mubr.f32.mxu0 0.0
        %1819 = vmatmul.mubr.f32.gmra.mrb[0].mxu0 %v1752
        %v1820 = vpop.f32.mrb[0].mxu0
        %v1821 = vadd.f32 0.0, %v1820
        %v1822 = vpop.f32.mrb[0].mxu0
        %1823 = vdwg.mxu0
        %v1825 = vsel %vm1185, %v1821, 0
        %1827 = vmatprep.subr.mxu0 0.0
        %1828 = vmatpush1.msra.mxu0 %v1046
        %1829 = vmatprep.subr.mxu0 0.0
        %1830 = vmatpush1.msra.mxu0 0.0
        %1831 = vmatprep.subr.mxu0 0.0
        %1832 = vmatpush1.msra.mxu0 0.0
        %1833 = vmatprep.subr.mxu0 0.0
        %1834 = vmatpush1.msra.mxu0 0.0
        %1835 = vmatprep.subr.mxu0 0.0
        %1836 = vmatpush1.msra.mxu0 0.0
        %1837 = vmatprep.subr.mxu0 0.0
        %1838 = vmatpush1.msra.mxu0 0.0
        %1839 = vmatprep.subr.mxu0 0.0
        %1840 = vmatpush1.msra.mxu0 0.0
        %1841 = vmatprep.subr.mxu0 0.0
        %1842 = vmatpush1.msra.mxu0 0.0
        %1843 = vmatprep.subr.mxu0 0.0
        %1844 = vmatpush1.msra.mxu0 0.0
        %1845 = vmatprep.subr.mxu0 0.0
        %1846 = vmatpush1.msra.mxu0 0.0
        %1847 = vmatprep.subr.mxu0 0.0
        %1848 = vmatpush1.msra.mxu0 0.0
        %1849 = vmatprep.subr.mxu0 0.0
        %1850 = vmatpush1.msra.mxu0 0.0
        %1851 = vmatprep.subr.mxu0 0.0
        %1852 = vmatpush1.msra.mxu0 0.0
        %1853 = vmatprep.subr.mxu0 0.0
        %1854 = vmatpush1.msra.mxu0 0.0
        %1855 = vmatprep.subr.mxu0 0.0
        %1856 = vmatpush1.msra.mxu0 0.0
        %1857 = vmatprep.subr.mxu0 0.0
        %1858 = vmatpush1.msra.mxu0 0.0
        %1859 = vmatprep.subr.mxu0 0.0
        %1860 = vmatpush1.msra.mxu0 0.0
        %1861 = vmatprep.subr.mxu0 0.0
        %1862 = vmatpush1.msra.mxu0 0.0
        %1863 = vmatprep.subr.mxu0 0.0
        %1864 = vmatpush1.msra.mxu0 0.0
        %1865 = vmatprep.subr.mxu0 0.0
        %1866 = vmatpush1.msra.mxu0 0.0
        %1867 = vmatprep.subr.mxu0 0.0
        %1868 = vmatpush1.msra.mxu0 0.0
        %1869 = vmatprep.subr.mxu0 0.0
        %1870 = vmatpush1.msra.mxu0 0.0
        %1871 = vmatprep.subr.mxu0 0.0
        %1872 = vmatpush1.msra.mxu0 0.0
        %1873 = vmatprep.subr.mxu0 0.0
        %1874 = vmatpush1.msra.mxu0 0.0
        %1875 = vmatprep.subr.mxu0 0.0
        %1876 = vmatpush1.msra.mxu0 0.0
        %1877 = vmatprep.subr.mxu0 0.0
        %1878 = vmatpush1.msra.mxu0 0.0
        %1879 = vmatprep.subr.mxu0 0.0
        %1880 = vmatpush1.msra.mxu0 0.0
        %1881 = vmatprep.subr.mxu0 0.0
        %1882 = vmatpush1.msra.mxu0 0.0
        %1883 = vmatprep.subr.mxu0 0.0
        %1884 = vmatpush1.msra.mxu0 0.0
        %1885 = vmatprep.subr.mxu0 0.0
        %1886 = vmatpush1.msra.mxu0 0.0
        %1887 = vmatprep.subr.mxu0 0.0
        %1888 = vmatpush1.msra.mxu0 0.0
        %1889 = vmatprep.subr.mxu0 0.0
        %1890 = vmatpush1.msra.mxu0 0.0
        %1891 = vmatprep.mubr.f32.mxu0 0.0
        %1892 = vmatmul.mubr.f32.gmra.mrb[0].mxu0 %v1825
        %v1893 = vpop.f32.mrb[0].mxu0
        %v1894 = vadd.f32 0.0, %v1893
        %v1895 = vpop.f32.mrb[0].mxu0
        %1896 = vdwg.mxu0
        %v1897 = vadd.f32 %v1656, %v1894
        %1898 = vrot.lane.b32.xlu0 %v1181, 104
        %v1899 = vpop.permute.xlu0 %1898
        %1900 = vrot.lane.b32.xlu0 %v1178, 72
        %v1901 = vpop.permute.xlu0 %1900
        %v1902 = vsel %vm1185, %v1899, 0
        %v1904 = vsel %vm1185, %v1901, 0
        %1906 = vmatprep.subr.mxu0 0.0
        %1907 = vmatpush1.xpose.msra.mxu0 %v1904
        %1908 = vmatprep.subr.mxu0 0.0
        %1909 = vmatpush1.xpose.msra.mxu0 0.0
        %1910 = vmatprep.subr.mxu0 0.0
        %1911 = vmatpush1.xpose.msra.mxu0 0.0
        %1912 = vmatprep.subr.mxu0 0.0
        %1913 = vmatpush1.xpose.msra.mxu0 0.0
        %1914 = vmatprep.subr.mxu0 0.0
        %1915 = vmatpush1.xpose.msra.mxu0 0.0
        %1916 = vmatprep.subr.mxu0 0.0
        %1917 = vmatpush1.xpose.msra.mxu0 0.0
        %1918 = vmatprep.subr.mxu0 0.0
        %1919 = vmatpush1.xpose.msra.mxu0 0.0
        %1920 = vmatprep.subr.mxu0 0.0
        %1921 = vmatpush1.xpose.msra.mxu0 0.0
        %1922 = vmatprep.subr.mxu0 0.0
        %1923 = vmatpush1.xpose.msra.mxu0 0.0
        %1924 = vmatprep.subr.mxu0 0.0
        %1925 = vmatpush1.xpose.msra.mxu0 0.0
        %1926 = vmatprep.subr.mxu0 0.0
        %1927 = vmatpush1.xpose.msra.mxu0 0.0
        %1928 = vmatprep.subr.mxu0 0.0
        %1929 = vmatpush1.xpose.msra.mxu0 0.0
        %1930 = vmatprep.subr.mxu0 0.0
        %1931 = vmatpush1.xpose.msra.mxu0 0.0
        %1932 = vmatprep.subr.mxu0 0.0
        %1933 = vmatpush1.xpose.msra.mxu0 0.0
        %1934 = vmatprep.subr.mxu0 0.0
        %1935 = vmatpush1.xpose.msra.mxu0 0.0
        %1936 = vmatprep.subr.mxu0 0.0
        %1937 = vmatpush1.xpose.msra.mxu0 0.0
        %1938 = vmatprep.subr.mxu0 0.0
        %1939 = vmatpush1.xpose.msra.mxu0 0.0
        %1940 = vmatprep.subr.mxu0 0.0
        %1941 = vmatpush1.xpose.msra.mxu0 0.0
        %1942 = vmatprep.subr.mxu0 0.0
        %1943 = vmatpush1.xpose.msra.mxu0 0.0
        %1944 = vmatprep.subr.mxu0 0.0
        %1945 = vmatpush1.xpose.msra.mxu0 0.0
        %1946 = vmatprep.subr.mxu0 0.0
        %1947 = vmatpush1.xpose.msra.mxu0 0.0
        %1948 = vmatprep.subr.mxu0 0.0
        %1949 = vmatpush1.xpose.msra.mxu0 0.0
        %1950 = vmatprep.subr.mxu0 0.0
        %1951 = vmatpush1.xpose.msra.mxu0 0.0
        %1952 = vmatprep.subr.mxu0 0.0
        %1953 = vmatpush1.xpose.msra.mxu0 0.0
        %1954 = vmatprep.subr.mxu0 0.0
        %1955 = vmatpush1.xpose.msra.mxu0 0.0
        %1956 = vmatprep.subr.mxu0 0.0
        %1957 = vmatpush1.xpose.msra.mxu0 0.0
        %1958 = vmatprep.subr.mxu0 0.0
        %1959 = vmatpush1.xpose.msra.mxu0 0.0
        %1960 = vmatprep.subr.mxu0 0.0
        %1961 = vmatpush1.xpose.msra.mxu0 0.0
        %1962 = vmatprep.subr.mxu0 0.0
        %1963 = vmatpush1.xpose.msra.mxu0 0.0
        %1964 = vmatprep.subr.mxu0 0.0
        %1965 = vmatpush1.xpose.msra.mxu0 0.0
        %1966 = vmatprep.subr.mxu0 0.0
        %1967 = vmatpush1.xpose.msra.mxu0 0.0
        %1968 = vmatprep.subr.mxu0 0.0
        %1969 = vmatpush1.xpose.msra.mxu0 0.0
        %1970 = vmatprep.mubr.f32.mxu0 0.0
        %1971 = vmatmul.mubr.f32.gmra.mrb[0].mxu0 %v1902
        %v1972 = vpop.f32.mrb[0].mxu0
        %v1973 = vadd.f32 0.0, %v1972
        %v1974 = vpop.f32.mrb[0].mxu0
        %1975 = vdwg.mxu0
        %v1976 = vsel %vm1185, %v1973, -inf
        %1977 = vmax.xlane.f32.xlu0 %v1976
        %v1978 = vpop.xlane.xlu0 %1977
        %v1979 = vsub.f32 %v1973, %v1978
        %v1980 = vmul.f32 %v1979, 1.442695
        %v1981 = vpow.pop %v1980
        %v1982 = vsel %vm1185, %v1981, 0.0
        %1983 = vadd.xlane.f32.xlu0 %v1982
        %v1984 = vpop.xlane.xlu0 %1983
        %v1985 = vrcp.pop %v1984
        %v1986 = vmul.f32 %v1981, %v1985
        %1987 = vrot.lane.b32.xlu0 %v1178, 40
        %v1988 = vpop.permute.xlu0 %1987
        %v1991 = vsel %vm1185, %v1986, 0
        %1993 = vmatprep.subr.mxu0 0.0
        %1994 = vmatpush1.msra.mxu0 %v1988
        %1995 = vmatprep.subr.mxu0 0.0
        %1996 = vmatpush1.msra.mxu0 0.0
        %1997 = vmatprep.subr.mxu0 0.0
        %1998 = vmatpush1.msra.mxu0 0.0
        %1999 = vmatprep.subr.mxu0 0.0
        %2000 = vmatpush1.msra.mxu0 0.0
        %2001 = vmatprep.subr.mxu0 0.0
        %2002 = vmatpush1.msra.mxu0 0.0
        %2003 = vmatprep.subr.mxu0 0.0
        %2004 = vmatpush1.msra.mxu0 0.0
        %2005 = vmatprep.subr.mxu0 0.0
        %2006 = vmatpush1.msra.mxu0 0.0
        %2007 = vmatprep.subr.mxu0 0.0
        %2008 = vmatpush1.msra.mxu0 0.0
        %2009 = vmatprep.subr.mxu0 0.0
        %2010 = vmatpush1.msra.mxu0 0.0
        %2011 = vmatprep.subr.mxu0 0.0
        %2012 = vmatpush1.msra.mxu0 0.0
        %2013 = vmatprep.subr.mxu0 0.0
        %2014 = vmatpush1.msra.mxu0 0.0
        %2015 = vmatprep.subr.mxu0 0.0
        %2016 = vmatpush1.msra.mxu0 0.0
        %2017 = vmatprep.subr.mxu0 0.0
        %2018 = vmatpush1.msra.mxu0 0.0
        %2019 = vmatprep.subr.mxu0 0.0
        %2020 = vmatpush1.msra.mxu0 0.0
        %2021 = vmatprep.subr.mxu0 0.0
        %2022 = vmatpush1.msra.mxu0 0.0
        %2023 = vmatprep.subr.mxu0 0.0
        %2024 = vmatpush1.msra.mxu0 0.0
        %2025 = vmatprep.subr.mxu0 0.0
        %2026 = vmatpush1.msra.mxu0 0.0
        %2027 = vmatprep.subr.mxu0 0.0
        %2028 = vmatpush1.msra.mxu0 0.0
        %2029 = vmatprep.subr.mxu0 0.0
        %2030 = vmatpush1.msra.mxu0 0.0
        %2031 = vmatprep.subr.mxu0 0.0
        %2032 = vmatpush1.msra.mxu0 0.0
        %2033 = vmatprep.subr.mxu0 0.0
        %2034 = vmatpush1.msra.mxu0 0.0
        %2035 = vmatprep.subr.mxu0 0.0
        %2036 = vmatpush1.msra.mxu0 0.0
        %2037 = vmatprep.subr.mxu0 0.0
        %2038 = vmatpush1.msra.mxu0 0.0
        %2039 = vmatprep.subr.mxu0 0.0
        %2040 = vmatpush1.msra.mxu0 0.0
        %2041 = vmatprep.subr.mxu0 0.0
        %2042 = vmatpush1.msra.mxu0 0.0
        %2043 = vmatprep.subr.mxu0 0.0
        %2044 = vmatpush1.msra.mxu0 0.0
        %2045 = vmatprep.subr.mxu0 0.0
        %2046 = vmatpush1.msra.mxu0 0.0
        %2047 = vmatprep.subr.mxu0 0.0
        %2048 = vmatpush1.msra.mxu0 0.0
        %2049 = vmatprep.subr.mxu0 0.0
        %2050 = vmatpush1.msra.mxu0 0.0
        %2051 = vmatprep.subr.mxu0 0.0
        %2052 = vmatpush1.msra.mxu0 0.0
        %2053 = vmatprep.subr.mxu0 0.0
        %2054 = vmatpush1.msra.mxu0 0.0
        %2055 = vmatprep.subr.mxu0 0.0
        %2056 = vmatpush1.msra.mxu0 0.0
        %2057 = vmatprep.mubr.f32.mxu0 0.0
        %2058 = vmatmul.mubr.f32.gmra.mrb[0].mxu0 %v1991
        %v2059 = vpop.f32.mrb[0].mxu0
        %v2060 = vadd.f32 0.0, %v2059
        %v2061 = vpop.f32.mrb[0].mxu0
        %2062 = vdwg.mxu0
        %v2064 = vsel %vm1185, %v2060, 0
        %2066 = vmatprep.subr.mxu0 0.0
        %2067 = vmatpush1.msra.mxu0 %v1047
        %2068 = vmatprep.subr.mxu0 0.0
        %2069 = vmatpush1.msra.mxu0 0.0
        %2070 = vmatprep.subr.mxu0 0.0
        %2071 = vmatpush1.msra.mxu0 0.0
        %2072 = vmatprep.subr.mxu0 0.0
        %2073 = vmatpush1.msra.mxu0 0.0
        %2074 = vmatprep.subr.mxu0 0.0
        %2075 = vmatpush1.msra.mxu0 0.0
        %2076 = vmatprep.subr.mxu0 0.0
        %2077 = vmatpush1.msra.mxu0 0.0
        %2078 = vmatprep.subr.mxu0 0.0
        %2079 = vmatpush1.msra.mxu0 0.0
        %2080 = vmatprep.subr.mxu0 0.0
        %2081 = vmatpush1.msra.mxu0 0.0
        %2082 = vmatprep.subr.mxu0 0.0
        %2083 = vmatpush1.msra.mxu0 0.0
        %2084 = vmatprep.subr.mxu0 0.0
        %2085 = vmatpush1.msra.mxu0 0.0
        %2086 = vmatprep.subr.mxu0 0.0
        %2087 = vmatpush1.msra.mxu0 0.0
        %2088 = vmatprep.subr.mxu0 0.0
        %2089 = vmatpush1.msra.mxu0 0.0
        %2090 = vmatprep.subr.mxu0 0.0
        %2091 = vmatpush1.msra.mxu0 0.0
        %2092 = vmatprep.subr.mxu0 0.0
        %2093 = vmatpush1.msra.mxu0 0.0
        %2094 = vmatprep.subr.mxu0 0.0
        %2095 = vmatpush1.msra.mxu0 0.0
        %2096 = vmatprep.subr.mxu0 0.0
        %2097 = vmatpush1.msra.mxu0 0.0
        %2098 = vmatprep.subr.mxu0 0.0
        %2099 = vmatpush1.msra.mxu0 0.0
        %2100 = vmatprep.subr.mxu0 0.0
        %2101 = vmatpush1.msra.mxu0 0.0
        %2102 = vmatprep.subr.mxu0 0.0
        %2103 = vmatpush1.msra.mxu0 0.0
        %2104 = vmatprep.subr.mxu0 0.0
        %2105 = vmatpush1.msra.mxu0 0.0
        %2106 = vmatprep.subr.mxu0 0.0
        %2107 = vmatpush1.msra.mxu0 0.0
        %2108 = vmatprep.subr.mxu0 0.0
        %2109 = vmatpush1.msra.mxu0 0.0
        %2110 = vmatprep.subr.mxu0 0.0
        %2111 = vmatpush1.msra.mxu0 0.0
        %2112 = vmatprep.subr.mxu0 0.0
        %2113 = vmatpush1.msra.mxu0 0.0
        %2114 = vmatprep.subr.mxu0 0.0
        %2115 = vmatpush1.msra.mxu0 0.0
        %2116 = vmatprep.subr.mxu0 0.0
        %2117 = vmatpush1.msra.mxu0 0.0
        %2118 = vmatprep.subr.mxu0 0.0
        %2119 = vmatpush1.msra.mxu0 0.0
        %2120 = vmatprep.subr.mxu0 0.0
        %2121 = vmatpush1.msra.mxu0 0.0
        %2122 = vmatprep.subr.mxu0 0.0
        %2123 = vmatpush1.msra.mxu0 0.0
        %2124 = vmatprep.subr.mxu0 0.0
        %2125 = vmatpush1.msra.mxu0 0.0
        %2126 = vmatprep.subr.mxu0 0.0
        %2127 = vmatpush1.msra.mxu0 0.0
        %2128 = vmatprep.subr.mxu0 0.0
        %2129 = vmatpush1.msra.mxu0 0.0
        %2130 = vmatprep.mubr.f32.mxu0 0.0
        %2131 = vmatmul.mubr.f32.gmra.mrb[0].mxu0 %v2064
        %v2132 = vpop.f32.mrb[0].mxu0
        %v2133 = vadd.f32 0.0, %v2132
        %v2134 = vpop.f32.mrb[0].mxu0
        %2135 = vdwg.mxu0
        %v2136 = vadd.f32 %v1897, %v2133
        %v2137 = vadd.f32 %v1034, %v2136
        %v2139 = vlaneseq
        %v2140 = vshrl.u32 %v2139, 7
        %v2141 = vsub.s32 0, %v2140
        %v2142 = vrot.slane %v1048, %v2141
        %v2144 = vadd.f32 %v2137, %v2142
        %v2145 = vsel %vm1073, %v2144, 0.0
        %2146 = vadd.xlane.f32.xlu0 %v2145
        %v2147 = vpop.xlane.xlu0 %2146
        %v2148 = vmul.f32 %v2147, %v1077
        %v2149 = vsub.f32 %v2144, %v2148
        %v2150 = vmul.f32 %v2149, %v2149
        %v2151 = vsel %vm1073, %v2150, 0.0
        %2152 = vadd.xlane.f32.xlu0 %v2151
        %v2153 = vpop.xlane.xlu0 %2152
        %v2154 = vmul.f32 %v2153, %v1077
        %v2155 = vadd.f32 %v2154, 1e-05
        %v2156 = vrsqrt.pop %v2155
        %v2157 = vmul.f32 %v2149, %v2156
        %v2159 = vlaneseq
        %v2160 = vshrl.u32 %v2159, 7
        %v2161 = vsub.s32 0, %v2160
        %v2162 = vrot.slane %v1049, %v2161
        %v2164 = vmul.f32 %v2157, %v2162
        %v2166 = vlaneseq
        %v2167 = vshrl.u32 %v2166, 7
        %v2168 = vsub.s32 0, %v2167
        %v2169 = vrot.slane %v1050, %v2168
        %v2171 = vadd.f32 %v2164, %v2169
        %v2173 = vlaneseq
        %v2174 = vshrl.u32 %v2173, 7
        %v2175 = vsub.s32 0, %v2174
        %v2176 = vrot.slane %v1055, %v2175
        %v2179 = vsel %vm1073, %v2171, 0
        %2181 = vmatprep.subr.mxu0 0.0
        %2182 = vmatpush1.msra.mxu0 %v1051
        %2183 = vmatprep.subr.mxu0 0.0
        %2184 = vmatpush1.msra.mxu0 %v1052
        %2185 = vmatprep.subr.mxu0 0.0
        %2186 = vmatpush1.msra.mxu0 %v1053
        %2187 = vmatprep.subr.mxu0 0.0
        %2188 = vmatpush1.msra.mxu0 %v1054
        %2189 = vmatprep.subr.mxu0 0.0
        %2190 = vmatpush1.msra.mxu0 0.0
        %2191 = vmatprep.subr.mxu0 0.0
        %2192 = vmatpush1.msra.mxu0 0.0
        %2193 = vmatprep.subr.mxu0 0.0
        %2194 = vmatpush1.msra.mxu0 0.0
        %2195 = vmatprep.subr.mxu0 0.0
        %2196 = vmatpush1.msra.mxu0 0.0
        %2197 = vmatprep.subr.mxu0 0.0
        %2198 = vmatpush1.msra.mxu0 0.0
        %2199 = vmatprep.subr.mxu0 0.0
        %2200 = vmatpush1.msra.mxu0 0.0
        %2201 = vmatprep.subr.mxu0 0.0
        %2202 = vmatpush1.msra.mxu0 0.0
        %2203 = vmatprep.subr.mxu0 0.0
        %2204 = vmatpush1.msra.mxu0 0.0
        %2205 = vmatprep.subr.mxu0 0.0
        %2206 = vmatpush1.msra.mxu0 0.0
        %2207 = vmatprep.subr.mxu0 0.0
        %2208 = vmatpush1.msra.mxu0 0.0
        %2209 = vmatprep.subr.mxu0 0.0
        %2210 = vmatpush1.msra.mxu0 0.0
        %2211 = vmatprep.subr.mxu0 0.0
        %2212 = vmatpush1.msra.mxu0 0.0
        %2213 = vmatprep.subr.mxu0 0.0
        %2214 = vmatpush1.msra.mxu0 0.0
        %2215 = vmatprep.subr.mxu0 0.0
        %2216 = vmatpush1.msra.mxu0 0.0
        %2217 = vmatprep.subr.mxu0 0.0
        %2218 = vmatpush1.msra.mxu0 0.0
        %2219 = vmatprep.subr.mxu0 0.0
        %2220 = vmatpush1.msra.mxu0 0.0
        %2221 = vmatprep.subr.mxu0 0.0
        %2222 = vmatpush1.msra.mxu0 0.0
        %2223 = vmatprep.subr.mxu0 0.0
        %2224 = vmatpush1.msra.mxu0 0.0
        %2225 = vmatprep.subr.mxu0 0.0
        %2226 = vmatpush1.msra.mxu0 0.0
        %2227 = vmatprep.subr.mxu0 0.0
        %2228 = vmatpush1.msra.mxu0 0.0
        %2229 = vmatprep.subr.mxu0 0.0
        %2230 = vmatpush1.msra.mxu0 0.0
        %2231 = vmatprep.subr.mxu0 0.0
        %2232 = vmatpush1.msra.mxu0 0.0
        %2233 = vmatprep.subr.mxu0 0.0
        %2234 = vmatpush1.msra.mxu0 0.0
        %2235 = vmatprep.subr.mxu0 0.0
        %2236 = vmatpush1.msra.mxu0 0.0
        %2237 = vmatprep.subr.mxu0 0.0
        %2238 = vmatpush1.msra.mxu0 0.0
        %2239 = vmatprep.subr.mxu0 0.0
        %2240 = vmatpush1.msra.mxu0 0.0
        %2241 = vmatprep.subr.mxu0 0.0
        %2242 = vmatpush1.msra.mxu0 0.0
        %2243 = vmatprep.subr.mxu0 0.0
        %2244 = vmatpush1.msra.mxu0 0.0
        %2245 = vmatprep.mubr.f32.mxu0 0.0
        %2246 = vmatmul.mubr.f32.gmra.mrb[0].mxu0 %v2179
        %v2247 = vpop.f32.mrb[0].mxu0
        %v2248 = vadd.f32 %v2176, %v2247
        %v2249 = vpop.f32.mrb[0].mxu0
        %2250 = vdwg.mxu0
        %v2251 = vmul.f32 %v2248, 0.5
        %v2252 = vmul.f32 %v2248, 0.70710677
        %vm2253 = vcmp.ge.f32.partialorder %v2252, 0.0
        %v2254 = vsel %vm2253, 1.0, -1.0
        %v2255 = vand.u32 2147483647, %v2252
        %v2256 = vmul.f32 %v2255, 0.3275911
        %v2257 = vadd.f32 %v2256, 1.0
        %v2258 = vrcp.pop %v2257
        %v2259 = vmul.f32 1.0, %v2258
        %v2260 = vmul.f32 %v2259, 1.0614054
        %v2261 = vadd.f32 %v2260, -1.4531521
        %v2262 = vmul.f32 %v2261, %v2259
        %v2263 = vadd.f32 %v2262, 1.4214138
        %v2264 = vmul.f32 %v2263, %v2259
        %v2265 = vadd.f32 %v2264, -0.28449672
        %v2266 = vmul.f32 %v2265, %v2259
        %v2267 = vadd.f32 %v2266, 0.2548296
        %v2268 = vmul.f32 %v2267, %v2259
        %v2269 = vsub.f32 0.0, %v2255
        %v2270 = vmul.f32 %v2269, %v2255
        %v2271 = vmul.f32 %v2270, 1.442695
        %v2272 = vpow.pop %v2271
        %v2273 = vmul.f32 %v2268, %v2272
        %v2274 = vsub.f32 1.0, %v2273
        %v2275 = vmul.f32 %v2254, %v2274
        %v2276 = vadd.f32 %v2275, 1.0
        %v2277 = vmul.f32 %v2251, %v2276
        %2278 = vmatprep.subr.mxu0 0.0
        %2279 = vmatpush1.msra.mxu0 %v1056
        %2280 = vmatprep.subr.mxu0 0.0
        %2281 = vmatpush1.msra.mxu0 %v1057
        %2282 = vmatprep.subr.mxu0 0.0
        %2283 = vmatpush1.msra.mxu0 %v1058
        %2284 = vmatprep.subr.mxu0 0.0
        %2285 = vmatpush1.msra.mxu0 %v1059
        %2286 = vmatprep.subr.mxu0 0.0
        %2287 = vmatpush1.msra.mxu0 %v1060
        %2288 = vmatprep.subr.mxu0 0.0
        %2289 = vmatpush1.msra.mxu0 %v1061
        %2290 = vmatprep.subr.mxu0 0.0
        %2291 = vmatpush1.msra.mxu0 %v1062
        %2292 = vmatprep.subr.mxu0 0.0
        %2293 = vmatpush1.msra.mxu0 %v1063
        %2294 = vmatprep.subr.mxu0 0.0
        %2295 = vmatpush1.msra.mxu0 %v1064
        %2296 = vmatprep.subr.mxu0 0.0
        %2297 = vmatpush1.msra.mxu0 %v1065
        %2298 = vmatprep.subr.mxu0 0.0
        %2299 = vmatpush1.msra.mxu0 %v1066
        %2300 = vmatprep.subr.mxu0 0.0
        %2301 = vmatpush1.msra.mxu0 %v1067
        %2302 = vmatprep.subr.mxu0 0.0
        %2303 = vmatpush1.msra.mxu0 %v1068
        %2304 = vmatprep.subr.mxu0 0.0
        %2305 = vmatpush1.msra.mxu0 %v1069
        %2306 = vmatprep.subr.mxu0 0.0
        %2307 = vmatpush1.msra.mxu0 %v1070
        %2308 = vmatprep.subr.mxu0 0.0
        %2309 = vmatpush1.msra.mxu0 %v1071
        %2310 = vmatprep.subr.mxu0 0.0
        %2311 = vmatpush1.msra.mxu0 0.0
        %2312 = vmatprep.subr.mxu0 0.0
        %2313 = vmatpush1.msra.mxu0 0.0
        %2314 = vmatprep.subr.mxu0 0.0
        %2315 = vmatpush1.msra.mxu0 0.0
        %2316 = vmatprep.subr.mxu0 0.0
        %2317 = vmatpush1.msra.mxu0 0.0
        %2318 = vmatprep.subr.mxu0 0.0
        %2319 = vmatpush1.msra.mxu0 0.0
        %2320 = vmatprep.subr.mxu0 0.0
        %2321 = vmatpush1.msra.mxu0 0.0
        %2322 = vmatprep.subr.mxu0 0.0
        %2323 = vmatpush1.msra.mxu0 0.0
        %2324 = vmatprep.subr.mxu0 0.0
        %2325 = vmatpush1.msra.mxu0 0.0
        %2326 = vmatprep.subr.mxu0 0.0
        %2327 = vmatpush1.msra.mxu0 0.0
        %2328 = vmatprep.subr.mxu0 0.0
        %2329 = vmatpush1.msra.mxu0 0.0
        %2330 = vmatprep.subr.mxu0 0.0
        %2331 = vmatpush1.msra.mxu0 0.0
        %2332 = vmatprep.subr.mxu0 0.0
        %2333 = vmatpush1.msra.mxu0 0.0
        %2334 = vmatprep.subr.mxu0 0.0
        %2335 = vmatpush1.msra.mxu0 0.0
        %2336 = vmatprep.subr.mxu0 0.0
        %2337 = vmatpush1.msra.mxu0 0.0
        %2338 = vmatprep.subr.mxu0 0.0
        %2339 = vmatpush1.msra.mxu0 0.0
        %2340 = vmatprep.subr.mxu0 0.0
        %2341 = vmatpush1.msra.mxu0 0.0
        %2342 = vmatprep.mubr.f32.mxu0 0.0
        %2343 = vmatmul.mubr.f32.gmra.mrb[0].mxu0 %v2277
        %v2344 = vpop.f32.mrb[0].mxu0
        %v2345 = vadd.f32 0.0, %v2344
        %v2346 = vpop.f32.mrb[0].mxu0
        %2347 = vdwg.mxu0
        %v2348 = vadd.f32 %v2144, %v2345
        %v2350 = vlaneseq
        %v2351 = vshrl.u32 %v2350, 7
        %v2352 = vsub.s32 0, %v2351
        %v2353 = vrot.slane %v1072, %v2352
        %v2355 = vadd.f32 %v2348, %v2353
        %v2356 = vld [vmem:[%s31] sm:$0x1]
        %v2357 = vld [vmem:[%s33] sm:$0x1]
        %v2358 = vld [vmem:[%s35] sm:$0xff]
        %v2359 = vld [vmem:[%s35 + $0x8] sm:$0xff]
        %v2360 = vld [vmem:[%s35 + $0x10] sm:$0xff]
        %v2361 = vld [vmem:[%s35 + $0x18] sm:$0xff]
        %v2362 = vld [vmem:[%s37] sm:$0x1]
        %v2363 = vld [vmem:[%s39] sm:$0xff]
        %v2364 = vld [vmem:[%s39 + $0x8] sm:$0xff]
        %v2365 = vld [vmem:[%s39 + $0x10] sm:$0xff]
        %v2366 = vld [vmem:[%s39 + $0x18] sm:$0xff]
        %v2367 = vld [vmem:[%s41] sm:$0x1]
        %v2368 = vld [vmem:[%s43] sm:$0x1]
        %v2369 = vld [vmem:[%s45] sm:$0x1]
        %v2370 = vld [vmem:[%s47] sm:$0xff]
        %v2371 = vld [vmem:[%s47 + $0x8] sm:$0xff]
        %v2372 = vld [vmem:[%s47 + $0x10] sm:$0xff]
        %v2373 = vld [vmem:[%s47 + $0x18] sm:$0xff]
        %v2374 = vld [vmem:[%s49] sm:$0x1]
        %v2375 = vld [vmem:[%s51] sm:$0xff]
        %v2376 = vld [vmem:[%s51 + $0x8] sm:$0xff]
        %v2377 = vld [vmem:[%s51 + $0x10] sm:$0xff]
        %v2378 = vld [vmem:[%s51 + $0x18] sm:$0xff]
        %v2379 = vld [vmem:[%s51 + $0x20] sm:$0xff]
        %v2380 = vld [vmem:[%s51 + $0x28] sm:$0xff]
        %v2381 = vld [vmem:[%s51 + $0x30] sm:$0xff]
        %v2382 = vld [vmem:[%s51 + $0x38] sm:$0xff]
        %v2383 = vld [vmem:[%s51 + $0x40] sm:$0xff]
        %v2384 = vld [vmem:[%s51 + $0x48] sm:$0xff]
        %v2385 = vld [vmem:[%s51 + $0x50] sm:$0xff]
        %v2386 = vld [vmem:[%s51 + $0x58] sm:$0xff]
        %v2387 = vld [vmem:[%s51 + $0x60] sm:$0xff]
        %v2388 = vld [vmem:[%s51 + $0x68] sm:$0xff]
        %v2389 = vld [vmem:[%s51 + $0x70] sm:$0xff]
        %v2390 = vld [vmem:[%s51 + $0x78] sm:$0xff]
        %v2391 = vld [vmem:[%s53] sm:$0x1]
        %v2392 = vsel %vm1073, %v2355, 0.0
        %2393 = vadd.xlane.f32.xlu0 %v2392
        %v2394 = vpop.xlane.xlu0 %2393
        %v2395 = vmul.f32 %v2394, %v1077
        %v2396 = vsub.f32 %v2355, %v2395
        %v2397 = vmul.f32 %v2396, %v2396
        %v2398 = vsel %vm1073, %v2397, 0.0
        %2399 = vadd.xlane.f32.xlu0 %v2398
        %v2400 = vpop.xlane.xlu0 %2399
        %v2401 = vmul.f32 %v2400, %v1077
        %v2402 = vadd.f32 %v2401, 1e-05
        %v2403 = vrsqrt.pop %v2402
        %v2404 = vmul.f32 %v2396, %v2403
        %v2406 = vlaneseq
        %v2407 = vshrl.u32 %v2406, 7
        %v2408 = vsub.s32 0, %v2407
        %v2409 = vrot.slane %v2356, %v2408
        %v2411 = vmul.f32 %v2404, %v2409
        %v2413 = vlaneseq
        %v2414 = vshrl.u32 %v2413, 7
        %v2415 = vsub.s32 0, %v2414
        %v2416 = vrot.slane %v2357, %v2415
        %v2418 = vadd.f32 %v2411, %v2416
        %v2420 = vlaneseq
        %v2421 = vshrl.u32 %v2420, 7
        %v2422 = vsub.s32 0, %v2421
        %v2423 = vrot.slane %v2362, %v2422
        %v2426 = vsel %vm1073, %v2418, 0
        %2428 = vmatprep.subr.mxu0 0.0
        %2429 = vmatpush1.msra.mxu0 %v2358
        %2430 = vmatprep.subr.mxu0 0.0
        %2431 = vmatpush1.msra.mxu0 %v2359
        %2432 = vmatprep.subr.mxu0 0.0
        %2433 = vmatpush1.msra.mxu0 %v2360
        %2434 = vmatprep.subr.mxu0 0.0
        %2435 = vmatpush1.msra.mxu0 %v2361
        %2436 = vmatprep.subr.mxu0 0.0
        %2437 = vmatpush1.msra.mxu0 0.0
        %2438 = vmatprep.subr.mxu0 0.0
        %2439 = vmatpush1.msra.mxu0 0.0
        %2440 = vmatprep.subr.mxu0 0.0
        %2441 = vmatpush1.msra.mxu0 0.0
        %2442 = vmatprep.subr.mxu0 0.0
        %2443 = vmatpush1.msra.mxu0 0.0
        %2444 = vmatprep.subr.mxu0 0.0
        %2445 = vmatpush1.msra.mxu0 0.0
        %2446 = vmatprep.subr.mxu0 0.0
        %2447 = vmatpush1.msra.mxu0 0.0
        %2448 = vmatprep.subr.mxu0 0.0
        %2449 = vmatpush1.msra.mxu0 0.0
        %2450 = vmatprep.subr.mxu0 0.0
        %2451 = vmatpush1.msra.mxu0 0.0
        %2452 = vmatprep.subr.mxu0 0.0
        %2453 = vmatpush1.msra.mxu0 0.0
        %2454 = vmatprep.subr.mxu0 0.0
        %2455 = vmatpush1.msra.mxu0 0.0
        %2456 = vmatprep.subr.mxu0 0.0
        %2457 = vmatpush1.msra.mxu0 0.0
        %2458 = vmatprep.subr.mxu0 0.0
        %2459 = vmatpush1.msra.mxu0 0.0
        %2460 = vmatprep.subr.mxu0 0.0
        %2461 = vmatpush1.msra.mxu0 0.0
        %2462 = vmatprep.subr.mxu0 0.0
        %2463 = vmatpush1.msra.mxu0 0.0
        %2464 = vmatprep.subr.mxu0 0.0
        %2465 = vmatpush1.msra.mxu0 0.0
        %2466 = vmatprep.subr.mxu0 0.0
        %2467 = vmatpush1.msra.mxu0 0.0
        %2468 = vmatprep.subr.mxu0 0.0
        %2469 = vmatpush1.msra.mxu0 0.0
        %2470 = vmatprep.subr.mxu0 0.0
        %2471 = vmatpush1.msra.mxu0 0.0
        %2472 = vmatprep.subr.mxu0 0.0
        %2473 = vmatpush1.msra.mxu0 0.0
        %2474 = vmatprep.subr.mxu0 0.0
        %2475 = vmatpush1.msra.mxu0 0.0
        %2476 = vmatprep.subr.mxu0 0.0
        %2477 = vmatpush1.msra.mxu0 0.0
        %2478 = vmatprep.subr.mxu0 0.0
        %2479 = vmatpush1.msra.mxu0 0.0
        %2480 = vmatprep.subr.mxu0 0.0
        %2481 = vmatpush1.msra.mxu0 0.0
        %2482 = vmatprep.subr.mxu0 0.0
        %2483 = vmatpush1.msra.mxu0 0.0
        %2484 = vmatprep.subr.mxu0 0.0
        %2485 = vmatpush1.msra.mxu0 0.0
        %2486 = vmatprep.subr.mxu0 0.0
        %2487 = vmatpush1.msra.mxu0 0.0
        %2488 = vmatprep.subr.mxu0 0.0
        %2489 = vmatpush1.msra.mxu0 0.0
        %2490 = vmatprep.subr.mxu0 0.0
        %2491 = vmatpush1.msra.mxu0 0.0
        %2492 = vmatprep.mubr.f32.mxu0 0.0
        %2493 = vmatmul.mubr.f32.gmra.mrb[0].mxu0 %v2426
        %v2494 = vpop.f32.mrb[0].mxu0
        %v2495 = vadd.f32 %v2423, %v2494
        %v2496 = vpop.f32.mrb[0].mxu0
        %2497 = vdwg.mxu0
        %v2498 = vmul.f32 %v2495, 0.35355338
        %2500 = vrot.lane.b32.xlu0 %v2495, 96
        %v2501 = vpop.permute.xlu0 %2500
        %v2503 = vsel %vm1185, %v2498, 0
        %v2505 = vsel %vm1185, %v2501, 0
        %2507 = vmatprep.subr.mxu0 0.0
        %2508 = vmatpush1.xpose.msra.mxu0 %v2505
        %2509 = vmatprep.subr.mxu0 0.0
        %2510 = vmatpush1.xpose.msra.mxu0 0.0
        %2511 = vmatprep.subr.mxu0 0.0
        %2512 = vmatpush1.xpose.msra.mxu0 0.0
        %2513 = vmatprep.subr.mxu0 0.0
        %2514 = vmatpush1.xpose.msra.mxu0 0.0
        %2515 = vmatprep.subr.mxu0 0.0
        %2516 = vmatpush1.xpose.msra.mxu0 0.0
        %2517 = vmatprep.subr.mxu0 0.0
        %2518 = vmatpush1.xpose.msra.mxu0 0.0
        %2519 = vmatprep.subr.mxu0 0.0
        %2520 = vmatpush1.xpose.msra.mxu0 0.0
        %2521 = vmatprep.subr.mxu0 0.0
        %2522 = vmatpush1.xpose.msra.mxu0 0.0
        %2523 = vmatprep.subr.mxu0 0.0
        %2524 = vmatpush1.xpose.msra.mxu0 0.0
        %2525 = vmatprep.subr.mxu0 0.0
        %2526 = vmatpush1.xpose.msra.mxu0 0.0
        %2527 = vmatprep.subr.mxu0 0.0
        %2528 = vmatpush1.xpose.msra.mxu0 0.0
        %2529 = vmatprep.subr.mxu0 0.0
        %2530 = vmatpush1.xpose.msra.mxu0 0.0
        %2531 = vmatprep.subr.mxu0 0.0
        %2532 = vmatpush1.xpose.msra.mxu0 0.0
        %2533 = vmatprep.subr.mxu0 0.0
        %2534 = vmatpush1.xpose.msra.mxu0 0.0
        %2535 = vmatprep.subr.mxu0 0.0
        %2536 = vmatpush1.xpose.msra.mxu0 0.0
        %2537 = vmatprep.subr.mxu0 0.0
        %2538 = vmatpush1.xpose.msra.mxu0 0.0
        %2539 = vmatprep.subr.mxu0 0.0
        %2540 = vmatpush1.xpose.msra.mxu0 0.0
        %2541 = vmatprep.subr.mxu0 0.0
        %2542 = vmatpush1.xpose.msra.mxu0 0.0
        %2543 = vmatprep.subr.mxu0 0.0
        %2544 = vmatpush1.xpose.msra.mxu0 0.0
        %2545 = vmatprep.subr.mxu0 0.0
        %2546 = vmatpush1.xpose.msra.mxu0 0.0
        %2547 = vmatprep.subr.mxu0 0.0
        %2548 = vmatpush1.xpose.msra.mxu0 0.0
        %2549 = vmatprep.subr.mxu0 0.0
        %2550 = vmatpush1.xpose.msra.mxu0 0.0
        %2551 = vmatprep.subr.mxu0 0.0
        %2552 = vmatpush1.xpose.msra.mxu0 0.0
        %2553 = vmatprep.subr.mxu0 0.0
        %2554 = vmatpush1.xpose.msra.mxu0 0.0
        %2555 = vmatprep.subr.mxu0 0.0
        %2556 = vmatpush1.xpose.msra.mxu0 0.0
        %2557 = vmatprep.subr.mxu0 0.0
        %2558 = vmatpush1.xpose.msra.mxu0 0.0
        %2559 = vmatprep.subr.mxu0 0.0
        %2560 = vmatpush1.xpose.msra.mxu0 0.0
        %2561 = vmatprep.subr.mxu0 0.0
        %2562 = vmatpush1.xpose.msra.mxu0 0.0
        %2563 = vmatprep.subr.mxu0 0.0
        %2564 = vmatpush1.xpose.msra.mxu0 0.0
        %2565 = vmatprep.subr.mxu0 0.0
        %2566 = vmatpush1.xpose.msra.mxu0 0.0
        %2567 = vmatprep.subr.mxu0 0.0
        %2568 = vmatpush1.xpose.msra.mxu0 0.0
        %2569 = vmatprep.subr.mxu0 0.0
        %2570 = vmatpush1.xpose.msra.mxu0 0.0
        %2571 = vmatprep.mubr.f32.mxu0 0.0
        %2572 = vmatmul.mubr.f32.gmra.mrb[0].mxu0 %v2503
        %v2573 = vpop.f32.mrb[0].mxu0
        %v2574 = vadd.f32 0.0, %v2573
        %v2575 = vpop.f32.mrb[0].mxu0
        %2576 = vdwg.mxu0
        %v2577 = vsel %vm1185, %v2574, -inf
        %2578 = vmax.xlane.f32.xlu0 %v2577
        %v2579 = vpop.xlane.xlu0 %2578
        %v2580 = vsub.f32 %v2574, %v2579
        %v2581 = vmul.f32 %v2580, 1.442695
        %v2582 = vpow.pop %v2581
        %v2583 = vsel %vm1185, %v2582, 0.0
        %2584 = vadd.xlane.f32.xlu0 %v2583
        %v2585 = vpop.xlane.xlu0 %2584
        %v2586 = vrcp.pop %v2585
        %v2587 = vmul.f32 %v2582, %v2586
        %2588 = vrot.lane.b32.xlu0 %v2495, 64
        %v2589 = vpop.permute.xlu0 %2588
        %v2592 = vsel %vm1185, %v2587, 0
        %2594 = vmatprep.subr.mxu0 0.0
        %2595 = vmatpush1.msra.mxu0 %v2589
        %2596 = vmatprep.subr.mxu0 0.0
        %2597 = vmatpush1.msra.mxu0 0.0
        %2598 = vmatprep.subr.mxu0 0.0
        %2599 = vmatpush1.msra.mxu0 0.0
        %2600 = vmatprep.subr.mxu0 0.0
        %2601 = vmatpush1.msra.mxu0 0.0
        %2602 = vmatprep.subr.mxu0 0.0
        %2603 = vmatpush1.msra.mxu0 0.0
        %2604 = vmatprep.subr.mxu0 0.0
        %2605 = vmatpush1.msra.mxu0 0.0
        %2606 = vmatprep.subr.mxu0 0.0
        %2607 = vmatpush1.msra.mxu0 0.0
        %2608 = vmatprep.subr.mxu0 0.0
        %2609 = vmatpush1.msra.mxu0 0.0
        %2610 = vmatprep.subr.mxu0 0.0
        %2611 = vmatpush1.msra.mxu0 0.0
        %2612 = vmatprep.subr.mxu0 0.0
        %2613 = vmatpush1.msra.mxu0 0.0
        %2614 = vmatprep.subr.mxu0 0.0
        %2615 = vmatpush1.msra.mxu0 0.0
        %2616 = vmatprep.subr.mxu0 0.0
        %2617 = vmatpush1.msra.mxu0 0.0
        %2618 = vmatprep.subr.mxu0 0.0
        %2619 = vmatpush1.msra.mxu0 0.0
        %2620 = vmatprep.subr.mxu0 0.0
        %2621 = vmatpush1.msra.mxu0 0.0
        %2622 = vmatprep.subr.mxu0 0.0
        %2623 = vmatpush1.msra.mxu0 0.0
        %2624 = vmatprep.subr.mxu0 0.0
        %2625 = vmatpush1.msra.mxu0 0.0
        %2626 = vmatprep.subr.mxu0 0.0
        %2627 = vmatpush1.msra.mxu0 0.0
        %2628 = vmatprep.subr.mxu0 0.0
        %2629 = vmatpush1.msra.mxu0 0.0
        %2630 = vmatprep.subr.mxu0 0.0
        %2631 = vmatpush1.msra.mxu0 0.0
        %2632 = vmatprep.subr.mxu0 0.0
        %2633 = vmatpush1.msra.mxu0 0.0
        %2634 = vmatprep.subr.mxu0 0.0
        %2635 = vmatpush1.msra.mxu0 0.0
        %2636 = vmatprep.subr.mxu0 0.0
        %2637 = vmatpush1.msra.mxu0 0.0
        %2638 = vmatprep.subr.mxu0 0.0
        %2639 = vmatpush1.msra.mxu0 0.0
        %2640 = vmatprep.subr.mxu0 0.0
        %2641 = vmatpush1.msra.mxu0 0.0
        %2642 = vmatprep.subr.mxu0 0.0
        %2643 = vmatpush1.msra.mxu0 0.0
        %2644 = vmatprep.subr.mxu0 0.0
        %2645 = vmatpush1.msra.mxu0 0.0
        %2646 = vmatprep.subr.mxu0 0.0
        %2647 = vmatpush1.msra.mxu0 0.0
        %2648 = vmatprep.subr.mxu0 0.0
        %2649 = vmatpush1.msra.mxu0 0.0
        %2650 = vmatprep.subr.mxu0 0.0
        %2651 = vmatpush1.msra.mxu0 0.0
        %2652 = vmatprep.subr.mxu0 0.0
        %2653 = vmatpush1.msra.mxu0 0.0
        %2654 = vmatprep.subr.mxu0 0.0
        %2655 = vmatpush1.msra.mxu0 0.0
        %2656 = vmatprep.subr.mxu0 0.0
        %2657 = vmatpush1.msra.mxu0 0.0
        %2658 = vmatprep.mubr.f32.mxu0 0.0
        %2659 = vmatmul.mubr.f32.gmra.mrb[0].mxu0 %v2592
        %v2660 = vpop.f32.mrb[0].mxu0
        %v2661 = vadd.f32 0.0, %v2660
        %v2662 = vpop.f32.mrb[0].mxu0
        %2663 = vdwg.mxu0
        %2664 = vrot.lane.b32.xlu0 %v2498, 120
        %v2665 = vpop.permute.xlu0 %2664
        %2666 = vrot.lane.b32.xlu0 %v2495, 88
        %v2667 = vpop.permute.xlu0 %2666
        %v2668 = vsel %vm1185, %v2665, 0
        %v2670 = vsel %vm1185, %v2667, 0
        %2672 = vmatprep.subr.mxu0 0.0
        %2673 = vmatpush1.xpose.msra.mxu0 %v2670
        %2674 = vmatprep.subr.mxu0 0.0
        %2675 = vmatpush1.xpose.msra.mxu0 0.0
        %2676 = vmatprep.subr.mxu0 0.0
        %2677 = vmatpush1.xpose.msra.mxu0 0.0
        %2678 = vmatprep.subr.mxu0 0.0
        %2679 = vmatpush1.xpose.msra.mxu0 0.0
        %2680 = vmatprep.subr.mxu0 0.0
        %2681 = vmatpush1.xpose.msra.mxu0 0.0
        %2682 = vmatprep.subr.mxu0 0.0
        %2683 = vmatpush1.xpose.msra.mxu0 0.0
        %2684 = vmatprep.subr.mxu0 0.0
        %2685 = vmatpush1.xpose.msra.mxu0 0.0
        %2686 = vmatprep.subr.mxu0 0.0
        %2687 = vmatpush1.xpose.msra.mxu0 0.0
        %2688 = vmatprep.subr.mxu0 0.0
        %2689 = vmatpush1.xpose.msra.mxu0 0.0
        %2690 = vmatprep.subr.mxu0 0.0
        %2691 = vmatpush1.xpose.msra.mxu0 0.0
        %2692 = vmatprep.subr.mxu0 0.0
        %2693 = vmatpush1.xpose.msra.mxu0 0.0
        %2694 = vmatprep.subr.mxu0 0.0
        %2695 = vmatpush1.xpose.msra.mxu0 0.0
        %2696 = vmatprep.subr.mxu0 0.0
        %2697 = vmatpush1.xpose.msra.mxu0 0.0
        %2698 = vmatprep.subr.mxu0 0.0
        %2699 = vmatpush1.xpose.msra.mxu0 0.0
        %2700 = vmatprep.subr.mxu0 0.0
        %2701 = vmatpush1.xpose.msra.mxu0 0.0
        %2702 = vmatprep.subr.mxu0 0.0
        %2703 = vmatpush1.xpose.msra.mxu0 0.0
        %2704 = vmatprep.subr.mxu0 0.0
        %2705 = vmatpush1.xpose.msra.mxu0 0.0
        %2706 = vmatprep.subr.mxu0 0.0
        %2707 = vmatpush1.xpose.msra.mxu0 0.0
        %2708 = vmatprep.subr.mxu0 0.0
        %2709 = vmatpush1.xpose.msra.mxu0 0.0
        %2710 = vmatprep.subr.mxu0 0.0
        %2711 = vmatpush1.xpose.msra.mxu0 0.0
        %2712 = vmatprep.subr.mxu0 0.0
        %2713 = vmatpush1.xpose.msra.mxu0 0.0
        %2714 = vmatprep.subr.mxu0 0.0
        %2715 = vmatpush1.xpose.msra.mxu0 0.0
        %2716 = vmatprep.subr.mxu0 0.0
        %2717 = vmatpush1.xpose.msra.mxu0 0.0
        %2718 = vmatprep.subr.mxu0 0.0
        %2719 = vmatpush1.xpose.msra.mxu0 0.0
        %2720 = vmatprep.subr.mxu0 0.0
        %2721 = vmatpush1.xpose.msra.mxu0 0.0
        %2722 = vmatprep.subr.mxu0 0.0
        %2723 = vmatpush1.xpose.msra.mxu0 0.0
        %2724 = vmatprep.subr.mxu0 0.0
        %2725 = vmatpush1.xpose.msra.mxu0 0.0
        %2726 = vmatprep.subr.mxu0 0.0
        %2727 = vmatpush1.xpose.msra.mxu0 0.0
        %2728 = vmatprep.subr.mxu0 0.0
        %2729 = vmatpush1.xpose.msra.mxu0 0.0
        %2730 = vmatprep.subr.mxu0 0.0
        %2731 = vmatpush1.xpose.msra.mxu0 0.0
        %2732 = vmatprep.subr.mxu0 0.0
        %2733 = vmatpush1.xpose.msra.mxu0 0.0
        %2734 = vmatprep.subr.mxu0 0.0
        %2735 = vmatpush1.xpose.msra.mxu0 0.0
        %2736 = vmatprep.mubr.f32.mxu0 0.0
        %2737 = vmatmul.mubr.f32.gmra.mrb[0].mxu0 %v2668
        %v2738 = vpop.f32.mrb[0].mxu0
        %v2739 = vadd.f32 0.0, %v2738
        %v2740 = vpop.f32.mrb[0].mxu0
        %2741 = vdwg.mxu0
        %v2742 = vsel %vm1185, %v2739, -inf
        %2743 = vmax.xlane.f32.xlu0 %v2742
        %v2744 = vpop.xlane.xlu0 %2743
        %v2745 = vsub.f32 %v2739, %v2744
        %v2746 = vmul.f32 %v2745, 1.442695
        %v2747 = vpow.pop %v2746
        %v2748 = vsel %vm1185, %v2747, 0.0
        %2749 = vadd.xlane.f32.xlu0 %v2748
        %v2750 = vpop.xlane.xlu0 %2749
        %v2751 = vrcp.pop %v2750
        %v2752 = vmul.f32 %v2747, %v2751
        %2753 = vrot.lane.b32.xlu0 %v2495, 56
        %v2754 = vpop.permute.xlu0 %2753
        %v2757 = vsel %vm1185, %v2752, 0
        %2759 = vmatprep.subr.mxu0 0.0
        %2760 = vmatpush1.msra.mxu0 %v2754
        %2761 = vmatprep.subr.mxu0 0.0
        %2762 = vmatpush1.msra.mxu0 0.0
        %2763 = vmatprep.subr.mxu0 0.0
        %2764 = vmatpush1.msra.mxu0 0.0
        %2765 = vmatprep.subr.mxu0 0.0
        %2766 = vmatpush1.msra.mxu0 0.0
        %2767 = vmatprep.subr.mxu0 0.0
        %2768 = vmatpush1.msra.mxu0 0.0
        %2769 = vmatprep.subr.mxu0 0.0
        %2770 = vmatpush1.msra.mxu0 0.0
        %2771 = vmatprep.subr.mxu0 0.0
        %2772 = vmatpush1.msra.mxu0 0.0
        %2773 = vmatprep.subr.mxu0 0.0
        %2774 = vmatpush1.msra.mxu0 0.0
        %2775 = vmatprep.subr.mxu0 0.0
        %2776 = vmatpush1.msra.mxu0 0.0
        %2777 = vmatprep.subr.mxu0 0.0
        %2778 = vmatpush1.msra.mxu0 0.0
        %2779 = vmatprep.subr.mxu0 0.0
        %2780 = vmatpush1.msra.mxu0 0.0
        %2781 = vmatprep.subr.mxu0 0.0
        %2782 = vmatpush1.msra.mxu0 0.0
        %2783 = vmatprep.subr.mxu0 0.0
        %2784 = vmatpush1.msra.mxu0 0.0
        %2785 = vmatprep.subr.mxu0 0.0
        %2786 = vmatpush1.msra.mxu0 0.0
        %2787 = vmatprep.subr.mxu0 0.0
        %2788 = vmatpush1.msra.mxu0 0.0
        %2789 = vmatprep.subr.mxu0 0.0
        %2790 = vmatpush1.msra.mxu0 0.0
        %2791 = vmatprep.subr.mxu0 0.0
        %2792 = vmatpush1.msra.mxu0 0.0
        %2793 = vmatprep.subr.mxu0 0.0
        %2794 = vmatpush1.msra.mxu0 0.0
        %2795 = vmatprep.subr.mxu0 0.0
        %2796 = vmatpush1.msra.mxu0 0.0
        %2797 = vmatprep.subr.mxu0 0.0
        %2798 = vmatpush1.msra.mxu0 0.0
        %2799 = vmatprep.subr.mxu0 0.0
        %2800 = vmatpush1.msra.mxu0 0.0
        %2801 = vmatprep.subr.mxu0 0.0
        %2802 = vmatpush1.msra.mxu0 0.0
        %2803 = vmatprep.subr.mxu0 0.0
        %2804 = vmatpush1.msra.mxu0 0.0
        %2805 = vmatprep.subr.mxu0 0.0
        %2806 = vmatpush1.msra.mxu0 0.0
        %2807 = vmatprep.subr.mxu0 0.0
        %2808 = vmatpush1.msra.mxu0 0.0
        %2809 = vmatprep.subr.mxu0 0.0
        %2810 = vmatpush1.msra.mxu0 0.0
        %2811 = vmatprep.subr.mxu0 0.0
        %2812 = vmatpush1.msra.mxu0 0.0
        %2813 = vmatprep.subr.mxu0 0.0
        %2814 = vmatpush1.msra.mxu0 0.0
        %2815 = vmatprep.subr.mxu0 0.0
        %2816 = vmatpush1.msra.mxu0 0.0
        %2817 = vmatprep.subr.mxu0 0.0
        %2818 = vmatpush1.msra.mxu0 0.0
        %2819 = vmatprep.subr.mxu0 0.0
        %2820 = vmatpush1.msra.mxu0 0.0
        %2821 = vmatprep.subr.mxu0 0.0
        %2822 = vmatpush1.msra.mxu0 0.0
        %2823 = vmatprep.mubr.f32.mxu0 0.0
        %2824 = vmatmul.mubr.f32.gmra.mrb[0].mxu0 %v2757
        %v2825 = vpop.f32.mrb[0].mxu0
        %v2826 = vadd.f32 0.0, %v2825
        %v2827 = vpop.f32.mrb[0].mxu0
        %2828 = vdwg.mxu0
        %v2830 = vsel %vm1185, %v2826, 0
        %2832 = vmatprep.subr.mxu0 0.0
        %2833 = vmatpush1.msra.mxu0 %v2364
        %2834 = vmatprep.subr.mxu0 0.0
        %2835 = vmatpush1.msra.mxu0 0.0
        %2836 = vmatprep.subr.mxu0 0.0
        %2837 = vmatpush1.msra.mxu0 0.0
        %2838 = vmatprep.subr.mxu0 0.0
        %2839 = vmatpush1.msra.mxu0 0.0
        %2840 = vmatprep.subr.mxu0 0.0
        %2841 = vmatpush1.msra.mxu0 0.0
        %2842 = vmatprep.subr.mxu0 0.0
        %2843 = vmatpush1.msra.mxu0 0.0
        %2844 = vmatprep.subr.mxu0 0.0
        %2845 = vmatpush1.msra.mxu0 0.0
        %2846 = vmatprep.subr.mxu0 0.0
        %2847 = vmatpush1.msra.mxu0 0.0
        %2848 = vmatprep.subr.mxu0 0.0
        %2849 = vmatpush1.msra.mxu0 0.0
        %2850 = vmatprep.subr.mxu0 0.0
        %2851 = vmatpush1.msra.mxu0 0.0
        %2852 = vmatprep.subr.mxu0 0.0
        %2853 = vmatpush1.msra.mxu0 0.0
        %2854 = vmatprep.subr.mxu0 0.0
        %2855 = vmatpush1.msra.mxu0 0.0
        %2856 = vmatprep.subr.mxu0 0.0
        %2857 = vmatpush1.msra.mxu0 0.0
        %2858 = vmatprep.subr.mxu0 0.0
        %2859 = vmatpush1.msra.mxu0 0.0
        %2860 = vmatprep.subr.mxu0 0.0
        %2861 = vmatpush1.msra.mxu0 0.0
        %2862 = vmatprep.subr.mxu0 0.0
        %2863 = vmatpush1.msra.mxu0 0.0
        %2864 = vmatprep.subr.mxu0 0.0
        %2865 = vmatpush1.msra.mxu0 0.0
        %2866 = vmatprep.subr.mxu0 0.0
        %2867 = vmatpush1.msra.mxu0 0.0
        %2868 = vmatprep.subr.mxu0 0.0
        %2869 = vmatpush1.msra.mxu0 0.0
        %2870 = vmatprep.subr.mxu0 0.0
        %2871 = vmatpush1.msra.mxu0 0.0
        %2872 = vmatprep.subr.mxu0 0.0
        %2873 = vmatpush1.msra.mxu0 0.0
        %2874 = vmatprep.subr.mxu0 0.0
        %2875 = vmatpush1.msra.mxu0 0.0
        %2876 = vmatprep.subr.mxu0 0.0
        %2877 = vmatpush1.msra.mxu0 0.0
        %2878 = vmatprep.subr.mxu0 0.0
        %2879 = vmatpush1.msra.mxu0 0.0
        %2880 = vmatprep.subr.mxu0 0.0
        %2881 = vmatpush1.msra.mxu0 0.0
        %2882 = vmatprep.subr.mxu0 0.0
        %2883 = vmatpush1.msra.mxu0 0.0
        %2884 = vmatprep.subr.mxu0 0.0
        %2885 = vmatpush1.msra.mxu0 0.0
        %2886 = vmatprep.subr.mxu0 0.0
        %2887 = vmatpush1.msra.mxu0 0.0
        %2888 = vmatprep.subr.mxu0 0.0
        %2889 = vmatpush1.msra.mxu0 0.0
        %2890 = vmatprep.subr.mxu0 0.0
        %2891 = vmatpush1.msra.mxu0 0.0
        %2892 = vmatprep.subr.mxu0 0.0
        %2893 = vmatpush1.msra.mxu0 0.0
        %2894 = vmatprep.subr.mxu0 0.0
        %2895 = vmatpush1.msra.mxu0 0.0
        %2896 = vmatprep.mubr.f32.mxu0 0.0
        %2897 = vmatmul.mubr.f32.gmra.mrb[0].mxu0 %v2830
        %v2898 = vpop.f32.mrb[0].mxu0
        %v2899 = vadd.f32 0.0, %v2898
        %v2900 = vpop.f32.mrb[0].mxu0
        %2901 = vdwg.mxu0
        %v2903 = vsel %vm1185, %v2661, 0
        %2905 = vmatprep.subr.mxu0 0.0
        %2906 = vmatpush1.msra.mxu0 %v2363
        %2907 = vmatprep.subr.mxu0 0.0
        %2908 = vmatpush1.msra.mxu0 0.0
        %2909 = vmatprep.subr.mxu0 0.0
        %2910 = vmatpush1.msra.mxu0 0.0
        %2911 = vmatprep.subr.mxu0 0.0
        %2912 = vmatpush1.msra.mxu0 0.0
        %2913 = vmatprep.subr.mxu0 0.0
        %2914 = vmatpush1.msra.mxu0 0.0
        %2915 = vmatprep.subr.mxu0 0.0
        %2916 = vmatpush1.msra.mxu0 0.0
        %2917 = vmatprep.subr.mxu0 0.0
        %2918 = vmatpush1.msra.mxu0 0.0
        %2919 = vmatprep.subr.mxu0 0.0
        %2920 = vmatpush1.msra.mxu0 0.0
        %2921 = vmatprep.subr.mxu0 0.0
        %2922 = vmatpush1.msra.mxu0 0.0
        %2923 = vmatprep.subr.mxu0 0.0
        %2924 = vmatpush1.msra.mxu0 0.0
        %2925 = vmatprep.subr.mxu0 0.0
        %2926 = vmatpush1.msra.mxu0 0.0
        %2927 = vmatprep.subr.mxu0 0.0
        %2928 = vmatpush1.msra.mxu0 0.0
        %2929 = vmatprep.subr.mxu0 0.0
        %2930 = vmatpush1.msra.mxu0 0.0
        %2931 = vmatprep.subr.mxu0 0.0
        %2932 = vmatpush1.msra.mxu0 0.0
        %2933 = vmatprep.subr.mxu0 0.0
        %2934 = vmatpush1.msra.mxu0 0.0
        %2935 = vmatprep.subr.mxu0 0.0
        %2936 = vmatpush1.msra.mxu0 0.0
        %2937 = vmatprep.subr.mxu0 0.0
        %2938 = vmatpush1.msra.mxu0 0.0
        %2939 = vmatprep.subr.mxu0 0.0
        %2940 = vmatpush1.msra.mxu0 0.0
        %2941 = vmatprep.subr.mxu0 0.0
        %2942 = vmatpush1.msra.mxu0 0.0
        %2943 = vmatprep.subr.mxu0 0.0
        %2944 = vmatpush1.msra.mxu0 0.0
        %2945 = vmatprep.subr.mxu0 0.0
        %2946 = vmatpush1.msra.mxu0 0.0
        %2947 = vmatprep.subr.mxu0 0.0
        %2948 = vmatpush1.msra.mxu0 0.0
        %2949 = vmatprep.subr.mxu0 0.0
        %2950 = vmatpush1.msra.mxu0 0.0
        %2951 = vmatprep.subr.mxu0 0.0
        %2952 = vmatpush1.msra.mxu0 0.0
        %2953 = vmatprep.subr.mxu0 0.0
        %2954 = vmatpush1.msra.mxu0 0.0
        %2955 = vmatprep.subr.mxu0 0.0
        %2956 = vmatpush1.msra.mxu0 0.0
        %2957 = vmatprep.subr.mxu0 0.0
        %2958 = vmatpush1.msra.mxu0 0.0
        %2959 = vmatprep.subr.mxu0 0.0
        %2960 = vmatpush1.msra.mxu0 0.0
        %2961 = vmatprep.subr.mxu0 0.0
        %2962 = vmatpush1.msra.mxu0 0.0
        %2963 = vmatprep.subr.mxu0 0.0
        %2964 = vmatpush1.msra.mxu0 0.0
        %2965 = vmatprep.subr.mxu0 0.0
        %2966 = vmatpush1.msra.mxu0 0.0
        %2967 = vmatprep.subr.mxu0 0.0
        %2968 = vmatpush1.msra.mxu0 0.0
        %2969 = vmatprep.mubr.f32.mxu0 0.0
        %2970 = vmatmul.mubr.f32.gmra.mrb[0].mxu0 %v2903
        %v2971 = vpop.f32.mrb[0].mxu0
        %v2972 = vadd.f32 %v2899, %v2971
        %v2973 = vpop.f32.mrb[0].mxu0
        %2974 = vdwg.mxu0
        %2975 = vrot.lane.b32.xlu0 %v2498, 112
        %v2976 = vpop.permute.xlu0 %2975
        %2977 = vrot.lane.b32.xlu0 %v2495, 80
        %v2978 = vpop.permute.xlu0 %2977
        %v2979 = vsel %vm1185, %v2976, 0
        %v2981 = vsel %vm1185, %v2978, 0
        %2983 = vmatprep.subr.mxu0 0.0
        %2984 = vmatpush1.xpose.msra.mxu0 %v2981
        %2985 = vmatprep.subr.mxu0 0.0
        %2986 = vmatpush1.xpose.msra.mxu0 0.0
        %2987 = vmatprep.subr.mxu0 0.0
        %2988 = vmatpush1.xpose.msra.mxu0 0.0
        %2989 = vmatprep.subr.mxu0 0.0
        %2990 = vmatpush1.xpose.msra.mxu0 0.0
        %2991 = vmatprep.subr.mxu0 0.0
        %2992 = vmatpush1.xpose.msra.mxu0 0.0
        %2993 = vmatprep.subr.mxu0 0.0
        %2994 = vmatpush1.xpose.msra.mxu0 0.0
        %2995 = vmatprep.subr.mxu0 0.0
        %2996 = vmatpush1.xpose.msra.mxu0 0.0
        %2997 = vmatprep.subr.mxu0 0.0
        %2998 = vmatpush1.xpose.msra.mxu0 0.0
        %2999 = vmatprep.subr.mxu0 0.0
        %3000 = vmatpush1.xpose.msra.mxu0 0.0
        %3001 = vmatprep.subr.mxu0 0.0
        %3002 = vmatpush1.xpose.msra.mxu0 0.0
        %3003 = vmatprep.subr.mxu0 0.0
        %3004 = vmatpush1.xpose.msra.mxu0 0.0
        %3005 = vmatprep.subr.mxu0 0.0
        %3006 = vmatpush1.xpose.msra.mxu0 0.0
        %3007 = vmatprep.subr.mxu0 0.0
        %3008 = vmatpush1.xpose.msra.mxu0 0.0
        %3009 = vmatprep.subr.mxu0 0.0
        %3010 = vmatpush1.xpose.msra.mxu0 0.0
        %3011 = vmatprep.subr.mxu0 0.0
        %3012 = vmatpush1.xpose.msra.mxu0 0.0
        %3013 = vmatprep.subr.mxu0 0.0
        %3014 = vmatpush1.xpose.msra.mxu0 0.0
        %3015 = vmatprep.subr.mxu0 0.0
        %3016 = vmatpush1.xpose.msra.mxu0 0.0
        %3017 = vmatprep.subr.mxu0 0.0
        %3018 = vmatpush1.xpose.msra.mxu0 0.0
        %3019 = vmatprep.subr.mxu0 0.0
        %3020 = vmatpush1.xpose.msra.mxu0 0.0
        %3021 = vmatprep.subr.mxu0 0.0
        %3022 = vmatpush1.xpose.msra.mxu0 0.0
        %3023 = vmatprep.subr.mxu0 0.0
        %3024 = vmatpush1.xpose.msra.mxu0 0.0
        %3025 = vmatprep.subr.mxu0 0.0
        %3026 = vmatpush1.xpose.msra.mxu0 0.0
        %3027 = vmatprep.subr.mxu0 0.0
        %3028 = vmatpush1.xpose.msra.mxu0 0.0
        %3029 = vmatprep.subr.mxu0 0.0
        %3030 = vmatpush1.xpose.msra.mxu0 0.0
        %3031 = vmatprep.subr.mxu0 0.0
        %3032 = vmatpush1.xpose.msra.mxu0 0.0
        %3033 = vmatprep.subr.mxu0 0.0
        %3034 = vmatpush1.xpose.msra.mxu0 0.0
        %3035 = vmatprep.subr.mxu0 0.0
        %3036 = vmatpush1.xpose.msra.mxu0 0.0
        %3037 = vmatprep.subr.mxu0 0.0
        %3038 = vmatpush1.xpose.msra.mxu0 0.0
        %3039 = vmatprep.subr.mxu0 0.0
        %3040 = vmatpush1.xpose.msra.mxu0 0.0
        %3041 = vmatprep.subr.mxu0 0.0
        %3042 = vmatpush1.xpose.msra.mxu0 0.0
        %3043 = vmatprep.subr.mxu0 0.0
        %3044 = vmatpush1.xpose.msra.mxu0 0.0
        %3045 = vmatprep.subr.mxu0 0.0
        %3046 = vmatpush1.xpose.msra.mxu0 0.0
        %3047 = vmatprep.mubr.f32.mxu0 0.0
        %3048 = vmatmul.mubr.f32.gmra.mrb[0].mxu0 %v2979
        %v3049 = vpop.f32.mrb[0].mxu0
        %v3050 = vadd.f32 0.0, %v3049
        %v3051 = vpop.f32.mrb[0].mxu0
        %3052 = vdwg.mxu0
        %v3053 = vsel %vm1185, %v3050, -inf
        %3054 = vmax.xlane.f32.xlu0 %v3053
        %v3055 = vpop.xlane.xlu0 %3054
        %v3056 = vsub.f32 %v3050, %v3055
        %v3057 = vmul.f32 %v3056, 1.442695
        %v3058 = vpow.pop %v3057
        %v3059 = vsel %vm1185, %v3058, 0.0
        %3060 = vadd.xlane.f32.xlu0 %v3059
        %v3061 = vpop.xlane.xlu0 %3060
        %v3062 = vrcp.pop %v3061
        %v3063 = vmul.f32 %v3058, %v3062
        %3064 = vrot.lane.b32.xlu0 %v2495, 48
        %v3065 = vpop.permute.xlu0 %3064
        %v3068 = vsel %vm1185, %v3063, 0
        %3070 = vmatprep.subr.mxu0 0.0
        %3071 = vmatpush1.msra.mxu0 %v3065
        %3072 = vmatprep.subr.mxu0 0.0
        %3073 = vmatpush1.msra.mxu0 0.0
        %3074 = vmatprep.subr.mxu0 0.0
        %3075 = vmatpush1.msra.mxu0 0.0
        %3076 = vmatprep.subr.mxu0 0.0
        %3077 = vmatpush1.msra.mxu0 0.0
        %3078 = vmatprep.subr.mxu0 0.0
        %3079 = vmatpush1.msra.mxu0 0.0
        %3080 = vmatprep.subr.mxu0 0.0
        %3081 = vmatpush1.msra.mxu0 0.0
        %3082 = vmatprep.subr.mxu0 0.0
        %3083 = vmatpush1.msra.mxu0 0.0
        %3084 = vmatprep.subr.mxu0 0.0
        %3085 = vmatpush1.msra.mxu0 0.0
        %3086 = vmatprep.subr.mxu0 0.0
        %3087 = vmatpush1.msra.mxu0 0.0
        %3088 = vmatprep.subr.mxu0 0.0
        %3089 = vmatpush1.msra.mxu0 0.0
        %3090 = vmatprep.subr.mxu0 0.0
        %3091 = vmatpush1.msra.mxu0 0.0
        %3092 = vmatprep.subr.mxu0 0.0
        %3093 = vmatpush1.msra.mxu0 0.0
        %3094 = vmatprep.subr.mxu0 0.0
        %3095 = vmatpush1.msra.mxu0 0.0
        %3096 = vmatprep.subr.mxu0 0.0
        %3097 = vmatpush1.msra.mxu0 0.0
        %3098 = vmatprep.subr.mxu0 0.0
        %3099 = vmatpush1.msra.mxu0 0.0
        %3100 = vmatprep.subr.mxu0 0.0
        %3101 = vmatpush1.msra.mxu0 0.0
        %3102 = vmatprep.subr.mxu0 0.0
        %3103 = vmatpush1.msra.mxu0 0.0
        %3104 = vmatprep.subr.mxu0 0.0
        %3105 = vmatpush1.msra.mxu0 0.0
        %3106 = vmatprep.subr.mxu0 0.0
        %3107 = vmatpush1.msra.mxu0 0.0
        %3108 = vmatprep.subr.mxu0 0.0
        %3109 = vmatpush1.msra.mxu0 0.0
        %3110 = vmatprep.subr.mxu0 0.0
        %3111 = vmatpush1.msra.mxu0 0.0
        %3112 = vmatprep.subr.mxu0 0.0
        %3113 = vmatpush1.msra.mxu0 0.0
        %3114 = vmatprep.subr.mxu0 0.0
        %3115 = vmatpush1.msra.mxu0 0.0
        %3116 = vmatprep.subr.mxu0 0.0
        %3117 = vmatpush1.msra.mxu0 0.0
        %3118 = vmatprep.subr.mxu0 0.0
        %3119 = vmatpush1.msra.mxu0 0.0
        %3120 = vmatprep.subr.mxu0 0.0
        %3121 = vmatpush1.msra.mxu0 0.0
        %3122 = vmatprep.subr.mxu0 0.0
        %3123 = vmatpush1.msra.mxu0 0.0
        %3124 = vmatprep.subr.mxu0 0.0
        %3125 = vmatpush1.msra.mxu0 0.0
        %3126 = vmatprep.subr.mxu0 0.0
        %3127 = vmatpush1.msra.mxu0 0.0
        %3128 = vmatprep.subr.mxu0 0.0
        %3129 = vmatpush1.msra.mxu0 0.0
        %3130 = vmatprep.subr.mxu0 0.0
        %3131 = vmatpush1.msra.mxu0 0.0
        %3132 = vmatprep.subr.mxu0 0.0
        %3133 = vmatpush1.msra.mxu0 0.0
        %3134 = vmatprep.mubr.f32.mxu0 0.0
        %3135 = vmatmul.mubr.f32.gmra.mrb[0].mxu0 %v3068
        %v3136 = vpop.f32.mrb[0].mxu0
        %v3137 = vadd.f32 0.0, %v3136
        %v3138 = vpop.f32.mrb[0].mxu0
        %3139 = vdwg.mxu0
        %v3141 = vsel %vm1185, %v3137, 0
        %3143 = vmatprep.subr.mxu0 0.0
        %3144 = vmatpush1.msra.mxu0 %v2365
        %3145 = vmatprep.subr.mxu0 0.0
        %3146 = vmatpush1.msra.mxu0 0.0
        %3147 = vmatprep.subr.mxu0 0.0
        %3148 = vmatpush1.msra.mxu0 0.0
        %3149 = vmatprep.subr.mxu0 0.0
        %3150 = vmatpush1.msra.mxu0 0.0
        %3151 = vmatprep.subr.mxu0 0.0
        %3152 = vmatpush1.msra.mxu0 0.0
        %3153 = vmatprep.subr.mxu0 0.0
        %3154 = vmatpush1.msra.mxu0 0.0
        %3155 = vmatprep.subr.mxu0 0.0
        %3156 = vmatpush1.msra.mxu0 0.0
        %3157 = vmatprep.subr.mxu0 0.0
        %3158 = vmatpush1.msra.mxu0 0.0
        %3159 = vmatprep.subr.mxu0 0.0
        %3160 = vmatpush1.msra.mxu0 0.0
        %3161 = vmatprep.subr.mxu0 0.0
        %3162 = vmatpush1.msra.mxu0 0.0
        %3163 = vmatprep.subr.mxu0 0.0
        %3164 = vmatpush1.msra.mxu0 0.0
        %3165 = vmatprep.subr.mxu0 0.0
        %3166 = vmatpush1.msra.mxu0 0.0
        %3167 = vmatprep.subr.mxu0 0.0
        %3168 = vmatpush1.msra.mxu0 0.0
        %3169 = vmatprep.subr.mxu0 0.0
        %3170 = vmatpush1.msra.mxu0 0.0
        %3171 = vmatprep.subr.mxu0 0.0
        %3172 = vmatpush1.msra.mxu0 0.0
        %3173 = vmatprep.subr.mxu0 0.0
        %3174 = vmatpush1.msra.mxu0 0.0
        %3175 = vmatprep.subr.mxu0 0.0
        %3176 = vmatpush1.msra.mxu0 0.0
        %3177 = vmatprep.subr.mxu0 0.0
        %3178 = vmatpush1.msra.mxu0 0.0
        %3179 = vmatprep.subr.mxu0 0.0
        %3180 = vmatpush1.msra.mxu0 0.0
        %3181 = vmatprep.subr.mxu0 0.0
        %3182 = vmatpush1.msra.mxu0 0.0
        %3183 = vmatprep.subr.mxu0 0.0
        %3184 = vmatpush1.msra.mxu0 0.0
        %3185 = vmatprep.subr.mxu0 0.0
        %3186 = vmatpush1.msra.mxu0 0.0
        %3187 = vmatprep.subr.mxu0 0.0
        %3188 = vmatpush1.msra.mxu0 0.0
        %3189 = vmatprep.subr.mxu0 0.0
        %3190 = vmatpush1.msra.mxu0 0.0
        %3191 = vmatprep.subr.mxu0 0.0
        %3192 = vmatpush1.msra.mxu0 0.0
        %3193 = vmatprep.subr.mxu0 0.0
        %3194 = vmatpush1.msra.mxu0 0.0
        %3195 = vmatprep.subr.mxu0 0.0
        %3196 = vmatpush1.msra.mxu0 0.0
        %3197 = vmatprep.subr.mxu0 0.0
        %3198 = vmatpush1.msra.mxu0 0.0
        %3199 = vmatprep.subr.mxu0 0.0
        %3200 = vmatpush1.msra.mxu0 0.0
        %3201 = vmatprep.subr.mxu0 0.0
        %3202 = vmatpush1.msra.mxu0 0.0
        %3203 = vmatprep.subr.mxu0 0.0
        %3204 = vmatpush1.msra.mxu0 0.0
        %3205 = vmatprep.subr.mxu0 0.0
        %3206 = vmatpush1.msra.mxu0 0.0
        %3207 = vmatprep.mubr.f32.mxu0 0.0
        %3208 = vmatmul.mubr.f32.gmra.mrb[0].mxu0 %v3141
        %v3209 = vpop.f32.mrb[0].mxu0
        %v3210 = vadd.f32 0.0, %v3209
        %v3211 = vpop.f32.mrb[0].mxu0
        %3212 = vdwg.mxu0
        %v3213 = vadd.f32 %v2972, %v3210
        %3214 = vrot.lane.b32.xlu0 %v2498, 104
        %v3215 = vpop.permute.xlu0 %3214
        %3216 = vrot.lane.b32.xlu0 %v2495, 72
        %v3217 = vpop.permute.xlu0 %3216
        %v3218 = vsel %vm1185, %v3215, 0
        %v3220 = vsel %vm1185, %v3217, 0
        %3222 = vmatprep.subr.mxu0 0.0
        %3223 = vmatpush1.xpose.msra.mxu0 %v3220
        %3224 = vmatprep.subr.mxu0 0.0
        %3225 = vmatpush1.xpose.msra.mxu0 0.0
        %3226 = vmatprep.subr.mxu0 0.0
        %3227 = vmatpush1.xpose.msra.mxu0 0.0
        %3228 = vmatprep.subr.mxu0 0.0
        %3229 = vmatpush1.xpose.msra.mxu0 0.0
        %3230 = vmatprep.subr.mxu0 0.0
        %3231 = vmatpush1.xpose.msra.mxu0 0.0
        %3232 = vmatprep.subr.mxu0 0.0
        %3233 = vmatpush1.xpose.msra.mxu0 0.0
        %3234 = vmatprep.subr.mxu0 0.0
        %3235 = vmatpush1.xpose.msra.mxu0 0.0
        %3236 = vmatprep.subr.mxu0 0.0
        %3237 = vmatpush1.xpose.msra.mxu0 0.0
        %3238 = vmatprep.subr.mxu0 0.0
        %3239 = vmatpush1.xpose.msra.mxu0 0.0
        %3240 = vmatprep.subr.mxu0 0.0
        %3241 = vmatpush1.xpose.msra.mxu0 0.0
        %3242 = vmatprep.subr.mxu0 0.0
        %3243 = vmatpush1.xpose.msra.mxu0 0.0
        %3244 = vmatprep.subr.mxu0 0.0
        %3245 = vmatpush1.xpose.msra.mxu0 0.0
        %3246 = vmatprep.subr.mxu0 0.0
        %3247 = vmatpush1.xpose.msra.mxu0 0.0
        %3248 = vmatprep.subr.mxu0 0.0
        %3249 = vmatpush1.xpose.msra.mxu0 0.0
        %3250 = vmatprep.subr.mxu0 0.0
        %3251 = vmatpush1.xpose.msra.mxu0 0.0
        %3252 = vmatprep.subr.mxu0 0.0
        %3253 = vmatpush1.xpose.msra.mxu0 0.0
        %3254 = vmatprep.subr.mxu0 0.0
        %3255 = vmatpush1.xpose.msra.mxu0 0.0
        %3256 = vmatprep.subr.mxu0 0.0
        %3257 = vmatpush1.xpose.msra.mxu0 0.0
        %3258 = vmatprep.subr.mxu0 0.0
        %3259 = vmatpush1.xpose.msra.mxu0 0.0
        %3260 = vmatprep.subr.mxu0 0.0
        %3261 = vmatpush1.xpose.msra.mxu0 0.0
        %3262 = vmatprep.subr.mxu0 0.0
        %3263 = vmatpush1.xpose.msra.mxu0 0.0
        %3264 = vmatprep.subr.mxu0 0.0
        %3265 = vmatpush1.xpose.msra.mxu0 0.0
        %3266 = vmatprep.subr.mxu0 0.0
        %3267 = vmatpush1.xpose.msra.mxu0 0.0
        %3268 = vmatprep.subr.mxu0 0.0
        %3269 = vmatpush1.xpose.msra.mxu0 0.0
        %3270 = vmatprep.subr.mxu0 0.0
        %3271 = vmatpush1.xpose.msra.mxu0 0.0
        %3272 = vmatprep.subr.mxu0 0.0
        %3273 = vmatpush1.xpose.msra.mxu0 0.0
        %3274 = vmatprep.subr.mxu0 0.0
        %3275 = vmatpush1.xpose.msra.mxu0 0.0
        %3276 = vmatprep.subr.mxu0 0.0
        %3277 = vmatpush1.xpose.msra.mxu0 0.0
        %3278 = vmatprep.subr.mxu0 0.0
        %3279 = vmatpush1.xpose.msra.mxu0 0.0
        %3280 = vmatprep.subr.mxu0 0.0
        %3281 = vmatpush1.xpose.msra.mxu0 0.0
        %3282 = vmatprep.subr.mxu0 0.0
        %3283 = vmatpush1.xpose.msra.mxu0 0.0
        %3284 = vmatprep.subr.mxu0 0.0
        %3285 = vmatpush1.xpose.msra.mxu0 0.0
        %3286 = vmatprep.mubr.f32.mxu0 0.0
        %3287 = vmatmul.mubr.f32.gmra.mrb[0].mxu0 %v3218
        %v3288 = vpop.f32.mrb[0].mxu0
        %v3289 = vadd.f32 0.0, %v3288
        %v3290 = vpop.f32.mrb[0].mxu0
        %3291 = vdwg.mxu0
        %v3292 = vsel %vm1185, %v3289, -inf
        %3293 = vmax.xlane.f32.xlu0 %v3292
        %v3294 = vpop.xlane.xlu0 %3293
        %v3295 = vsub.f32 %v3289, %v3294
        %v3296 = vmul.f32 %v3295, 1.442695
        %v3297 = vpow.pop %v3296
        %v3298 = vsel %vm1185, %v3297, 0.0
        %3299 = vadd.xlane.f32.xlu0 %v3298
        %v3300 = vpop.xlane.xlu0 %3299
        %v3301 = vrcp.pop %v3300
        %v3302 = vmul.f32 %v3297, %v3301
        %3303 = vrot.lane.b32.xlu0 %v2495, 40
        %v3304 = vpop.permute.xlu0 %3303
        %v3307 = vsel %vm1185, %v3302, 0
        %3309 = vmatprep.subr.mxu0 0.0
        %3310 = vmatpush1.msra.mxu0 %v3304
        %3311 = vmatprep.subr.mxu0 0.0
        %3312 = vmatpush1.msra.mxu0 0.0
        %3313 = vmatprep.subr.mxu0 0.0
        %3314 = vmatpush1.msra.mxu0 0.0
        %3315 = vmatprep.subr.mxu0 0.0
        %3316 = vmatpush1.msra.mxu0 0.0
        %3317 = vmatprep.subr.mxu0 0.0
        %3318 = vmatpush1.msra.mxu0 0.0
        %3319 = vmatprep.subr.mxu0 0.0
        %3320 = vmatpush1.msra.mxu0 0.0
        %3321 = vmatprep.subr.mxu0 0.0
        %3322 = vmatpush1.msra.mxu0 0.0
        %3323 = vmatprep.subr.mxu0 0.0
        %3324 = vmatpush1.msra.mxu0 0.0
        %3325 = vmatprep.subr.mxu0 0.0
        %3326 = vmatpush1.msra.mxu0 0.0
        %3327 = vmatprep.subr.mxu0 0.0
        %3328 = vmatpush1.msra.mxu0 0.0
        %3329 = vmatprep.subr.mxu0 0.0
        %3330 = vmatpush1.msra.mxu0 0.0
        %3331 = vmatprep.subr.mxu0 0.0
        %3332 = vmatpush1.msra.mxu0 0.0
        %3333 = vmatprep.subr.mxu0 0.0
        %3334 = vmatpush1.msra.mxu0 0.0
        %3335 = vmatprep.subr.mxu0 0.0
        %3336 = vmatpush1.msra.mxu0 0.0
        %3337 = vmatprep.subr.mxu0 0.0
        %3338 = vmatpush1.msra.mxu0 0.0
        %3339 = vmatprep.subr.mxu0 0.0
        %3340 = vmatpush1.msra.mxu0 0.0
        %3341 = vmatprep.subr.mxu0 0.0
        %3342 = vmatpush1.msra.mxu0 0.0
        %3343 = vmatprep.subr.mxu0 0.0
        %3344 = vmatpush1.msra.mxu0 0.0
        %3345 = vmatprep.subr.mxu0 0.0
        %3346 = vmatpush1.msra.mxu0 0.0
        %3347 = vmatprep.subr.mxu0 0.0
        %3348 = vmatpush1.msra.mxu0 0.0
        %3349 = vmatprep.subr.mxu0 0.0
        %3350 = vmatpush1.msra.mxu0 0.0
        %3351 = vmatprep.subr.mxu0 0.0
        %3352 = vmatpush1.msra.mxu0 0.0
        %3353 = vmatprep.subr.mxu0 0.0
        %3354 = vmatpush1.msra.mxu0 0.0
        %3355 = vmatprep.subr.mxu0 0.0
        %3356 = vmatpush1.msra.mxu0 0.0
        %3357 = vmatprep.subr.mxu0 0.0
        %3358 = vmatpush1.msra.mxu0 0.0
        %3359 = vmatprep.subr.mxu0 0.0
        %3360 = vmatpush1.msra.mxu0 0.0
        %3361 = vmatprep.subr.mxu0 0.0
        %3362 = vmatpush1.msra.mxu0 0.0
        %3363 = vmatprep.subr.mxu0 0.0
        %3364 = vmatpush1.msra.mxu0 0.0
        %3365 = vmatprep.subr.mxu0 0.0
        %3366 = vmatpush1.msra.mxu0 0.0
        %3367 = vmatprep.subr.mxu0 0.0
        %3368 = vmatpush1.msra.mxu0 0.0
        %3369 = vmatprep.subr.mxu0 0.0
        %3370 = vmatpush1.msra.mxu0 0.0
        %3371 = vmatprep.subr.mxu0 0.0
        %3372 = vmatpush1.msra.mxu0 0.0
        %3373 = vmatprep.mubr.f32.mxu0 0.0
        %3374 = vmatmul.mubr.f32.gmra.mrb[0].mxu0 %v3307
        %v3375 = vpop.f32.mrb[0].mxu0
        %v3376 = vadd.f32 0.0, %v3375
        %v3377 = vpop.f32.mrb[0].mxu0
        %3378 = vdwg.mxu0
        %v3380 = vsel %vm1185, %v3376, 0
        %3382 = vmatprep.subr.mxu0 0.0
        %3383 = vmatpush1.msra.mxu0 %v2366
        %3384 = vmatprep.subr.mxu0 0.0
        %3385 = vmatpush1.msra.mxu0 0.0
        %3386 = vmatprep.subr.mxu0 0.0
        %3387 = vmatpush1.msra.mxu0 0.0
        %3388 = vmatprep.subr.mxu0 0.0
        %3389 = vmatpush1.msra.mxu0 0.0
        %3390 = vmatprep.subr.mxu0 0.0
        %3391 = vmatpush1.msra.mxu0 0.0
        %3392 = vmatprep.subr.mxu0 0.0
        %3393 = vmatpush1.msra.mxu0 0.0
        %3394 = vmatprep.subr.mxu0 0.0
        %3395 = vmatpush1.msra.mxu0 0.0
        %3396 = vmatprep.subr.mxu0 0.0
        %3397 = vmatpush1.msra.mxu0 0.0
        %3398 = vmatprep.subr.mxu0 0.0
        %3399 = vmatpush1.msra.mxu0 0.0
        %3400 = vmatprep.subr.mxu0 0.0
        %3401 = vmatpush1.msra.mxu0 0.0
        %3402 = vmatprep.subr.mxu0 0.0
        %3403 = vmatpush1.msra.mxu0 0.0
        %3404 = vmatprep.subr.mxu0 0.0
        %3405 = vmatpush1.msra.mxu0 0.0
        %3406 = vmatprep.subr.mxu0 0.0
        %3407 = vmatpush1.msra.mxu0 0.0
        %3408 = vmatprep.subr.mxu0 0.0
        %3409 = vmatpush1.msra.mxu0 0.0
        %3410 = vmatprep.subr.mxu0 0.0
        %3411 = vmatpush1.msra.mxu0 0.0
        %3412 = vmatprep.subr.mxu0 0.0
        %3413 = vmatpush1.msra.mxu0 0.0
        %3414 = vmatprep.subr.mxu0 0.0
        %3415 = vmatpush1.msra.mxu0 0.0
        %3416 = vmatprep.subr.mxu0 0.0
        %3417 = vmatpush1.msra.mxu0 0.0
        %3418 = vmatprep.subr.mxu0 0.0
        %3419 = vmatpush1.msra.mxu0 0.0
        %3420 = vmatprep.subr.mxu0 0.0
        %3421 = vmatpush1.msra.mxu0 0.0
        %3422 = vmatprep.subr.mxu0 0.0
        %3423 = vmatpush1.msra.mxu0 0.0
        %3424 = vmatprep.subr.mxu0 0.0
        %3425 = vmatpush1.msra.mxu0 0.0
        %3426 = vmatprep.subr.mxu0 0.0
        %3427 = vmatpush1.msra.mxu0 0.0
        %3428 = vmatprep.subr.mxu0 0.0
        %3429 = vmatpush1.msra.mxu0 0.0
        %3430 = vmatprep.subr.mxu0 0.0
        %3431 = vmatpush1.msra.mxu0 0.0
        %3432 = vmatprep.subr.mxu0 0.0
        %3433 = vmatpush1.msra.mxu0 0.0
        %3434 = vmatprep.subr.mxu0 0.0
        %3435 = vmatpush1.msra.mxu0 0.0
        %3436 = vmatprep.subr.mxu0 0.0
        %3437 = vmatpush1.msra.mxu0 0.0
        %3438 = vmatprep.subr.mxu0 0.0
        %3439 = vmatpush1.msra.mxu0 0.0
        %3440 = vmatprep.subr.mxu0 0.0
        %3441 = vmatpush1.msra.mxu0 0.0
        %3442 = vmatprep.subr.mxu0 0.0
        %3443 = vmatpush1.msra.mxu0 0.0
        %3444 = vmatprep.subr.mxu0 0.0
        %3445 = vmatpush1.msra.mxu0 0.0
        %3446 = vmatprep.mubr.f32.mxu0 0.0
        %3447 = vmatmul.mubr.f32.gmra.mrb[0].mxu0 %v3380
        %v3448 = vpop.f32.mrb[0].mxu0
        %v3449 = vadd.f32 0.0, %v3448
        %v3450 = vpop.f32.mrb[0].mxu0
        %3451 = vdwg.mxu0
        %v3452 = vadd.f32 %v3213, %v3449
        %v3453 = vadd.f32 %v2355, %v3452
        %v3455 = vlaneseq
        %v3456 = vshrl.u32 %v3455, 7
        %v3457 = vsub.s32 0, %v3456
        %v3458 = vrot.slane %v2367, %v3457
        %v3460 = vadd.f32 %v3453, %v3458
        %v3461 = vsel %vm1073, %v3460, 0.0
        %3462 = vadd.xlane.f32.xlu0 %v3461
        %v3463 = vpop.xlane.xlu0 %3462
        %v3464 = vmul.f32 %v3463, %v1077
        %v3465 = vsub.f32 %v3460, %v3464
        %v3466 = vmul.f32 %v3465, %v3465
        %v3467 = vsel %vm1073, %v3466, 0.0
        %3468 = vadd.xlane.f32.xlu0 %v3467
        %v3469 = vpop.xlane.xlu0 %3468
        %v3470 = vmul.f32 %v3469, %v1077
        %v3471 = vadd.f32 %v3470, 1e-05
        %v3472 = vrsqrt.pop %v3471
        %v3473 = vmul.f32 %v3465, %v3472
        %v3475 = vlaneseq
        %v3476 = vshrl.u32 %v3475, 7
        %v3477 = vsub.s32 0, %v3476
        %v3478 = vrot.slane %v2368, %v3477
        %v3480 = vmul.f32 %v3473, %v3478
        %v3482 = vlaneseq
        %v3483 = vshrl.u32 %v3482, 7
        %v3484 = vsub.s32 0, %v3483
        %v3485 = vrot.slane %v2369, %v3484
        %v3487 = vadd.f32 %v3480, %v3485
        %v3489 = vlaneseq
        %v3490 = vshrl.u32 %v3489, 7
        %v3491 = vsub.s32 0, %v3490
        %v3492 = vrot.slane %v2374, %v3491
        %v3495 = vsel %vm1073, %v3487, 0
        %3497 = vmatprep.subr.mxu0 0.0
        %3498 = vmatpush1.msra.mxu0 %v2370
        %3499 = vmatprep.subr.mxu0 0.0
        %3500 = vmatpush1.msra.mxu0 %v2371
        %3501 = vmatprep.subr.mxu0 0.0
        %3502 = vmatpush1.msra.mxu0 %v2372
        %3503 = vmatprep.subr.mxu0 0.0
        %3504 = vmatpush1.msra.mxu0 %v2373
        %3505 = vmatprep.subr.mxu0 0.0
        %3506 = vmatpush1.msra.mxu0 0.0
        %3507 = vmatprep.subr.mxu0 0.0
        %3508 = vmatpush1.msra.mxu0 0.0
        %3509 = vmatprep.subr.mxu0 0.0
        %3510 = vmatpush1.msra.mxu0 0.0
        %3511 = vmatprep.subr.mxu0 0.0
        %3512 = vmatpush1.msra.mxu0 0.0
        %3513 = vmatprep.subr.mxu0 0.0
        %3514 = vmatpush1.msra.mxu0 0.0
        %3515 = vmatprep.subr.mxu0 0.0
        %3516 = vmatpush1.msra.mxu0 0.0
        %3517 = vmatprep.subr.mxu0 0.0
        %3518 = vmatpush1.msra.mxu0 0.0
        %3519 = vmatprep.subr.mxu0 0.0
        %3520 = vmatpush1.msra.mxu0 0.0
        %3521 = vmatprep.subr.mxu0 0.0
        %3522 = vmatpush1.msra.mxu0 0.0
        %3523 = vmatprep.subr.mxu0 0.0
        %3524 = vmatpush1.msra.mxu0 0.0
        %3525 = vmatprep.subr.mxu0 0.0
        %3526 = vmatpush1.msra.mxu0 0.0
        %3527 = vmatprep.subr.mxu0 0.0
        %3528 = vmatpush1.msra.mxu0 0.0
        %3529 = vmatprep.subr.mxu0 0.0
        %3530 = vmatpush1.msra.mxu0 0.0
        %3531 = vmatprep.subr.mxu0 0.0
        %3532 = vmatpush1.msra.mxu0 0.0
        %3533 = vmatprep.subr.mxu0 0.0
        %3534 = vmatpush1.msra.mxu0 0.0
        %3535 = vmatprep.subr.mxu0 0.0
        %3536 = vmatpush1.msra.mxu0 0.0
        %3537 = vmatprep.subr.mxu0 0.0
        %3538 = vmatpush1.msra.mxu0 0.0
        %3539 = vmatprep.subr.mxu0 0.0
        %3540 = vmatpush1.msra.mxu0 0.0
        %3541 = vmatprep.subr.mxu0 0.0
        %3542 = vmatpush1.msra.mxu0 0.0
        %3543 = vmatprep.subr.mxu0 0.0
        %3544 = vmatpush1.msra.mxu0 0.0
        %3545 = vmatprep.subr.mxu0 0.0
        %3546 = vmatpush1.msra.mxu0 0.0
        %3547 = vmatprep.subr.mxu0 0.0
        %3548 = vmatpush1.msra.mxu0 0.0
        %3549 = vmatprep.subr.mxu0 0.0
        %3550 = vmatpush1.msra.mxu0 0.0
        %3551 = vmatprep.subr.mxu0 0.0
        %3552 = vmatpush1.msra.mxu0 0.0
        %3553 = vmatprep.subr.mxu0 0.0
        %3554 = vmatpush1.msra.mxu0 0.0
        %3555 = vmatprep.subr.mxu0 0.0
        %3556 = vmatpush1.msra.mxu0 0.0
        %3557 = vmatprep.subr.mxu0 0.0
        %3558 = vmatpush1.msra.mxu0 0.0
        %3559 = vmatprep.subr.mxu0 0.0
        %3560 = vmatpush1.msra.mxu0 0.0
        %3561 = vmatprep.mubr.f32.mxu0 0.0
        %3562 = vmatmul.mubr.f32.gmra.mrb[0].mxu0 %v3495
        %v3563 = vpop.f32.mrb[0].mxu0
        %v3564 = vadd.f32 %v3492, %v3563
        %v3565 = vpop.f32.mrb[0].mxu0
        %3566 = vdwg.mxu0
        %v3567 = vmul.f32 %v3564, 0.5
        %v3568 = vmul.f32 %v3564, 0.70710677
        %vm3569 = vcmp.ge.f32.partialorder %v3568, 0.0
        %v3570 = vsel %vm3569, 1.0, -1.0
        %v3571 = vand.u32 2147483647, %v3568
        %v3572 = vmul.f32 %v3571, 0.3275911
        %v3573 = vadd.f32 %v3572, 1.0
        %v3574 = vrcp.pop %v3573
        %v3575 = vmul.f32 1.0, %v3574
        %v3576 = vmul.f32 %v3575, 1.0614054
        %v3577 = vadd.f32 %v3576, -1.4531521
        %v3578 = vmul.f32 %v3577, %v3575
        %v3579 = vadd.f32 %v3578, 1.4214138
        %v3580 = vmul.f32 %v3579, %v3575
        %v3581 = vadd.f32 %v3580, -0.28449672
        %v3582 = vmul.f32 %v3581, %v3575
        %v3583 = vadd.f32 %v3582, 0.2548296
        %v3584 = vmul.f32 %v3583, %v3575
        %v3585 = vsub.f32 0.0, %v3571
        %v3586 = vmul.f32 %v3585, %v3571
        %v3587 = vmul.f32 %v3586, 1.442695
        %v3588 = vpow.pop %v3587
        %v3589 = vmul.f32 %v3584, %v3588
        %v3590 = vsub.f32 1.0, %v3589
        %v3591 = vmul.f32 %v3570, %v3590
        %v3592 = vadd.f32 %v3591, 1.0
        %v3593 = vmul.f32 %v3567, %v3592
        %3594 = vmatprep.subr.mxu0 0.0
        %3595 = vmatpush1.msra.mxu0 %v2375
        %3596 = vmatprep.subr.mxu0 0.0
        %3597 = vmatpush1.msra.mxu0 %v2376
        %3598 = vmatprep.subr.mxu0 0.0
        %3599 = vmatpush1.msra.mxu0 %v2377
        %3600 = vmatprep.subr.mxu0 0.0
        %3601 = vmatpush1.msra.mxu0 %v2378
        %3602 = vmatprep.subr.mxu0 0.0
        %3603 = vmatpush1.msra.mxu0 %v2379
        %3604 = vmatprep.subr.mxu0 0.0
        %3605 = vmatpush1.msra.mxu0 %v2380
        %3606 = vmatprep.subr.mxu0 0.0
        %3607 = vmatpush1.msra.mxu0 %v2381
        %3608 = vmatprep.subr.mxu0 0.0
        %3609 = vmatpush1.msra.mxu0 %v2382
        %3610 = vmatprep.subr.mxu0 0.0
        %3611 = vmatpush1.msra.mxu0 %v2383
        %3612 = vmatprep.subr.mxu0 0.0
        %3613 = vmatpush1.msra.mxu0 %v2384
        %3614 = vmatprep.subr.mxu0 0.0
        %3615 = vmatpush1.msra.mxu0 %v2385
        %3616 = vmatprep.subr.mxu0 0.0
        %3617 = vmatpush1.msra.mxu0 %v2386
        %3618 = vmatprep.subr.mxu0 0.0
        %3619 = vmatpush1.msra.mxu0 %v2387
        %3620 = vmatprep.subr.mxu0 0.0
        %3621 = vmatpush1.msra.mxu0 %v2388
        %3622 = vmatprep.subr.mxu0 0.0
        %3623 = vmatpush1.msra.mxu0 %v2389
        %3624 = vmatprep.subr.mxu0 0.0
        %3625 = vmatpush1.msra.mxu0 %v2390
        %3626 = vmatprep.subr.mxu0 0.0
        %3627 = vmatpush1.msra.mxu0 0.0
        %3628 = vmatprep.subr.mxu0 0.0
        %3629 = vmatpush1.msra.mxu0 0.0
        %3630 = vmatprep.subr.mxu0 0.0
        %3631 = vmatpush1.msra.mxu0 0.0
        %3632 = vmatprep.subr.mxu0 0.0
        %3633 = vmatpush1.msra.mxu0 0.0
        %3634 = vmatprep.subr.mxu0 0.0
        %3635 = vmatpush1.msra.mxu0 0.0
        %3636 = vmatprep.subr.mxu0 0.0
        %3637 = vmatpush1.msra.mxu0 0.0
        %3638 = vmatprep.subr.mxu0 0.0
        %3639 = vmatpush1.msra.mxu0 0.0
        %3640 = vmatprep.subr.mxu0 0.0
        %3641 = vmatpush1.msra.mxu0 0.0
        %3642 = vmatprep.subr.mxu0 0.0
        %3643 = vmatpush1.msra.mxu0 0.0
        %3644 = vmatprep.subr.mxu0 0.0
        %3645 = vmatpush1.msra.mxu0 0.0
        %3646 = vmatprep.subr.mxu0 0.0
        %3647 = vmatpush1.msra.mxu0 0.0
        %3648 = vmatprep.subr.mxu0 0.0
        %3649 = vmatpush1.msra.mxu0 0.0
        %3650 = vmatprep.subr.mxu0 0.0
        %3651 = vmatpush1.msra.mxu0 0.0
        %3652 = vmatprep.subr.mxu0 0.0
        %3653 = vmatpush1.msra.mxu0 0.0
        %3654 = vmatprep.subr.mxu0 0.0
        %3655 = vmatpush1.msra.mxu0 0.0
        %3656 = vmatprep.subr.mxu0 0.0
        %3657 = vmatpush1.msra.mxu0 0.0
        %3658 = vmatprep.mubr.f32.mxu0 0.0
        %3659 = vmatmul.mubr.f32.gmra.mrb[0].mxu0 %v3593
        %v3660 = vpop.f32.mrb[0].mxu0
        %v3661 = vadd.f32 0.0, %v3660
        %v3662 = vpop.f32.mrb[0].mxu0
        %3663 = vdwg.mxu0
        %v3664 = vadd.f32 %v3460, %v3661
        %v3666 = vlaneseq
        %v3667 = vshrl.u32 %v3666, 7
        %v3668 = vsub.s32 0, %v3667
        %v3669 = vrot.slane %v2391, %v3668
        %v3671 = vadd.f32 %v3664, %v3669
        %v3672 = vld [vmem:[%s55] sm:$0x1]
        %v3673 = vld [vmem:[%s57] sm:$0x1]
        %v3674 = vsel %vm1073, %v3671, 0.0
        %3675 = vadd.xlane.f32.xlu0 %v3674
        %v3676 = vpop.xlane.xlu0 %3675
        %v3677 = vmul.f32 %v3676, %v1077
        %v3678 = vsub.f32 %v3671, %v3677
        %v3679 = vmul.f32 %v3678, %v3678
        %v3680 = vsel %vm1073, %v3679, 0.0
        %3681 = vadd.xlane.f32.xlu0 %v3680
        %v3682 = vpop.xlane.xlu0 %3681
        %v3683 = vmul.f32 %v3682, %v1077
        %v3684 = vadd.f32 %v3683, 1e-05
        %v3685 = vrsqrt.pop %v3684
        %v3686 = vmul.f32 %v3678, %v3685
        %v3688 = vlaneseq
        %v3689 = vshrl.u32 %v3688, 7
        %v3690 = vsub.s32 0, %v3689
        %v3691 = vrot.slane %v3672, %v3690
        %v3693 = vmul.f32 %v3686, %v3691
        %v3695 = vlaneseq
        %v3696 = vshrl.u32 %v3695, 7
        %v3697 = vsub.s32 0, %v3696
        %v3698 = vrot.slane %v3673, %v3697
        %v3700 = vadd.f32 %v3693, %v3698
        %v3701 = vld [vmem:[%s59] sm:$0xff]
        %v3702 = vld [vmem:[%s59 + $0x8] sm:$0xff]
        %v3703 = vld [vmem:[%s59 + $0x10] sm:$0xff]
        %v3704 = vld [vmem:[%s59 + $0x18] sm:$0xff]
        %v3705 = vld [vmem:[%s61] sm:$0x1]
        %v3707 = vrot.slane %v3700, 7
        %v3708 = vsel %vm1073, %v3707, 0
        %3710 = vmatprep.subr.mxu0 0.0
        %3711 = vmatpush1.msra.mxu0 %v3701
        %3712 = vmatprep.subr.mxu0 0.0
        %3713 = vmatpush1.msra.mxu0 %v3702
        %3714 = vmatprep.subr.mxu0 0.0
        %3715 = vmatpush1.msra.mxu0 %v3703
        %3716 = vmatprep.subr.mxu0 0.0
        %3717 = vmatpush1.msra.mxu0 %v3704
        %3718 = vmatprep.subr.mxu0 0.0
        %3719 = vmatpush1.msra.mxu0 0.0
        %3720 = vmatprep.subr.mxu0 0.0
        %3721 = vmatpush1.msra.mxu0 0.0
        %3722 = vmatprep.subr.mxu0 0.0
        %3723 = vmatpush1.msra.mxu0 0.0
        %3724 = vmatprep.subr.mxu0 0.0
        %3725 = vmatpush1.msra.mxu0 0.0
        %3726 = vmatprep.subr.mxu0 0.0
        %3727 = vmatpush1.msra.mxu0 0.0
        %3728 = vmatprep.subr.mxu0 0.0
        %3729 = vmatpush1.msra.mxu0 0.0
        %3730 = vmatprep.subr.mxu0 0.0
        %3731 = vmatpush1.msra.mxu0 0.0
        %3732 = vmatprep.subr.mxu0 0.0
        %3733 = vmatpush1.msra.mxu0 0.0
        %3734 = vmatprep.subr.mxu0 0.0
        %3735 = vmatpush1.msra.mxu0 0.0
        %3736 = vmatprep.subr.mxu0 0.0
        %3737 = vmatpush1.msra.mxu0 0.0
        %3738 = vmatprep.subr.mxu0 0.0
        %3739 = vmatpush1.msra.mxu0 0.0
        %3740 = vmatprep.subr.mxu0 0.0
        %3741 = vmatpush1.msra.mxu0 0.0
        %3742 = vmatprep.subr.mxu0 0.0
        %3743 = vmatpush1.msra.mxu0 0.0
        %3744 = vmatprep.subr.mxu0 0.0
        %3745 = vmatpush1.msra.mxu0 0.0
        %3746 = vmatprep.subr.mxu0 0.0
        %3747 = vmatpush1.msra.mxu0 0.0
        %3748 = vmatprep.subr.mxu0 0.0
        %3749 = vmatpush1.msra.mxu0 0.0
        %3750 = vmatprep.subr.mxu0 0.0
        %3751 = vmatpush1.msra.mxu0 0.0
        %3752 = vmatprep.subr.mxu0 0.0
        %3753 = vmatpush1.msra.mxu0 0.0
        %3754 = vmatprep.subr.mxu0 0.0
        %3755 = vmatpush1.msra.mxu0 0.0
        %3756 = vmatprep.subr.mxu0 0.0
        %3757 = vmatpush1.msra.mxu0 0.0
        %3758 = vmatprep.subr.mxu0 0.0
        %3759 = vmatpush1.msra.mxu0 0.0
        %3760 = vmatprep.subr.mxu0 0.0
        %3761 = vmatpush1.msra.mxu0 0.0
        %3762 = vmatprep.subr.mxu0 0.0
        %3763 = vmatpush1.msra.mxu0 0.0
        %3764 = vmatprep.subr.mxu0 0.0
        %3765 = vmatpush1.msra.mxu0 0.0
        %3766 = vmatprep.subr.mxu0 0.0
        %3767 = vmatpush1.msra.mxu0 0.0
        %3768 = vmatprep.subr.mxu0 0.0
        %3769 = vmatpush1.msra.mxu0 0.0
        %3770 = vmatprep.subr.mxu0 0.0
        %3771 = vmatpush1.msra.mxu0 0.0
        %3772 = vmatprep.subr.mxu0 0.0
        %3773 = vmatpush1.msra.mxu0 0.0
        %3774 = vmatprep.mubr.f32.mxu0 0.0
        %3775 = vmatmul.mubr.f32.gmra.mrb[0].mxu0 %v3708
        %v3776 = vpop.f32.mrb[0].mxu0
        %v3777 = vadd.f32 %v3705, %v3776
        %v3778 = vpop.f32.mrb[0].mxu0
        %3779 = vdwg.mxu0
        %vm3780 = vcmask 516096
        %3781 = vst.msk [vmem:[%s948] sm:$0x1] %vm3780, %v3777
        %s3782 = sand.u32 %s741, 1
        %s3783 = scalar_lea.sflag [#allocation3], %s3782
        %s3784 = sand.u32 %s741, 1
        %s3785 = scalar_lea.vmem [#allocation2], %s3784
        // Predicated region
        $region145: #{tpu_custom_call.1} parent=143 // pred_check
          %p3786 = pneg %p751
        $region146: #{tpu_custom_call.1} parent=143 // pred_check_branch
          %3788 = sbr.rel (%p3786) target = $region148
        $region147: #{tpu_custom_call.1} parent=143 // pred_region
          %s3790 = ssub.s32 16, 16
          %3791 = vsyncadd %s3783, %s3790
          %s3792 = smul.addr %s77, 16
          %s3793 = scalar_lea.hbm %s63, %s3792
          %s3795 = sshll.u32 %s3785, 4
          %s3796 = int_to_ptr.vmem [resolvable:$true] %s3795
          %3798 = dma.vmem_to_hbm [thread:$0]  %s3796, 16, %s3793, %s3783
        $region148: #{tpu_custom_call.1} parent=143 // pred_fallthru
          _
      $region144: #{tpu_custom_call.1} parent=5 // pred_fallthru
        _
      %p3799 = scmp.le.s32.totalorder 2, %s72
      // Predicated region
      $region149: #{tpu_custom_call.1} parent=5 // pred_check
        %p3800 = pneg %p3799
      $region150: #{tpu_custom_call.1} parent=5 // pred_check_branch
        %3802 = sbr.rel (%p3800) target = $region152
      $region151: #{tpu_custom_call.1} parent=5 // pred_region
        %s3803 = ssub.s32 %s72, 2
        // Predicated region
        $region153: #{tpu_custom_call.1} parent=151 // pred_check
          %p3804 = pneg %p757
        $region154: #{tpu_custom_call.1} parent=151 // pred_check_branch
          %3806 = sbr.rel (%p3804) target = $region156
        $region155: #{tpu_custom_call.1} parent=151 // pred_region
          %s3807 = sand.u32 %s742, 1
          %s3808 = scalar_lea.sflag [#allocation3], %s3807
          %s3809 = sand.u32 %s742, 1
          %s3810 = scalar_lea.vmem [#allocation2], %s3809
          %3811 = dma.done %s3808, 16
        $region156: #{tpu_custom_call.1} parent=151 // pred_fallthru
          _
      $region152: #{tpu_custom_call.1} parent=5 // pred_fallthru
        _
    $region6: #{tpu_custom_call.1} parent=1 // loop_footer
      %s76 = sadd.s32 1, %s72
    $region7: #{tpu_custom_call.1} parent=1 // loop_footer_branch
      %71 = sbr.rel target = $region3
    $region8: #{tpu_custom_call.1} parent=1 // loop_exit
      _
    %3812 = vsyncpa [#allocation3], 1
    %s3813 = scalar_lea.sflag [#allocation3], 1
    %3814 = vsyncpa %s3813, 1

</llo_original>
